<compile_context>
chip_gen: v7x
topology: tpu7x:2x2x1
jax: 0.10.0
libtpu: 0.0.40
codegen_flags: <defaults>
</compile_context>

<pallas_src>
import functools

import jax
import jax.numpy as jnp
from jax import lax
from jax.experimental import pallas as pl
from jax.experimental.pallas import tpu as pltpu


def _rup(x, m):
    return (x + m - 1) // m * m


# ----------------------------------------------------------------------------
# Kernel A: fused GEMM  out = epilogue(x @ w)   (all 1x1 convolutions)
#   x: (M, K) bf16, w: (K, N) bf16, sb: (2, N) f32 (row0 = scale, row1 = bias),
#   optional residual r: (M, N) bf16 added pre-ReLU.  f32 accumulate + epilogue.
# ----------------------------------------------------------------------------

def _gemm_collapsed_kernel(*refs, relu, has_res):
    if has_res:
        x_ref, w_ref, sb_ref, r_ref, o_ref = refs
    else:
        x_ref, w_ref, sb_ref, o_ref = refs
        r_ref = None
    acc = jnp.dot(x_ref[...], w_ref[...], preferred_element_type=jnp.float32)
    y = acc * sb_ref[0:1, :] + sb_ref[1:2, :]
    if has_res:
        y = y + r_ref[...].astype(jnp.float32)
    if relu:
        y = jnp.maximum(y, 0.0)
    o_ref[...] = y.astype(o_ref.dtype)


def _gemm_kblocked_kernel(*refs, relu, has_res):
    if has_res:
        x_ref, w_ref, sb_ref, r_ref, o_ref, acc_ref = refs
    else:
        x_ref, w_ref, sb_ref, o_ref, acc_ref = refs
        r_ref = None

    @pl.when(pl.program_id(2) == 0)
    def _():
        acc_ref[...] = jnp.zeros_like(acc_ref)

    acc_ref[...] += jnp.dot(x_ref[...], w_ref[...],
                            preferred_element_type=jnp.float32)

    @pl.when(pl.program_id(2) == pl.num_programs(2) - 1)
    def _():
        y = acc_ref[...] * sb_ref[0:1, :] + sb_ref[1:2, :]
        if has_res:
            y = y + r_ref[...].astype(jnp.float32)
        if relu:
            y = jnp.maximum(y, 0.0)
        o_ref[...] = y.astype(o_ref.dtype)


def fused_gemm(x, w, sb, *, relu, res=None):
    M, K = x.shape
    N = w.shape[1]
    has_res = res is not None

    # Per-GEMM tile selection: collapse K / Cout to single blocks whenever they fit.
    tm = M if M <= 1024 else 512
    tn = N if N <= 512 else 256
    tk = K if K <= 2048 else 512
    Mp, Np, Kp = _rup(M, tm), _rup(N, tn), _rup(K, tk)

    xp = x if (Mp, Kp) == (M, K) else jnp.pad(x, ((0, Mp - M), (0, Kp - K)))
    wp = w if (Kp, Np) == (K, N) else jnp.pad(w, ((0, Kp - K), (0, Np - N)))
    sbp = sb if Np == N else jnp.pad(sb, ((0, 0), (0, Np - N)))
    inputs = [xp, wp, sbp]
    if has_res:
        rp = res if (Mp, Np) == (M, N) else jnp.pad(res, ((0, Mp - M), (0, Np - N)))
        inputs.append(rp)

    if Kp == tk:  # single K step: no accumulator scratch, no init/finalize branches
        in_specs = [
            pl.BlockSpec((tm, tk), lambda i, j: (i, 0)),
            pl.BlockSpec((tk, tn), lambda i, j: (0, j)),
            pl.BlockSpec((2, tn), lambda i, j: (0, j)),
        ]
        if has_res:
            in_specs.append(pl.BlockSpec((tm, tn), lambda i, j: (i, j)))
        out = pl.pallas_call(
            functools.partial(_gemm_collapsed_kernel, relu=relu, has_res=has_res),
            out_shape=jax.ShapeDtypeStruct((Mp, Np), jnp.bfloat16),
            grid_spec=pltpu.PrefetchScalarGridSpec(
                num_scalar_prefetch=0,
                grid=(Mp // tm, Np // tn),
                in_specs=in_specs,
                out_specs=pl.BlockSpec((tm, tn), lambda i, j: (i, j)),
            ),
            compiler_params=pltpu.CompilerParams(
                dimension_semantics=("parallel", "parallel")),
        )(*inputs)
    else:  # large-K path (not exercised at the demo shapes)
        in_specs = [
            pl.BlockSpec((tm, tk), lambda i, j, k: (i, k)),
            pl.BlockSpec((tk, tn), lambda i, j, k: (k, j)),
            pl.BlockSpec((2, tn), lambda i, j, k: (0, j)),
        ]
        if has_res:
            in_specs.append(pl.BlockSpec((tm, tn), lambda i, j, k: (i, j)))
        out = pl.pallas_call(
            functools.partial(_gemm_kblocked_kernel, relu=relu, has_res=has_res),
            out_shape=jax.ShapeDtypeStruct((Mp, Np), jnp.bfloat16),
            grid_spec=pltpu.PrefetchScalarGridSpec(
                num_scalar_prefetch=0,
                grid=(Mp // tm, Np // tn, Kp // tk),
                in_specs=in_specs,
                out_specs=pl.BlockSpec((tm, tn), lambda i, j, k: (i, j)),
                scratch_shapes=[pltpu.VMEM((tm, tn), jnp.float32)],
            ),
            compiler_params=pltpu.CompilerParams(
                dimension_semantics=("parallel", "parallel", "arbitrary")),
        )(*inputs)

    if (Mp, Np) != (M, N):
        out = out[:M, :N]
    return out


# ----------------------------------------------------------------------------
# Kernel B: KxK conv with the tap loop fused into the kernel (no im2col in HBM).
# Grid = (batch, Cout blocks).  The padded (phase-decomposed for stride>1)
# activation for one image is VMEM-resident; each tap is a static window slice.
# ----------------------------------------------------------------------------

def _spatial_conv_kernel(x_ref, w_ref, sb_ref, o_ref, *, tap_info, out_hw, relu):
    ho, wo = out_hw
    cin = w_ref.shape[1]
    tn = o_ref.shape[3]
    acc = jnp.zeros((ho * wo, tn), jnp.float32)
    for t, (p_idx, qy, qx) in enumerate(tap_info):
        win = x_ref[p_idx, qy:qy + ho, qx:qx + wo, :]          # (ho, wo, cin) bf16
        acc = acc + jnp.dot(win.reshape(ho * wo, cin), w_ref[t],
                            preferred_element_type=jnp.float32)
    y = acc * sb_ref[0:1, :] + sb_ref[1:2, :]
    if relu:
        y = jnp.maximum(y, 0.0)
    o_ref[...] = y.reshape(1, ho, wo, tn).astype(o_ref.dtype)


def _fold_bn(bn, cout):
    """Eval-mode BatchNorm folded into a packed (2, Cout) f32 [scale; bias]."""
    if bn is None:
        scale = jnp.ones((cout,), jnp.float32)
        bias = jnp.zeros((cout,), jnp.float32)
    else:
        scale = bn["gamma"] * lax.rsqrt(bn["var"] + 1e-5)
        bias = bn["beta"] - bn["mean"] * scale
    return jnp.stack([scale, bias], axis=0).astype(jnp.float32)


def conv_spatial_block(x, w, bn, *, stride, pad, dilation, relu):
    """KxK conv + BN + (ReLU).  x: NHWC bf16, w: (Cout, Cin, KH, KW) f32."""
    n, h, wd, cin = x.shape
    cout, _, kh, kw = w.shape
    s = stride
    ho = (h + 2 * pad - (dilation * (kh - 1) + 1)) // s + 1
    wo = (wd + 2 * pad - (dilation * (kw - 1) + 1)) // s + 1

    xp = jnp.pad(x, ((0, 0), (pad, pad), (pad, pad), (0, 0))) if pad else x
    hpad, wpad = h + 2 * pad, wd + 2 * pad
    hpad2, wpad2 = _rup(hpad, s), _rup(wpad, s)
    if (hpad2, wpad2) != (hpad, wpad):
        xp = jnp.pad(xp, ((0, 0), (0, hpad2 - hpad), (0, wpad2 - wpad), (0, 0)))
    hq, wq = hpad2 // s, wpad2 // s

    # Stride-phase decomposition (~1x HBM traffic); every tap window becomes a
    # contiguous static slice inside the kernel.
    nph = s * s
    phases = [xp[:, py::s, px::s, :] for py in range(s) for px in range(s)]
    xph = jnp.stack(phases, axis=1).reshape(n * nph, hq, wq, cin)

    tap_info = []
    for dy in range(kh):
        for dx in range(kw):
            oy, ox = dy * dilation, dx * dilation
            tap_info.append(((oy % s) * s + (ox % s), oy // s, ox // s))

    wtap = jnp.transpose(w, (2, 3, 1, 0)).reshape(kh * kw, cin, cout)
    wtap = wtap.astype(jnp.bfloat16)
    sb = _fold_bn(bn, cout)

    if cout <= 256 or cout % 128 != 0:
        tn = cout
    elif cout % 256 == 0:
        tn = 256
    else:
        tn = 128

    kernel = functools.partial(_spatial_conv_kernel, tap_info=tuple(tap_info),
                               out_hw=(ho, wo), relu=relu)
    out = pl.pallas_call(
        kernel,
        out_shape=jax.ShapeDtypeStruct((n, ho, wo, cout), jnp.bfloat16),
        grid_spec=pltpu.PrefetchScalarGridSpec(
            num_scalar_prefetch=0,
            grid=(n, cout // tn),
            in_specs=[
                pl.BlockSpec((nph, hq, wq, cin), lambda b, j: (b, 0, 0, 0)),
                pl.BlockSpec((kh * kw, cin, tn), lambda b, j: (0, 0, j)),
                pl.BlockSpec((2, tn), lambda b, j: (0, j)),
            ],
            out_specs=pl.BlockSpec((1, ho, wo, tn), lambda b, j: (b, 0, 0, j)),
        ),
        compiler_params=pltpu.CompilerParams(
            dimension_semantics=("parallel", "parallel")),
    )(xph, wtap, sb)
    return out


def conv1x1_block(x, w, bn, *, stride=1, relu=False, res=None):
    """1x1 conv + BN + (residual) + (ReLU).  x: NHWC bf16, w: (Cout, Cin, 1, 1)."""
    if stride > 1:
        x = x[:, ::stride, ::stride, :]       # strided 1x1 conv == subsample
    n, h, wd, cin = x.shape
    cout = w.shape[0]
    m = n * h * wd
    x2d = x.reshape(m, cin)
    wmat = jnp.transpose(w.reshape(cout, cin), (1, 0)).astype(jnp.bfloat16)
    sb = _fold_bn(bn, cout)
    r2d = None if res is None else res.reshape(m, cout)
    y2d = fused_gemm(x2d, wmat, sb, relu=relu, res=r2d)
    return y2d.reshape(n, h, wd, cout)


# ----------------------------------------------------------------------------
# Bottleneck forward (mirrors the PyTorch module)
# ----------------------------------------------------------------------------

def bottleneck_forward(x, p, *, stride=1, dilation=1):
    out = conv1x1_block(x, p["conv1_w"], p["bn1"], relu=True)
    out = conv_spatial_block(out, p["conv2_w"], p["bn2"], stride=stride,
                             pad=(3 * dilation - 1) // 2, dilation=dilation,
                             relu=True)
    if "down_w" in p:
        idn = conv1x1_block(x, p["down_w"], p["down_bn"], stride=stride, relu=False)
    else:
        idn = x
    # F.relu(bn3(conv3(out)) + identity)
    return conv1x1_block(out, p["conv3_w"], p["bn3"], relu=True, res=idn)


# Plain-JAX reference (f32) for correctness checking.
def bottleneck_ref(x, p, *, stride=1, dilation=1):
    def conv_bn(z, w, bn, s, pad, d, relu, res=None):
        y = lax.conv_general_dilated(
            z, w, (s, s), ((pad, pad), (pad, pad)), rhs_dilation=(d, d),
            dimension_numbers=("NHWC", "OIHW", "NHWC"),
            precision=lax.Precision.HIGHEST)
        scale = bn["gamma"] * lax.rsqrt(bn["var"] + 1e-5)
        y = y * scale + (bn["beta"] - bn["mean"] * scale)
        if res is not None:
            y = y + res
        if relu:
            y = jnp.maximum(y, 0.0)
        return y

    out = conv_bn(x, p["conv1_w"], p["bn1"], 1, 0, 1, True)
    out = conv_bn(out, p["conv2_w"], p["bn2"], stride,
                  (3 * dilation - 1) // 2, dilation, True)
    idn = (conv_bn(x, p["down_w"], p["down_bn"], stride, 0, 1, False)
           if "down_w" in p else x)
    return conv_bn(out, p["conv3_w"], p["bn3"], 1, 0, 1, True, res=idn)


# ----------------------------------------------------------------------------
# Deterministic parameter construction
# ----------------------------------------------------------------------------

def make_bottleneck_params(key, idx, *, inplanes, planes, downsample):
    def nrm(i, shape, scale):
        return scale * jax.random.normal(
            jax.random.fold_in(key, idx * 1000 + i), shape, jnp.float32)

    def bn(i, c):
        return {"gamma": 1.0 + 0.1 * nrm(i, (c,), 1.0),
                "beta": 0.05 * nrm(i + 1, (c,), 1.0),
                "mean": 0.05 * nrm(i + 2, (c,), 1.0),
                "var": 1.0 + 0.1 * jnp.abs(nrm(i + 3, (c,), 1.0))}

    p = {
        "conv1_w": nrm(1, (planes, inplanes, 1, 1), (1.0 / inplanes) ** 0.5),
        "bn1": bn(10, planes),
        "conv2_w": nrm(2, (planes, planes, 3, 3), (1.0 / (planes * 9)) ** 0.5),
        "bn2": bn(20, planes),
        "conv3_w": nrm(3, (planes * 4, planes, 1, 1), (1.0 / planes) ** 0.5),
        "bn3": bn(30, planes * 4),
    }
    if downsample:
        p["down_w"] = nrm(4, (planes * 4, inplanes, 1, 1), (1.0 / inplanes) ** 0.5)
        p["down_bn"] = bn(40, planes * 4)
    return p


# ----------------------------------------------------------------------------

if __name__ == "__main__":
    key = jax.random.PRNGKey(0)
    N, C, H, W = 2, 64, 16, 16
    planes = 16
    x_nchw = jax.random.normal(jax.random.fold_in(key, 999), (N, C, H, W),
                               jnp.float32)

    # block 1: stride-2 with downsample; block 2: stride-1 identity shortcut.
    p1 = make_bottleneck_params(key, 1, inplanes=C, planes=planes, downsample=True)
    p2 = make_bottleneck_params(key, 2, inplanes=4 * planes, planes=planes,
                                downsample=False)

    @jax.jit
    def run_pallas(x):
        h = jnp.transpose(x, (0, 2, 3, 1)).astype(jnp.bfloat16)   # NCHW -> NHWC bf16
        h = bottleneck_forward(h, p1, stride=2, dilation=1)
        h = bottleneck_forward(h, p2, stride=1, dilation=1)
        return jnp.transpose(h, (0, 3, 1, 2)).astype(jnp.float32)

    @jax.jit
    def run_ref(x):
        h = jnp.transpose(x, (0, 2, 3, 1))
        h = bottleneck_ref(h, p1, stride=2, dilation=1)
        h = bottleneck_ref(h, p2, stride=1, dilation=1)
        return jnp.transpose(h, (0, 3, 1, 2))

    out = jax.block_until_ready(run_pallas(x_nchw))
    ref = jax.block_until_ready(run_ref(x_nchw))

    assert out.shape == (N, 4 * planes, H // 2, W // 2), out.shape
    assert bool(jnp.all(jnp.isfinite(out)))
    rel_err = float(jnp.max(jnp.abs(out - ref)) / (jnp.max(jnp.abs(ref)) + 1e-6))
    assert rel_err < 0.08, f"mismatch vs f32 reference: rel_err={rel_err}"
    print("KERNEL_OK")
</pallas_src>

<mosaic_0001>
module attributes {stable_mosaic.version = 11 : i64} {
  func.func @_gemm_collapsed_kernel(%arg0: i32, %arg1: i32, %arg2: memref<512x64xbf16, #tpu.memory_space<vmem>>, %arg3: memref<64x16xbf16, #tpu.memory_space<vmem>>, %arg4: memref<2x16xf32, #tpu.memory_space<vmem>>, %arg5: memref<512x16xbf16, #tpu.memory_space<vmem>>) attributes {dimension_semantics = [#tpu.dimension_semantics<parallel>, #tpu.dimension_semantics<parallel>], iteration_bounds = array<i64: 1, 1>, scalar_prefetch = 0 : i64, scratch_operands = 0 : i64, tpu.core_type = #tpu.core_type<tc>, window_params = [{transform_indices = @transform_0, window_bounds = array<i64: 512, 64>}, {transform_indices = @transform_1, window_bounds = array<i64: 64, 16>}, {transform_indices = @transform_2, window_bounds = array<i64: 2, 16>}, {transform_indices = @transform_3, window_bounds = array<i64: 512, 16>}]} {
    %c0 = arith.constant 0 : index
    %c0_0 = arith.constant 0 : index
    %0 = vector.load %arg2[%c0, %c0_0] : memref<512x64xbf16, #tpu.memory_space<vmem>>, vector<512x64xbf16>
    %c0_1 = arith.constant 0 : index
    %c0_2 = arith.constant 0 : index
    %1 = vector.load %arg3[%c0_1, %c0_2] : memref<64x16xbf16, #tpu.memory_space<vmem>>, vector<64x16xbf16>
    %cst = arith.constant dense<0.000000e+00> : vector<512x16xf32>
    %2 = tpu.matmul %0, %1, %cst {dimension_numbers = #tpu.dot_dimension_numbers<[1], [0], [0], [1], [0, 0, 1, 1], [], []>} : vector<512x64xbf16>, vector<64x16xbf16>, vector<512x16xf32> -> vector<512x16xf32>
    %c0_3 = arith.constant 0 : index
    %c0_4 = arith.constant 0 : index
    %3 = vector.load %arg4[%c0_3, %c0_4] : memref<2x16xf32, #tpu.memory_space<vmem>>, vector<1x16xf32>
    %4 = vector.broadcast %3 : vector<1x16xf32> to vector<512x16xf32>
    %5 = arith.mulf %2, %4 : vector<512x16xf32>
    %c1 = arith.constant 1 : index
    %c0_5 = arith.constant 0 : index
    %6 = vector.load %arg4[%c1, %c0_5] : memref<2x16xf32, #tpu.memory_space<vmem>>, vector<1x16xf32>
    %7 = vector.broadcast %6 : vector<1x16xf32> to vector<512x16xf32>
    %8 = arith.addf %5, %7 : vector<512x16xf32>
    %cst_6 = arith.constant 0.000000e+00 : f32
    %9 = vector.broadcast %cst_6 : f32 to vector<512x16xf32>
    %10 = arith.maximumf %8, %9 : vector<512x16xf32>
    %11 = arith.truncf %10 : vector<512x16xf32> to vector<512x16xbf16>
    %c0_7 = arith.constant 0 : index
    %c0_8 = arith.constant 0 : index
    %12 = vector.load %arg5[%c0_7, %c0_8] : memref<512x16xbf16, #tpu.memory_space<vmem>>, vector<512x16xbf16>
    tpu.vector_store %arg5[%c0_7, %c0_8], %11 {strides = array<i32>} : memref<512x16xbf16, #tpu.memory_space<vmem>>, vector<512x16xbf16>,
    return
  }
  func.func @transform_0(%arg0: i32, %arg1: i32) -> (i32, i32) {
    %c0_i32 = arith.constant 0 : i32
    %c0_i32_0 = arith.constant 0 : i32
    return %arg0, %c0_i32 : i32, i32
  }
  func.func @transform_1(%arg0: i32, %arg1: i32) -> (i32, i32) {
    %c0_i32 = arith.constant 0 : i32
    %c0_i32_0 = arith.constant 0 : i32
    return %c0_i32, %arg1 : i32, i32
  }
  func.func @transform_2(%arg0: i32, %arg1: i32) -> (i32, i32) {
    %c0_i32 = arith.constant 0 : i32
    %c0_i32_0 = arith.constant 0 : i32
    return %c0_i32, %arg1 : i32, i32
  }
  func.func @transform_3(%arg0: i32, %arg1: i32) -> (i32, i32) {
    %c0_i32 = arith.constant 0 : i32
    return %arg0, %arg1 : i32, i32
  }
}

module attributes {stable_mosaic.version = 11 : i64} {
  func.func @_spatial_conv_kernel(%arg0: i32, %arg1: i32, %arg2: memref<4x9x9x16xbf16, #tpu.memory_space<vmem>>, %arg3: memref<9x16x16xbf16, #tpu.memory_space<vmem>>, %arg4: memref<2x16xf32, #tpu.memory_space<vmem>>, %arg5: memref<1x8x8x16xbf16, #tpu.memory_space<vmem>>) attributes {dimension_semantics = [#tpu.dimension_semantics<parallel>, #tpu.dimension_semantics<parallel>], iteration_bounds = array<i64: 2, 1>, scalar_prefetch = 0 : i64, scratch_operands = 0 : i64, tpu.core_type = #tpu.core_type<tc>, window_params = [{transform_indices = @transform_0, window_bounds = array<i64: 4, 9, 9, 16>}, {transform_indices = @transform_1, window_bounds = array<i64: 9, 16, 16>}, {transform_indices = @transform_2, window_bounds = array<i64: 2, 16>}, {transform_indices = @transform_3, window_bounds = array<i64: 1, 8, 8, 16>}]} {
    %cst = arith.constant 0.000000e+00 : f32
    %0 = vector.broadcast %cst : f32 to vector<64x16xf32>
    %c0 = arith.constant 0 : index
    %c0_0 = arith.constant 0 : index
    %c0_1 = arith.constant 0 : index
    %c0_2 = arith.constant 0 : index
    %1 = vector.load %arg2[%c0, %c0_0, %c0_1, %c0_2] : memref<4x9x9x16xbf16, #tpu.memory_space<vmem>>, vector<1x8x8x16xbf16>
    %2 = vector.shape_cast %1 : vector<1x8x8x16xbf16> to vector<8x8x16xbf16>
    %3 = vector.shape_cast %2 : vector<8x8x16xbf16> to vector<64x16xbf16>
    %c0_3 = arith.constant 0 : index
    %c0_4 = arith.constant 0 : index
    %c0_5 = arith.constant 0 : index
    %4 = vector.load %arg3[%c0_3, %c0_4, %c0_5] : memref<9x16x16xbf16, #tpu.memory_space<vmem>>, vector<1x16x16xbf16>
    %5 = vector.shape_cast %4 : vector<1x16x16xbf16> to vector<16x16xbf16>
    %cst_6 = arith.constant dense<0.000000e+00> : vector<64x16xf32>
    %6 = tpu.matmul %3, %5, %cst_6 {dimension_numbers = #tpu.dot_dimension_numbers<[1], [0], [0], [1], [0, 0, 1, 1], [], []>} : vector<64x16xbf16>, vector<16x16xbf16>, vector<64x16xf32> -> vector<64x16xf32>
    %7 = arith.addf %0, %6 : vector<64x16xf32>
    %c1 = arith.constant 1 : index
    %c0_7 = arith.constant 0 : index
    %c0_8 = arith.constant 0 : index
    %c0_9 = arith.constant 0 : index
    %8 = vector.load %arg2[%c1, %c0_7, %c0_8, %c0_9] : memref<4x9x9x16xbf16, #tpu.memory_space<vmem>>, vector<1x8x8x16xbf16>
    %9 = vector.shape_cast %8 : vector<1x8x8x16xbf16> to vector<8x8x16xbf16>
    %10 = vector.shape_cast %9 : vector<8x8x16xbf16> to vector<64x16xbf16>
    %c1_10 = arith.constant 1 : index
    %c0_11 = arith.constant 0 : index
    %c0_12 = arith.constant 0 : index
    %11 = vector.load %arg3[%c1_10, %c0_11, %c0_12] : memref<9x16x16xbf16, #tpu.memory_space<vmem>>, vector<1x16x16xbf16>
    %12 = vector.shape_cast %11 : vector<1x16x16xbf16> to vector<16x16xbf16>
    %cst_13 = arith.constant dense<0.000000e+00> : vector<64x16xf32>
    %13 = tpu.matmul %10, %12, %cst_13 {dimension_numbers = #tpu.dot_dimension_numbers<[1], [0], [0], [1], [0, 0, 1, 1], [], []>} : vector<64x16xbf16>, vector<16x16xbf16>, vector<64x16xf32> -> vector<64x16xf32>
    %14 = arith.addf %7, %13 : vector<64x16xf32>
    %c0_14 = arith.constant 0 : index
    %c0_15 = arith.constant 0 : index
    %c1_16 = arith.constant 1 : index
    %c0_17 = arith.constant 0 : index
    %15 = vector.load %arg2[%c0_14, %c0_15, %c1_16, %c0_17] : memref<4x9x9x16xbf16, #tpu.memory_space<vmem>>, vector<1x8x8x16xbf16>
    %16 = vector.shape_cast %15 : vector<1x8x8x16xbf16> to vector<8x8x16xbf16>
    %17 = vector.shape_cast %16 : vector<8x8x16xbf16> to vector<64x16xbf16>
    %c2 = arith.constant 2 : index
    %c0_18 = arith.constant 0 : index
    %c0_19 = arith.constant 0 : index
    %18 = vector.load %arg3[%c2, %c0_18, %c0_19] : memref<9x16x16xbf16, #tpu.memory_space<vmem>>, vector<1x16x16xbf16>
    %19 = vector.shape_cast %18 : vector<1x16x16xbf16> to vector<16x16xbf16>
    %cst_20 = arith.constant dense<0.000000e+00> : vector<64x16xf32>
    %20 = tpu.matmul %17, %19, %cst_20 {dimension_numbers = #tpu.dot_dimension_numbers<[1], [0], [0], [1], [0, 0, 1, 1], [], []>} : vector<64x16xbf16>, vector<16x16xbf16>, vector<64x16xf32> -> vector<64x16xf32>
    %21 = arith.addf %14, %20 : vector<64x16xf32>
    %c2_21 = arith.constant 2 : index
    %c0_22 = arith.constant 0 : index
    %c0_23 = arith.constant 0 : index
    %c0_24 = arith.constant 0 : index
    %22 = vector.load %arg2[%c2_21, %c0_22, %c0_23, %c0_24] : memref<4x9x9x16xbf16, #tpu.memory_space<vmem>>, vector<1x8x8x16xbf16>
    %23 = vector.shape_cast %22 : vector<1x8x8x16xbf16> to vector<8x8x16xbf16>
    %24 = vector.shape_cast %23 : vector<8x8x16xbf16> to vector<64x16xbf16>
    %c3 = arith.constant 3 : index
    %c0_25 = arith.constant 0 : index
    %c0_26 = arith.constant 0 : index
    %25 = vector.load %arg3[%c3, %c0_25, %c0_26] : memref<9x16x16xbf16, #tpu.memory_space<vmem>>, vector<1x16x16xbf16>
    %26 = vector.shape_cast %25 : vector<1x16x16xbf16> to vector<16x16xbf16>
    %cst_27 = arith.constant dense<0.000000e+00> : vector<64x16xf32>
    %27 = tpu.matmul %24, %26, %cst_27 {dimension_numbers = #tpu.dot_dimension_numbers<[1], [0], [0], [1], [0, 0, 1, 1], [], []>} : vector<64x16xbf16>, vector<16x16xbf16>, vector<64x16xf32> -> vector<64x16xf32>
    %28 = arith.addf %21, %27 : vector<64x16xf32>
    %c3_28 = arith.constant 3 : index
    %c0_29 = arith.constant 0 : index
    %c0_30 = arith.constant 0 : index
    %c0_31 = arith.constant 0 : index
    %29 = vector.load %arg2[%c3_28, %c0_29, %c0_30, %c0_31] : memref<4x9x9x16xbf16, #tpu.memory_space<vmem>>, vector<1x8x8x16xbf16>
    %30 = vector.shape_cast %29 : vector<1x8x8x16xbf16> to vector<8x8x16xbf16>
    %31 = vector.shape_cast %30 : vector<8x8x16xbf16> to vector<64x16xbf16>
    %c4 = arith.constant 4 : index
    %c0_32 = arith.constant 0 : index
    %c0_33 = arith.constant 0 : index
    %32 = vector.load %arg3[%c4, %c0_32, %c0_33] : memref<9x16x16xbf16, #tpu.memory_space<vmem>>, vector<1x16x16xbf16>
    %33 = vector.shape_cast %32 : vector<1x16x16xbf16> to vector<16x16xbf16>
    %cst_34 = arith.constant dense<0.000000e+00> : vector<64x16xf32>
    %34 = tpu.matmul %31, %33, %cst_34 {dimension_numbers = #tpu.dot_dimension_numbers<[1], [0], [0], [1], [0, 0, 1, 1], [], []>} : vector<64x16xbf16>, vector<16x16xbf16>, vector<64x16xf32> -> vector<64x16xf32>
    %35 = arith.addf %28, %34 : vector<64x16xf32>
    %c2_35 = arith.constant 2 : index
    %c0_36 = arith.constant 0 : index
    %c1_37 = arith.constant 1 : index
    %c0_38 = arith.constant 0 : index
    %36 = vector.load %arg2[%c2_35, %c0_36, %c1_37, %c0_38] : memref<4x9x9x16xbf16, #tpu.memory_space<vmem>>, vector<1x8x8x16xbf16>
    %37 = vector.shape_cast %36 : vector<1x8x8x16xbf16> to vector<8x8x16xbf16>
    %38 = vector.shape_cast %37 : vector<8x8x16xbf16> to vector<64x16xbf16>
    %c5 = arith.constant 5 : index
    %c0_39 = arith.constant 0 : index
    %c0_40 = arith.constant 0 : index
    %39 = vector.load %arg3[%c5, %c0_39, %c0_40] : memref<9x16x16xbf16, #tpu.memory_space<vmem>>, vector<1x16x16xbf16>
    %40 = vector.shape_cast %39 : vector<1x16x16xbf16> to vector<16x16xbf16>
    %cst_41 = arith.constant dense<0.000000e+00> : vector<64x16xf32>
    %41 = tpu.matmul %38, %40, %cst_41 {dimension_numbers = #tpu.dot_dimension_numbers<[1], [0], [0], [1], [0, 0, 1, 1], [], []>} : vector<64x16xbf16>, vector<16x16xbf16>, vector<64x16xf32> -> vector<64x16xf32>
    %42 = arith.addf %35, %41 : vector<64x16xf32>
    %c0_42 = arith.constant 0 : index
    %c1_43 = arith.constant 1 : index
    %c0_44 = arith.constant 0 : index
    %c0_45 = arith.constant 0 : index
    %43 = vector.load %arg2[%c0_42, %c1_43, %c0_44, %c0_45] : memref<4x9x9x16xbf16, #tpu.memory_space<vmem>>, vector<1x8x8x16xbf16>
    %44 = vector.shape_cast %43 : vector<1x8x8x16xbf16> to vector<8x8x16xbf16>
    %45 = vector.shape_cast %44 : vector<8x8x16xbf16> to vector<64x16xbf16>
    %c6 = arith.constant 6 : index
    %c0_46 = arith.constant 0 : index
    %c0_47 = arith.constant 0 : index
    %46 = vector.load %arg3[%c6, %c0_46, %c0_47] : memref<9x16x16xbf16, #tpu.memory_space<vmem>>, vector<1x16x16xbf16>
    %47 = vector.shape_cast %46 : vector<1x16x16xbf16> to vector<16x16xbf16>
    %cst_48 = arith.constant dense<0.000000e+00> : vector<64x16xf32>
    %48 = tpu.matmul %45, %47, %cst_48 {dimension_numbers = #tpu.dot_dimension_numbers<[1], [0], [0], [1], [0, 0, 1, 1], [], []>} : vector<64x16xbf16>, vector<16x16xbf16>, vector<64x16xf32> -> vector<64x16xf32>
    %49 = arith.addf %42, %48 : vector<64x16xf32>
    %c1_49 = arith.constant 1 : index
    %c1_50 = arith.constant 1 : index
    %c0_51 = arith.constant 0 : index
    %c0_52 = arith.constant 0 : index
    %50 = vector.load %arg2[%c1_49, %c1_50, %c0_51, %c0_52] : memref<4x9x9x16xbf16, #tpu.memory_space<vmem>>, vector<1x8x8x16xbf16>
    %51 = vector.shape_cast %50 : vector<1x8x8x16xbf16> to vector<8x8x16xbf16>
    %52 = vector.shape_cast %51 : vector<8x8x16xbf16> to vector<64x16xbf16>
    %c7 = arith.constant 7 : index
    %c0_53 = arith.constant 0 : index
    %c0_54 = arith.constant 0 : index
    %53 = vector.load %arg3[%c7, %c0_53, %c0_54] : memref<9x16x16xbf16, #tpu.memory_space<vmem>>, vector<1x16x16xbf16>
    %54 = vector.shape_cast %53 : vector<1x16x16xbf16> to vector<16x16xbf16>
    %cst_55 = arith.constant dense<0.000000e+00> : vector<64x16xf32>
    %55 = tpu.matmul %52, %54, %cst_55 {dimension_numbers = #tpu.dot_dimension_numbers<[1], [0], [0], [1], [0, 0, 1, 1], [], []>} : vector<64x16xbf16>, vector<16x16xbf16>, vector<64x16xf32> -> vector<64x16xf32>
    %56 = arith.addf %49, %55 : vector<64x16xf32>
    %c0_56 = arith.constant 0 : index
    %c1_57 = arith.constant 1 : index
    %c1_58 = arith.constant 1 : index
    %c0_59 = arith.constant 0 : index
    %57 = vector.load %arg2[%c0_56, %c1_57, %c1_58, %c0_59] : memref<4x9x9x16xbf16, #tpu.memory_space<vmem>>, vector<1x8x8x16xbf16>
    %58 = vector.shape_cast %57 : vector<1x8x8x16xbf16> to vector<8x8x16xbf16>
    %59 = vector.shape_cast %58 : vector<8x8x16xbf16> to vector<64x16xbf16>
    %c8 = arith.constant 8 : index
    %c0_60 = arith.constant 0 : index
    %c0_61 = arith.constant 0 : index
    %60 = vector.load %arg3[%c8, %c0_60, %c0_61] : memref<9x16x16xbf16, #tpu.memory_space<vmem>>, vector<1x16x16xbf16>
    %61 = vector.shape_cast %60 : vector<1x16x16xbf16> to vector<16x16xbf16>
    %cst_62 = arith.constant dense<0.000000e+00> : vector<64x16xf32>
    %62 = tpu.matmul %59, %61, %cst_62 {dimension_numbers = #tpu.dot_dimension_numbers<[1], [0], [0], [1], [0, 0, 1, 1], [], []>} : vector<64x16xbf16>, vector<16x16xbf16>, vector<64x16xf32> -> vector<64x16xf32>
    %63 = arith.addf %56, %62 : vector<64x16xf32>
    %c0_63 = arith.constant 0 : index
    %c0_64 = arith.constant 0 : index
    %64 = vector.load %arg4[%c0_63, %c0_64] : memref<2x16xf32, #tpu.memory_space<vmem>>, vector<1x16xf32>
    %65 = vector.broadcast %64 : vector<1x16xf32> to vector<64x16xf32>
    %66 = arith.mulf %63, %65 : vector<64x16xf32>
    %c1_65 = arith.constant 1 : index
    %c0_66 = arith.constant 0 : index
    %67 = vector.load %arg4[%c1_65, %c0_66] : memref<2x16xf32, #tpu.memory_space<vmem>>, vector<1x16xf32>
    %68 = vector.broadcast %67 : vector<1x16xf32> to vector<64x16xf32>
    %69 = arith.addf %66, %68 : vector<64x16xf32>
    %cst_67 = arith.constant 0.000000e+00 : f32
    %70 = vector.broadcast %cst_67 : f32 to vector<64x16xf32>
    %71 = arith.maximumf %69, %70 : vector<64x16xf32>
    %72 = vector.shape_cast %71 : vector<64x16xf32> to vector<1x8x8x16xf32>
    %73 = arith.truncf %72 : vector<1x8x8x16xf32> to vector<1x8x8x16xbf16>
    %c0_68 = arith.constant 0 : index
    %c0_69 = arith.constant 0 : index
    %c0_70 = arith.constant 0 : index
    %c0_71 = arith.constant 0 : index
    %74 = vector.load %arg5[%c0_68, %c0_69, %c0_70, %c0_71] : memref<1x8x8x16xbf16, #tpu.memory_space<vmem>>, vector<1x8x8x16xbf16>
    tpu.vector_store %arg5[%c0_68, %c0_69, %c0_70, %c0_71], %73 {strides = array<i32>} : memref<1x8x8x16xbf16, #tpu.memory_space<vmem>>, vector<1x8x8x16xbf16>,
    return
  }
  func.func @transform_0(%arg0: i32, %arg1: i32) -> (i32, i32, i32, i32) {
    %c0_i32 = arith.constant 0 : i32
    %c0_i32_0 = arith.constant 0 : i32
    %c0_i32_1 = arith.constant 0 : i32
    %c0_i32_2 = arith.constant 0 : i32
    return %arg0, %c0_i32, %c0_i32_0, %c0_i32_1 : i32, i32, i32, i32
  }
  func.func @transform_1(%arg0: i32, %arg1: i32) -> (i32, i32, i32) {
    %c0_i32 = arith.constant 0 : i32
    %c0_i32_0 = arith.constant 0 : i32
    %c0_i32_1 = arith.constant 0 : i32
    return %c0_i32, %c0_i32_0, %arg1 : i32, i32, i32
  }
  func.func @transform_2(%arg0: i32, %arg1: i32) -> (i32, i32) {
    %c0_i32 = arith.constant 0 : i32
    %c0_i32_0 = arith.constant 0 : i32
    return %c0_i32, %arg1 : i32, i32
  }
  func.func @transform_3(%arg0: i32, %arg1: i32) -> (i32, i32, i32, i32) {
    %c0_i32 = arith.constant 0 : i32
    %c0_i32_0 = arith.constant 0 : i32
    %c0_i32_1 = arith.constant 0 : i32
    return %arg0, %c0_i32, %c0_i32_0, %arg1 : i32, i32, i32, i32
  }
}

module attributes {stable_mosaic.version = 11 : i64} {
  func.func @_gemm_collapsed_kernel(%arg0: i32, %arg1: i32, %arg2: memref<128x64xbf16, #tpu.memory_space<vmem>>, %arg3: memref<64x64xbf16, #tpu.memory_space<vmem>>, %arg4: memref<2x64xf32, #tpu.memory_space<vmem>>, %arg5: memref<128x64xbf16, #tpu.memory_space<vmem>>) attributes {dimension_semantics = [#tpu.dimension_semantics<parallel>, #tpu.dimension_semantics<parallel>], iteration_bounds = array<i64: 1, 1>, scalar_prefetch = 0 : i64, scratch_operands = 0 : i64, tpu.core_type = #tpu.core_type<tc>, window_params = [{transform_indices = @transform_0, window_bounds = array<i64: 128, 64>}, {transform_indices = @transform_1, window_bounds = array<i64: 64, 64>}, {transform_indices = @transform_2, window_bounds = array<i64: 2, 64>}, {transform_indices = @transform_3, window_bounds = array<i64: 128, 64>}]} {
    %c0 = arith.constant 0 : index
    %c0_0 = arith.constant 0 : index
    %0 = vector.load %arg2[%c0, %c0_0] : memref<128x64xbf16, #tpu.memory_space<vmem>>, vector<128x64xbf16>
    %c0_1 = arith.constant 0 : index
    %c0_2 = arith.constant 0 : index
    %1 = vector.load %arg3[%c0_1, %c0_2] : memref<64x64xbf16, #tpu.memory_space<vmem>>, vector<64x64xbf16>
    %cst = arith.constant dense<0.000000e+00> : vector<128x64xf32>
    %2 = tpu.matmul %0, %1, %cst {dimension_numbers = #tpu.dot_dimension_numbers<[1], [0], [0], [1], [0, 0, 1, 1], [], []>} : vector<128x64xbf16>, vector<64x64xbf16>, vector<128x64xf32> -> vector<128x64xf32>
    %c0_3 = arith.constant 0 : index
    %c0_4 = arith.constant 0 : index
    %3 = vector.load %arg4[%c0_3, %c0_4] : memref<2x64xf32, #tpu.memory_space<vmem>>, vector<1x64xf32>
    %4 = vector.broadcast %3 : vector<1x64xf32> to vector<128x64xf32>
    %5 = arith.mulf %2, %4 : vector<128x64xf32>
    %c1 = arith.constant 1 : index
    %c0_5 = arith.constant 0 : index
    %6 = vector.load %arg4[%c1, %c0_5] : memref<2x64xf32, #tpu.memory_space<vmem>>, vector<1x64xf32>
    %7 = vector.broadcast %6 : vector<1x64xf32> to vector<128x64xf32>
    %8 = arith.addf %5, %7 : vector<128x64xf32>
    %9 = arith.truncf %8 : vector<128x64xf32> to vector<128x64xbf16>
    %c0_6 = arith.constant 0 : index
    %c0_7 = arith.constant 0 : index
    %10 = vector.load %arg5[%c0_6, %c0_7] : memref<128x64xbf16, #tpu.memory_space<vmem>>, vector<128x64xbf16>
    tpu.vector_store %arg5[%c0_6, %c0_7], %9 {strides = array<i32>} : memref<128x64xbf16, #tpu.memory_space<vmem>>, vector<128x64xbf16>,
    return
  }
  func.func @transform_0(%arg0: i32, %arg1: i32) -> (i32, i32) {
    %c0_i32 = arith.constant 0 : i32
    %c0_i32_0 = arith.constant 0 : i32
    return %arg0, %c0_i32 : i32, i32
  }
  func.func @transform_1(%arg0: i32, %arg1: i32) -> (i32, i32) {
    %c0_i32 = arith.constant 0 : i32
    %c0_i32_0 = arith.constant 0 : i32
    return %c0_i32, %arg1 : i32, i32
  }
  func.func @transform_2(%arg0: i32, %arg1: i32) -> (i32, i32) {
    %c0_i32 = arith.constant 0 : i32
    %c0_i32_0 = arith.constant 0 : i32
    return %c0_i32, %arg1 : i32, i32
  }
  func.func @transform_3(%arg0: i32, %arg1: i32) -> (i32, i32) {
    %c0_i32 = arith.constant 0 : i32
    return %arg0, %arg1 : i32, i32
  }
}

module attributes {stable_mosaic.version = 11 : i64} {
  func.func @_gemm_collapsed_kernel(%arg0: i32, %arg1: i32, %arg2: memref<128x16xbf16, #tpu.memory_space<vmem>>, %arg3: memref<16x64xbf16, #tpu.memory_space<vmem>>, %arg4: memref<2x64xf32, #tpu.memory_space<vmem>>, %arg5: memref<128x64xbf16, #tpu.memory_space<vmem>>, %arg6: memref<128x64xbf16, #tpu.memory_space<vmem>>) attributes {dimension_semantics = [#tpu.dimension_semantics<parallel>, #tpu.dimension_semantics<parallel>], iteration_bounds = array<i64: 1, 1>, scalar_prefetch = 0 : i64, scratch_operands = 0 : i64, tpu.core_type = #tpu.core_type<tc>, window_params = [{transform_indices = @transform_0, window_bounds = array<i64: 128, 16>}, {transform_indices = @transform_1, window_bounds = array<i64: 16, 64>}, {transform_indices = @transform_2, window_bounds = array<i64: 2, 64>}, {transform_indices = @transform_3, window_bounds = array<i64: 128, 64>}, {transform_indices = @transform_4, window_bounds = array<i64: 128, 64>}]} {
    %c0 = arith.constant 0 : index
    %c0_0 = arith.constant 0 : index
    %0 = vector.load %arg2[%c0, %c0_0] : memref<128x16xbf16, #tpu.memory_space<vmem>>, vector<128x16xbf16>
    %c0_1 = arith.constant 0 : index
    %c0_2 = arith.constant 0 : index
    %1 = vector.load %arg3[%c0_1, %c0_2] : memref<16x64xbf16, #tpu.memory_space<vmem>>, vector<16x64xbf16>
    %cst = arith.constant dense<0.000000e+00> : vector<128x64xf32>
    %2 = tpu.matmul %0, %1, %cst {dimension_numbers = #tpu.dot_dimension_numbers<[1], [0], [0], [1], [0, 0, 1, 1], [], []>} : vector<128x16xbf16>, vector<16x64xbf16>, vector<128x64xf32> -> vector<128x64xf32>
    %c0_3 = arith.constant 0 : index
    %c0_4 = arith.constant 0 : index
    %3 = vector.load %arg4[%c0_3, %c0_4] : memref<2x64xf32, #tpu.memory_space<vmem>>, vector<1x64xf32>
    %4 = vector.broadcast %3 : vector<1x64xf32> to vector<128x64xf32>
    %5 = arith.mulf %2, %4 : vector<128x64xf32>
    %c1 = arith.constant 1 : index
    %c0_5 = arith.constant 0 : index
    %6 = vector.load %arg4[%c1, %c0_5] : memref<2x64xf32, #tpu.memory_space<vmem>>, vector<1x64xf32>
    %7 = vector.broadcast %6 : vector<1x64xf32> to vector<128x64xf32>
    %8 = arith.addf %5, %7 : vector<128x64xf32>
    %c0_6 = arith.constant 0 : index
    %c0_7 = arith.constant 0 : index
    %9 = vector.load %arg5[%c0_6, %c0_7] : memref<128x64xbf16, #tpu.memory_space<vmem>>, vector<128x64xbf16>
    %10 = arith.extf %9 : vector<128x64xbf16> to vector<128x64xf32>
    %11 = arith.addf %8, %10 : vector<128x64xf32>
    %cst_8 = arith.constant 0.000000e+00 : f32
    %12 = vector.broadcast %cst_8 : f32 to vector<128x64xf32>
    %13 = arith.maximumf %11, %12 : vector<128x64xf32>
    %14 = arith.truncf %13 : vector<128x64xf32> to vector<128x64xbf16>
    %c0_9 = arith.constant 0 : index
    %c0_10 = arith.constant 0 : index
    %15 = vector.load %arg6[%c0_9, %c0_10] : memref<128x64xbf16, #tpu.memory_space<vmem>>, vector<128x64xbf16>
    tpu.vector_store %arg6[%c0_9, %c0_10], %14 {strides = array<i32>} : memref<128x64xbf16, #tpu.memory_space<vmem>>, vector<128x64xbf16>,
    return
  }
  func.func @transform_0(%arg0: i32, %arg1: i32) -> (i32, i32) {
    %c0_i32 = arith.constant 0 : i32
    %c0_i32_0 = arith.constant 0 : i32
    return %arg0, %c0_i32 : i32, i32
  }
  func.func @transform_1(%arg0: i32, %arg1: i32) -> (i32, i32) {
    %c0_i32 = arith.constant 0 : i32
    %c0_i32_0 = arith.constant 0 : i32
    return %c0_i32, %arg1 : i32, i32
  }
  func.func @transform_2(%arg0: i32, %arg1: i32) -> (i32, i32) {
    %c0_i32 = arith.constant 0 : i32
    %c0_i32_0 = arith.constant 0 : i32
    return %c0_i32, %arg1 : i32, i32
  }
  func.func @transform_3(%arg0: i32, %arg1: i32) -> (i32, i32) {
    %c0_i32 = arith.constant 0 : i32
    return %arg0, %arg1 : i32, i32
  }
  func.func @transform_4(%arg0: i32, %arg1: i32) -> (i32, i32) {
    %c0_i32 = arith.constant 0 : i32
    return %arg0, %arg1 : i32, i32
  }
}

module attributes {stable_mosaic.version = 11 : i64} {
  func.func @_gemm_collapsed_kernel(%arg0: i32, %arg1: i32, %arg2: memref<128x64xbf16, #tpu.memory_space<vmem>>, %arg3: memref<64x16xbf16, #tpu.memory_space<vmem>>, %arg4: memref<2x16xf32, #tpu.memory_space<vmem>>, %arg5: memref<128x16xbf16, #tpu.memory_space<vmem>>) attributes {dimension_semantics = [#tpu.dimension_semantics<parallel>, #tpu.dimension_semantics<parallel>], iteration_bounds = array<i64: 1, 1>, scalar_prefetch = 0 : i64, scratch_operands = 0 : i64, tpu.core_type = #tpu.core_type<tc>, window_params = [{transform_indices = @transform_0, window_bounds = array<i64: 128, 64>}, {transform_indices = @transform_1, window_bounds = array<i64: 64, 16>}, {transform_indices = @transform_2, window_bounds = array<i64: 2, 16>}, {transform_indices = @transform_3, window_bounds = array<i64: 128, 16>}]} {
    %c0 = arith.constant 0 : index
    %c0_0 = arith.constant 0 : index
    %0 = vector.load %arg2[%c0, %c0_0] : memref<128x64xbf16, #tpu.memory_space<vmem>>, vector<128x64xbf16>
    %c0_1 = arith.constant 0 : index
    %c0_2 = arith.constant 0 : index
    %1 = vector.load %arg3[%c0_1, %c0_2] : memref<64x16xbf16, #tpu.memory_space<vmem>>, vector<64x16xbf16>
    %cst = arith.constant dense<0.000000e+00> : vector<128x16xf32>
    %2 = tpu.matmul %0, %1, %cst {dimension_numbers = #tpu.dot_dimension_numbers<[1], [0], [0], [1], [0, 0, 1, 1], [], []>} : vector<128x64xbf16>, vector<64x16xbf16>, vector<128x16xf32> -> vector<128x16xf32>
    %c0_3 = arith.constant 0 : index
    %c0_4 = arith.constant 0 : index
    %3 = vector.load %arg4[%c0_3, %c0_4] : memref<2x16xf32, #tpu.memory_space<vmem>>, vector<1x16xf32>
    %4 = vector.broadcast %3 : vector<1x16xf32> to vector<128x16xf32>
    %5 = arith.mulf %2, %4 : vector<128x16xf32>
    %c1 = arith.constant 1 : index
    %c0_5 = arith.constant 0 : index
    %6 = vector.load %arg4[%c1, %c0_5] : memref<2x16xf32, #tpu.memory_space<vmem>>, vector<1x16xf32>
    %7 = vector.broadcast %6 : vector<1x16xf32> to vector<128x16xf32>
    %8 = arith.addf %5, %7 : vector<128x16xf32>
    %cst_6 = arith.constant 0.000000e+00 : f32
    %9 = vector.broadcast %cst_6 : f32 to vector<128x16xf32>
    %10 = arith.maximumf %8, %9 : vector<128x16xf32>
    %11 = arith.truncf %10 : vector<128x16xf32> to vector<128x16xbf16>
    %c0_7 = arith.constant 0 : index
    %c0_8 = arith.constant 0 : index
    %12 = vector.load %arg5[%c0_7, %c0_8] : memref<128x16xbf16, #tpu.memory_space<vmem>>, vector<128x16xbf16>
    tpu.vector_store %arg5[%c0_7, %c0_8], %11 {strides = array<i32>} : memref<128x16xbf16, #tpu.memory_space<vmem>>, vector<128x16xbf16>,
    return
  }
  func.func @transform_0(%arg0: i32, %arg1: i32) -> (i32, i32) {
    %c0_i32 = arith.constant 0 : i32
    %c0_i32_0 = arith.constant 0 : i32
    return %arg0, %c0_i32 : i32, i32
  }
  func.func @transform_1(%arg0: i32, %arg1: i32) -> (i32, i32) {
    %c0_i32 = arith.constant 0 : i32
    %c0_i32_0 = arith.constant 0 : i32
    return %c0_i32, %arg1 : i32, i32
  }
  func.func @transform_2(%arg0: i32, %arg1: i32) -> (i32, i32) {
    %c0_i32 = arith.constant 0 : i32
    %c0_i32_0 = arith.constant 0 : i32
    return %c0_i32, %arg1 : i32, i32
  }
  func.func @transform_3(%arg0: i32, %arg1: i32) -> (i32, i32) {
    %c0_i32 = arith.constant 0 : i32
    return %arg0, %arg1 : i32, i32
  }
}

module attributes {stable_mosaic.version = 11 : i64} {
  func.func @_spatial_conv_kernel(%arg0: i32, %arg1: i32, %arg2: memref<1x10x10x16xbf16, #tpu.memory_space<vmem>>, %arg3: memref<9x16x16xbf16, #tpu.memory_space<vmem>>, %arg4: memref<2x16xf32, #tpu.memory_space<vmem>>, %arg5: memref<1x8x8x16xbf16, #tpu.memory_space<vmem>>) attributes {dimension_semantics = [#tpu.dimension_semantics<parallel>, #tpu.dimension_semantics<parallel>], iteration_bounds = array<i64: 2, 1>, scalar_prefetch = 0 : i64, scratch_operands = 0 : i64, tpu.core_type = #tpu.core_type<tc>, window_params = [{transform_indices = @transform_0, window_bounds = array<i64: 1, 10, 10, 16>}, {transform_indices = @transform_1, window_bounds = array<i64: 9, 16, 16>}, {transform_indices = @transform_2, window_bounds = array<i64: 2, 16>}, {transform_indices = @transform_3, window_bounds = array<i64: 1, 8, 8, 16>}]} {
    %cst = arith.constant 0.000000e+00 : f32
    %0 = vector.broadcast %cst : f32 to vector<64x16xf32>
    %c0 = arith.constant 0 : index
    %c0_0 = arith.constant 0 : index
    %c0_1 = arith.constant 0 : index
    %c0_2 = arith.constant 0 : index
    %1 = vector.load %arg2[%c0, %c0_0, %c0_1, %c0_2] : memref<1x10x10x16xbf16, #tpu.memory_space<vmem>>, vector<1x8x8x16xbf16>
    %2 = vector.shape_cast %1 : vector<1x8x8x16xbf16> to vector<8x8x16xbf16>
    %3 = vector.shape_cast %2 : vector<8x8x16xbf16> to vector<64x16xbf16>
    %c0_3 = arith.constant 0 : index
    %c0_4 = arith.constant 0 : index
    %c0_5 = arith.constant 0 : index
    %4 = vector.load %arg3[%c0_3, %c0_4, %c0_5] : memref<9x16x16xbf16, #tpu.memory_space<vmem>>, vector<1x16x16xbf16>
    %5 = vector.shape_cast %4 : vector<1x16x16xbf16> to vector<16x16xbf16>
    %cst_6 = arith.constant dense<0.000000e+00> : vector<64x16xf32>
    %6 = tpu.matmul %3, %5, %cst_6 {dimension_numbers = #tpu.dot_dimension_numbers<[1], [0], [0], [1], [0, 0, 1, 1], [], []>} : vector<64x16xbf16>, vector<16x16xbf16>, vector<64x16xf32> -> vector<64x16xf32>
    %7 = arith.addf %0, %6 : vector<64x16xf32>
    %c0_7 = arith.constant 0 : index
    %c0_8 = arith.constant 0 : index
    %c1 = arith.constant 1 : index
    %c0_9 = arith.constant 0 : index
    %8 = vector.load %arg2[%c0_7, %c0_8, %c1, %c0_9] : memref<1x10x10x16xbf16, #tpu.memory_space<vmem>>, vector<1x8x8x16xbf16>
    %9 = vector.shape_cast %8 : vector<1x8x8x16xbf16> to vector<8x8x16xbf16>
    %10 = vector.shape_cast %9 : vector<8x8x16xbf16> to vector<64x16xbf16>
    %c1_10 = arith.constant 1 : index
    %c0_11 = arith.constant 0 : index
    %c0_12 = arith.constant 0 : index
    %11 = vector.load %arg3[%c1_10, %c0_11, %c0_12] : memref<9x16x16xbf16, #tpu.memory_space<vmem>>, vector<1x16x16xbf16>
    %12 = vector.shape_cast %11 : vector<1x16x16xbf16> to vector<16x16xbf16>
    %cst_13 = arith.constant dense<0.000000e+00> : vector<64x16xf32>
    %13 = tpu.matmul %10, %12, %cst_13 {dimension_numbers = #tpu.dot_dimension_numbers<[1], [0], [0], [1], [0, 0, 1, 1], [], []>} : vector<64x16xbf16>, vector<16x16xbf16>, vector<64x16xf32> -> vector<64x16xf32>
    %14 = arith.addf %7, %13 : vector<64x16xf32>
    %c0_14 = arith.constant 0 : index
    %c0_15 = arith.constant 0 : index
    %c2 = arith.constant 2 : index
    %c0_16 = arith.constant 0 : index
    %15 = vector.load %arg2[%c0_14, %c0_15, %c2, %c0_16] : memref<1x10x10x16xbf16, #tpu.memory_space<vmem>>, vector<1x8x8x16xbf16>
    %16 = vector.shape_cast %15 : vector<1x8x8x16xbf16> to vector<8x8x16xbf16>
    %17 = vector.shape_cast %16 : vector<8x8x16xbf16> to vector<64x16xbf16>
    %c2_17 = arith.constant 2 : index
    %c0_18 = arith.constant 0 : index
    %c0_19 = arith.constant 0 : index
    %18 = vector.load %arg3[%c2_17, %c0_18, %c0_19] : memref<9x16x16xbf16, #tpu.memory_space<vmem>>, vector<1x16x16xbf16>
    %19 = vector.shape_cast %18 : vector<1x16x16xbf16> to vector<16x16xbf16>
    %cst_20 = arith.constant dense<0.000000e+00> : vector<64x16xf32>
    %20 = tpu.matmul %17, %19, %cst_20 {dimension_numbers = #tpu.dot_dimension_numbers<[1], [0], [0], [1], [0, 0, 1, 1], [], []>} : vector<64x16xbf16>, vector<16x16xbf16>, vector<64x16xf32> -> vector<64x16xf32>
    %21 = arith.addf %14, %20 : vector<64x16xf32>
    %c0_21 = arith.constant 0 : index
    %c1_22 = arith.constant 1 : index
    %c0_23 = arith.constant 0 : index
    %c0_24 = arith.constant 0 : index
    %22 = vector.load %arg2[%c0_21, %c1_22, %c0_23, %c0_24] : memref<1x10x10x16xbf16, #tpu.memory_space<vmem>>, vector<1x8x8x16xbf16>
    %23 = vector.shape_cast %22 : vector<1x8x8x16xbf16> to vector<8x8x16xbf16>
    %24 = vector.shape_cast %23 : vector<8x8x16xbf16> to vector<64x16xbf16>
    %c3 = arith.constant 3 : index
    %c0_25 = arith.constant 0 : index
    %c0_26 = arith.constant 0 : index
    %25 = vector.load %arg3[%c3, %c0_25, %c0_26] : memref<9x16x16xbf16, #tpu.memory_space<vmem>>, vector<1x16x16xbf16>
    %26 = vector.shape_cast %25 : vector<1x16x16xbf16> to vector<16x16xbf16>
    %cst_27 = arith.constant dense<0.000000e+00> : vector<64x16xf32>
    %27 = tpu.matmul %24, %26, %cst_27 {dimension_numbers = #tpu.dot_dimension_numbers<[1], [0], [0], [1], [0, 0, 1, 1], [], []>} : vector<64x16xbf16>, vector<16x16xbf16>, vector<64x16xf32> -> vector<64x16xf32>
    %28 = arith.addf %21, %27 : vector<64x16xf32>
    %c0_28 = arith.constant 0 : index
    %c1_29 = arith.constant 1 : index
    %c1_30 = arith.constant 1 : index
    %c0_31 = arith.constant 0 : index
    %29 = vector.load %arg2[%c0_28, %c1_29, %c1_30, %c0_31] : memref<1x10x10x16xbf16, #tpu.memory_space<vmem>>, vector<1x8x8x16xbf16>
    %30 = vector.shape_cast %29 : vector<1x8x8x16xbf16> to vector<8x8x16xbf16>
    %31 = vector.shape_cast %30 : vector<8x8x16xbf16> to vector<64x16xbf16>
    %c4 = arith.constant 4 : index
    %c0_32 = arith.constant 0 : index
    %c0_33 = arith.constant 0 : index
    %32 = vector.load %arg3[%c4, %c0_32, %c0_33] : memref<9x16x16xbf16, #tpu.memory_space<vmem>>, vector<1x16x16xbf16>
    %33 = vector.shape_cast %32 : vector<1x16x16xbf16> to vector<16x16xbf16>
    %cst_34 = arith.constant dense<0.000000e+00> : vector<64x16xf32>
    %34 = tpu.matmul %31, %33, %cst_34 {dimension_numbers = #tpu.dot_dimension_numbers<[1], [0], [0], [1], [0, 0, 1, 1], [], []>} : vector<64x16xbf16>, vector<16x16xbf16>, vector<64x16xf32> -> vector<64x16xf32>
    %35 = arith.addf %28, %34 : vector<64x16xf32>
    %c0_35 = arith.constant 0 : index
    %c1_36 = arith.constant 1 : index
    %c2_37 = arith.constant 2 : index
    %c0_38 = arith.constant 0 : index
    %36 = vector.load %arg2[%c0_35, %c1_36, %c2_37, %c0_38] : memref<1x10x10x16xbf16, #tpu.memory_space<vmem>>, vector<1x8x8x16xbf16>
    %37 = vector.shape_cast %36 : vector<1x8x8x16xbf16> to vector<8x8x16xbf16>
    %38 = vector.shape_cast %37 : vector<8x8x16xbf16> to vector<64x16xbf16>
    %c5 = arith.constant 5 : index
    %c0_39 = arith.constant 0 : index
    %c0_40 = arith.constant 0 : index
    %39 = vector.load %arg3[%c5, %c0_39, %c0_40] : memref<9x16x16xbf16, #tpu.memory_space<vmem>>, vector<1x16x16xbf16>
    %40 = vector.shape_cast %39 : vector<1x16x16xbf16> to vector<16x16xbf16>
    %cst_41 = arith.constant dense<0.000000e+00> : vector<64x16xf32>
    %41 = tpu.matmul %38, %40, %cst_41 {dimension_numbers = #tpu.dot_dimension_numbers<[1], [0], [0], [1], [0, 0, 1, 1], [], []>} : vector<64x16xbf16>, vector<16x16xbf16>, vector<64x16xf32> -> vector<64x16xf32>
    %42 = arith.addf %35, %41 : vector<64x16xf32>
    %c0_42 = arith.constant 0 : index
    %c2_43 = arith.constant 2 : index
    %c0_44 = arith.constant 0 : index
    %c0_45 = arith.constant 0 : index
    %43 = vector.load %arg2[%c0_42, %c2_43, %c0_44, %c0_45] : memref<1x10x10x16xbf16, #tpu.memory_space<vmem>>, vector<1x8x8x16xbf16>
    %44 = vector.shape_cast %43 : vector<1x8x8x16xbf16> to vector<8x8x16xbf16>
    %45 = vector.shape_cast %44 : vector<8x8x16xbf16> to vector<64x16xbf16>
    %c6 = arith.constant 6 : index
    %c0_46 = arith.constant 0 : index
    %c0_47 = arith.constant 0 : index
    %46 = vector.load %arg3[%c6, %c0_46, %c0_47] : memref<9x16x16xbf16, #tpu.memory_space<vmem>>, vector<1x16x16xbf16>
    %47 = vector.shape_cast %46 : vector<1x16x16xbf16> to vector<16x16xbf16>
    %cst_48 = arith.constant dense<0.000000e+00> : vector<64x16xf32>
    %48 = tpu.matmul %45, %47, %cst_48 {dimension_numbers = #tpu.dot_dimension_numbers<[1], [0], [0], [1], [0, 0, 1, 1], [], []>} : vector<64x16xbf16>, vector<16x16xbf16>, vector<64x16xf32> -> vector<64x16xf32>
    %49 = arith.addf %42, %48 : vector<64x16xf32>
    %c0_49 = arith.constant 0 : index
    %c2_50 = arith.constant 2 : index
    %c1_51 = arith.constant 1 : index
    %c0_52 = arith.constant 0 : index
    %50 = vector.load %arg2[%c0_49, %c2_50, %c1_51, %c0_52] : memref<1x10x10x16xbf16, #tpu.memory_space<vmem>>, vector<1x8x8x16xbf16>
    %51 = vector.shape_cast %50 : vector<1x8x8x16xbf16> to vector<8x8x16xbf16>
    %52 = vector.shape_cast %51 : vector<8x8x16xbf16> to vector<64x16xbf16>
    %c7 = arith.constant 7 : index
    %c0_53 = arith.constant 0 : index
    %c0_54 = arith.constant 0 : index
    %53 = vector.load %arg3[%c7, %c0_53, %c0_54] : memref<9x16x16xbf16, #tpu.memory_space<vmem>>, vector<1x16x16xbf16>
    %54 = vector.shape_cast %53 : vector<1x16x16xbf16> to vector<16x16xbf16>
    %cst_55 = arith.constant dense<0.000000e+00> : vector<64x16xf32>
    %55 = tpu.matmul %52, %54, %cst_55 {dimension_numbers = #tpu.dot_dimension_numbers<[1], [0], [0], [1], [0, 0, 1, 1], [], []>} : vector<64x16xbf16>, vector<16x16xbf16>, vector<64x16xf32> -> vector<64x16xf32>
    %56 = arith.addf %49, %55 : vector<64x16xf32>
    %c0_56 = arith.constant 0 : index
    %c2_57 = arith.constant 2 : index
    %c2_58 = arith.constant 2 : index
    %c0_59 = arith.constant 0 : index
    %57 = vector.load %arg2[%c0_56, %c2_57, %c2_58, %c0_59] : memref<1x10x10x16xbf16, #tpu.memory_space<vmem>>, vector<1x8x8x16xbf16>
    %58 = vector.shape_cast %57 : vector<1x8x8x16xbf16> to vector<8x8x16xbf16>
    %59 = vector.shape_cast %58 : vector<8x8x16xbf16> to vector<64x16xbf16>
    %c8 = arith.constant 8 : index
    %c0_60 = arith.constant 0 : index
    %c0_61 = arith.constant 0 : index
    %60 = vector.load %arg3[%c8, %c0_60, %c0_61] : memref<9x16x16xbf16, #tpu.memory_space<vmem>>, vector<1x16x16xbf16>
    %61 = vector.shape_cast %60 : vector<1x16x16xbf16> to vector<16x16xbf16>
    %cst_62 = arith.constant dense<0.000000e+00> : vector<64x16xf32>
    %62 = tpu.matmul %59, %61, %cst_62 {dimension_numbers = #tpu.dot_dimension_numbers<[1], [0], [0], [1], [0, 0, 1, 1], [], []>} : vector<64x16xbf16>, vector<16x16xbf16>, vector<64x16xf32> -> vector<64x16xf32>
    %63 = arith.addf %56, %62 : vector<64x16xf32>
    %c0_63 = arith.constant 0 : index
    %c0_64 = arith.constant 0 : index
    %64 = vector.load %arg4[%c0_63, %c0_64] : memref<2x16xf32, #tpu.memory_space<vmem>>, vector<1x16xf32>
    %65 = vector.broadcast %64 : vector<1x16xf32> to vector<64x16xf32>
    %66 = arith.mulf %63, %65 : vector<64x16xf32>
    %c1_65 = arith.constant 1 : index
    %c0_66 = arith.constant 0 : index
    %67 = vector.load %arg4[%c1_65, %c0_66] : memref<2x16xf32, #tpu.memory_space<vmem>>, vector<1x16xf32>
    %68 = vector.broadcast %67 : vector<1x16xf32> to vector<64x16xf32>
    %69 = arith.addf %66, %68 : vector<64x16xf32>
    %cst_67 = arith.constant 0.000000e+00 : f32
    %70 = vector.broadcast %cst_67 : f32 to vector<64x16xf32>
    %71 = arith.maximumf %69, %70 : vector<64x16xf32>
    %72 = vector.shape_cast %71 : vector<64x16xf32> to vector<1x8x8x16xf32>
    %73 = arith.truncf %72 : vector<1x8x8x16xf32> to vector<1x8x8x16xbf16>
    %c0_68 = arith.constant 0 : index
    %c0_69 = arith.constant 0 : index
    %c0_70 = arith.constant 0 : index
    %c0_71 = arith.constant 0 : index
    %74 = vector.load %arg5[%c0_68, %c0_69, %c0_70, %c0_71] : memref<1x8x8x16xbf16, #tpu.memory_space<vmem>>, vector<1x8x8x16xbf16>
    tpu.vector_store %arg5[%c0_68, %c0_69, %c0_70, %c0_71], %73 {strides = array<i32>} : memref<1x8x8x16xbf16, #tpu.memory_space<vmem>>, vector<1x8x8x16xbf16>,
    return
  }
  func.func @transform_0(%arg0: i32, %arg1: i32) -> (i32, i32, i32, i32) {
    %c0_i32 = arith.constant 0 : i32
    %c0_i32_0 = arith.constant 0 : i32
    %c0_i32_1 = arith.constant 0 : i32
    %c0_i32_2 = arith.constant 0 : i32
    return %arg0, %c0_i32, %c0_i32_0, %c0_i32_1 : i32, i32, i32, i32
  }
  func.func @transform_1(%arg0: i32, %arg1: i32) -> (i32, i32, i32) {
    %c0_i32 = arith.constant 0 : i32
    %c0_i32_0 = arith.constant 0 : i32
    %c0_i32_1 = arith.constant 0 : i32
    return %c0_i32, %c0_i32_0, %arg1 : i32, i32, i32
  }
  func.func @transform_2(%arg0: i32, %arg1: i32) -> (i32, i32) {
    %c0_i32 = arith.constant 0 : i32
    %c0_i32_0 = arith.constant 0 : i32
    return %c0_i32, %arg1 : i32, i32
  }
  func.func @transform_3(%arg0: i32, %arg1: i32) -> (i32, i32, i32, i32) {
    %c0_i32 = arith.constant 0 : i32
    %c0_i32_0 = arith.constant 0 : i32
    %c0_i32_1 = arith.constant 0 : i32
    return %arg0, %c0_i32, %c0_i32_0, %arg1 : i32, i32, i32, i32
  }
}

</mosaic_0001>

<llo_original>
// kernel: run_pallas.7
$region0: #{run_pallas.7}
  #allocation0 [shape = 'u32[]', space=smem, size = 0x4, offset = 0x4, fixed_abs, tag = 'smem constant byte address 0x4 - core index']
  #allocation1 [shape = 'u32[144,128]{1,0:T(1,128)}', space=vmem, size = 0x12000, scoped, tag = 'internal scratch']
  %s0 = inlined_call_operand.vmem [shape: bf16[512,64], index: 0, kind: input, shape index: {}]
  %s1 = inlined_call_operand.vmem [shape: bf16[64,16], index: 1, kind: input, shape index: {}]
  %s2 = inlined_call_operand.vmem [shape: f32[2,16], index: 2, kind: input, shape index: {}]
  %s3 = inlined_call_operand.vmem [shape: bf16[512,16], index: 3, kind: output, shape index: {}]
  %s4 = sld [smem:[#allocation0]]
  $region22: #{run_pallas.7} parent=0
    _
  %s6 = ssub.s32 1, %s4
  %s7 = scalar_select 0, %s6, %s4
  // Predicated region
  $region2: #{run_pallas.7} parent=0 // pred_check
    _
  $region3: #{run_pallas.7} parent=0 // pred_check_branch
    %9 = sbr.rel (0) target = $region5
  $region4: #{run_pallas.7} parent=0 // pred_region
    _
  $region5: #{run_pallas.7} parent=0 // pred_fallthru
    _
  // Predicated region
  $region6: #{run_pallas.7} parent=0 // pred_check
    _
  $region7: #{run_pallas.7} parent=0 // pred_check_branch
    %11 = sbr.rel (0) target = $region9
  $region8: #{run_pallas.7} parent=0 // pred_region
    _
  $region9: #{run_pallas.7} parent=0 // pred_fallthru
    _
  // Predicated region
  $region10: #{run_pallas.7} parent=0 // pred_check
    _
  $region11: #{run_pallas.7} parent=0 // pred_check_branch
    %13 = sbr.rel (0) target = $region13
  $region12: #{run_pallas.7} parent=0 // pred_region
    _
  $region13: #{run_pallas.7} parent=0 // pred_fallthru
    _
  %v15 = vld [vmem:[%s0] sm:$0xf]
  %v16 = vld [vmem:[%s0 + $0x4] sm:$0xf]
  %v17 = vld [vmem:[%s0 + $0x8] sm:$0xf]
  %v18 = vld [vmem:[%s0 + $0xc] sm:$0xf]
  %v19 = vld [vmem:[%s0 + $0x10] sm:$0xf]
  %v20 = vld [vmem:[%s0 + $0x14] sm:$0xf]
  %v21 = vld [vmem:[%s0 + $0x18] sm:$0xf]
  %v22 = vld [vmem:[%s0 + $0x1c] sm:$0xf]
  %v23 = vld [vmem:[%s0 + $0x20] sm:$0xf]
  %v24 = vld [vmem:[%s0 + $0x24] sm:$0xf]
  %v25 = vld [vmem:[%s0 + $0x28] sm:$0xf]
  %v26 = vld [vmem:[%s0 + $0x2c] sm:$0xf]
  %v27 = vld [vmem:[%s0 + $0x30] sm:$0xf]
  %v28 = vld [vmem:[%s0 + $0x34] sm:$0xf]
  %v29 = vld [vmem:[%s0 + $0x38] sm:$0xf]
  %v30 = vld [vmem:[%s0 + $0x3c] sm:$0xf]
  %v31 = vld [vmem:[%s0 + $0x40] sm:$0xf]
  %v32 = vld [vmem:[%s0 + $0x44] sm:$0xf]
  %v33 = vld [vmem:[%s0 + $0x48] sm:$0xf]
  %v34 = vld [vmem:[%s0 + $0x4c] sm:$0xf]
  %v35 = vld [vmem:[%s0 + $0x50] sm:$0xf]
  %v36 = vld [vmem:[%s0 + $0x54] sm:$0xf]
  %v37 = vld [vmem:[%s0 + $0x58] sm:$0xf]
  %v38 = vld [vmem:[%s0 + $0x5c] sm:$0xf]
  %v39 = vld [vmem:[%s0 + $0x60] sm:$0xf]
  %v40 = vld [vmem:[%s0 + $0x64] sm:$0xf]
  %v41 = vld [vmem:[%s0 + $0x68] sm:$0xf]
  %v42 = vld [vmem:[%s0 + $0x6c] sm:$0xf]
  %v43 = vld [vmem:[%s0 + $0x70] sm:$0xf]
  %v44 = vld [vmem:[%s0 + $0x74] sm:$0xf]
  %v45 = vld [vmem:[%s0 + $0x78] sm:$0xf]
  %v46 = vld [vmem:[%s0 + $0x7c] sm:$0xf]
  %v47 = vld [vmem:[%s0 + $0x80] sm:$0xf]
  %v48 = vld [vmem:[%s0 + $0x84] sm:$0xf]
  %v49 = vld [vmem:[%s0 + $0x88] sm:$0xf]
  %v50 = vld [vmem:[%s0 + $0x8c] sm:$0xf]
  %v51 = vld [vmem:[%s0 + $0x90] sm:$0xf]
  %v52 = vld [vmem:[%s0 + $0x94] sm:$0xf]
  %v53 = vld [vmem:[%s0 + $0x98] sm:$0xf]
  %v54 = vld [vmem:[%s0 + $0x9c] sm:$0xf]
  %v55 = vld [vmem:[%s0 + $0xa0] sm:$0xf]
  %v56 = vld [vmem:[%s0 + $0xa4] sm:$0xf]
  %v57 = vld [vmem:[%s0 + $0xa8] sm:$0xf]
  %v58 = vld [vmem:[%s0 + $0xac] sm:$0xf]
  %v59 = vld [vmem:[%s0 + $0xb0] sm:$0xf]
  %v60 = vld [vmem:[%s0 + $0xb4] sm:$0xf]
  %v61 = vld [vmem:[%s0 + $0xb8] sm:$0xf]
  %v62 = vld [vmem:[%s0 + $0xbc] sm:$0xf]
  %v63 = vld [vmem:[%s0 + $0xc0] sm:$0xf]
  %v64 = vld [vmem:[%s0 + $0xc4] sm:$0xf]
  %v65 = vld [vmem:[%s0 + $0xc8] sm:$0xf]
  %v66 = vld [vmem:[%s0 + $0xcc] sm:$0xf]
  %v67 = vld [vmem:[%s0 + $0xd0] sm:$0xf]
  %v68 = vld [vmem:[%s0 + $0xd4] sm:$0xf]
  %v69 = vld [vmem:[%s0 + $0xd8] sm:$0xf]
  %v70 = vld [vmem:[%s0 + $0xdc] sm:$0xf]
  %v71 = vld [vmem:[%s0 + $0xe0] sm:$0xf]
  %v72 = vld [vmem:[%s0 + $0xe4] sm:$0xf]
  %v73 = vld [vmem:[%s0 + $0xe8] sm:$0xf]
  %v74 = vld [vmem:[%s0 + $0xec] sm:$0xf]
  %v75 = vld [vmem:[%s0 + $0xf0] sm:$0xf]
  %v76 = vld [vmem:[%s0 + $0xf4] sm:$0xf]
  %v77 = vld [vmem:[%s0 + $0xf8] sm:$0xf]
  %v78 = vld [vmem:[%s0 + $0xfc] sm:$0xf]
  %v79 = vld [vmem:[%s1] sm:$0xf]
  %v80 = vld [vmem:[%s1 + $0x4] sm:$0xf]
  %v81 = vld [vmem:[%s1 + $0x8] sm:$0xf]
  %v82 = vld [vmem:[%s1 + $0xc] sm:$0xf]
  %v83 = vld [vmem:[%s1 + $0x10] sm:$0xf]
  %v84 = vld [vmem:[%s1 + $0x14] sm:$0xf]
  %v85 = vld [vmem:[%s1 + $0x18] sm:$0xf]
  %v86 = vld [vmem:[%s1 + $0x1c] sm:$0xf]
  %v151 = vunpack.c.l.b16 %v15
  %v152 = vunpack.c.l.b16 %v16
  %v153 = vunpack.c.l.b16 %v17
  %v154 = vunpack.c.l.b16 %v18
  %v155 = vunpack.c.l.b16 %v19
  %v156 = vunpack.c.l.b16 %v20
  %v157 = vunpack.c.l.b16 %v21
  %v158 = vunpack.c.l.b16 %v22
  %v159 = vunpack.c.l.b16 %v23
  %v160 = vunpack.c.l.b16 %v24
  %v161 = vunpack.c.l.b16 %v25
  %v162 = vunpack.c.l.b16 %v26
  %v163 = vunpack.c.l.b16 %v27
  %v164 = vunpack.c.l.b16 %v28
  %v165 = vunpack.c.l.b16 %v29
  %v166 = vunpack.c.l.b16 %v30
  %v167 = vunpack.c.l.b16 %v31
  %v168 = vunpack.c.l.b16 %v32
  %v169 = vunpack.c.l.b16 %v33
  %v170 = vunpack.c.l.b16 %v34
  %v171 = vunpack.c.l.b16 %v35
  %v172 = vunpack.c.l.b16 %v36
  %v173 = vunpack.c.l.b16 %v37
  %v174 = vunpack.c.l.b16 %v38
  %v175 = vunpack.c.l.b16 %v39
  %v176 = vunpack.c.l.b16 %v40
  %v177 = vunpack.c.l.b16 %v41
  %v178 = vunpack.c.l.b16 %v42
  %v179 = vunpack.c.l.b16 %v43
  %v180 = vunpack.c.l.b16 %v44
  %v181 = vunpack.c.l.b16 %v45
  %v182 = vunpack.c.l.b16 %v46
  %v183 = vunpack.c.l.b16 %v47
  %v184 = vunpack.c.l.b16 %v48
  %v185 = vunpack.c.l.b16 %v49
  %v186 = vunpack.c.l.b16 %v50
  %v187 = vunpack.c.l.b16 %v51
  %v188 = vunpack.c.l.b16 %v52
  %v189 = vunpack.c.l.b16 %v53
  %v190 = vunpack.c.l.b16 %v54
  %v191 = vunpack.c.l.b16 %v55
  %v192 = vunpack.c.l.b16 %v56
  %v193 = vunpack.c.l.b16 %v57
  %v194 = vunpack.c.l.b16 %v58
  %v195 = vunpack.c.l.b16 %v59
  %v196 = vunpack.c.l.b16 %v60
  %v197 = vunpack.c.l.b16 %v61
  %v198 = vunpack.c.l.b16 %v62
  %v199 = vunpack.c.l.b16 %v63
  %v200 = vunpack.c.l.b16 %v64
  %v201 = vunpack.c.l.b16 %v65
  %v202 = vunpack.c.l.b16 %v66
  %v203 = vunpack.c.l.b16 %v67
  %v204 = vunpack.c.l.b16 %v68
  %v205 = vunpack.c.l.b16 %v69
  %v206 = vunpack.c.l.b16 %v70
  %v207 = vunpack.c.l.b16 %v71
  %v208 = vunpack.c.l.b16 %v72
  %v209 = vunpack.c.l.b16 %v73
  %v210 = vunpack.c.l.b16 %v74
  %v211 = vunpack.c.l.b16 %v75
  %v212 = vunpack.c.l.b16 %v76
  %v213 = vunpack.c.l.b16 %v77
  %v214 = vunpack.c.l.b16 %v78
  %v215 = vpack.c.b16 %v152, %v151
  %v216 = vpack.c.b16 %v154, %v153
  %v217 = vpack.c.b16 %v156, %v155
  %v218 = vpack.c.b16 %v158, %v157
  %v219 = vpack.c.b16 %v160, %v159
  %v220 = vpack.c.b16 %v162, %v161
  %v221 = vpack.c.b16 %v164, %v163
  %v222 = vpack.c.b16 %v166, %v165
  %v223 = vpack.c.b16 %v168, %v167
  %v224 = vpack.c.b16 %v170, %v169
  %v225 = vpack.c.b16 %v172, %v171
  %v226 = vpack.c.b16 %v174, %v173
  %v227 = vpack.c.b16 %v176, %v175
  %v228 = vpack.c.b16 %v178, %v177
  %v229 = vpack.c.b16 %v180, %v179
  %v230 = vpack.c.b16 %v182, %v181
  %v231 = vpack.c.b16 %v184, %v183
  %v232 = vpack.c.b16 %v186, %v185
  %v233 = vpack.c.b16 %v188, %v187
  %v234 = vpack.c.b16 %v190, %v189
  %v235 = vpack.c.b16 %v192, %v191
  %v236 = vpack.c.b16 %v194, %v193
  %v237 = vpack.c.b16 %v196, %v195
  %v238 = vpack.c.b16 %v198, %v197
  %v239 = vpack.c.b16 %v200, %v199
  %v240 = vpack.c.b16 %v202, %v201
  %v241 = vpack.c.b16 %v204, %v203
  %v242 = vpack.c.b16 %v206, %v205
  %v243 = vpack.c.b16 %v208, %v207
  %v244 = vpack.c.b16 %v210, %v209
  %v245 = vpack.c.b16 %v212, %v211
  %v246 = vpack.c.b16 %v214, %v213
  %v255 = vunpack.c.l.b16 %v79
  %v256 = vunpack.c.l.b16 %v80
  %v257 = vunpack.c.l.b16 %v81
  %v258 = vunpack.c.l.b16 %v82
  %v259 = vunpack.c.l.b16 %v83
  %v260 = vunpack.c.l.b16 %v84
  %v261 = vunpack.c.l.b16 %v85
  %v262 = vunpack.c.l.b16 %v86
  %v263 = vpack.c.b16 %v256, %v255
  %v264 = vpack.c.b16 %v258, %v257
  %v265 = vpack.c.b16 %v260, %v259
  %v266 = vpack.c.b16 %v262, %v261
  %vm271 = vcmask 523264
  %v273 = vsel %vm271, %v215, 0
  %v276 = vsel %vm271, %v216, 0
  %v279 = vsel %vm271, %v217, 0
  %v282 = vsel %vm271, %v218, 0
  %v285 = vsel %vm271, %v219, 0
  %v288 = vsel %vm271, %v220, 0
  %v291 = vsel %vm271, %v221, 0
  %v294 = vsel %vm271, %v222, 0
  %v297 = vsel %vm271, %v223, 0
  %v300 = vsel %vm271, %v224, 0
  %v303 = vsel %vm271, %v225, 0
  %v306 = vsel %vm271, %v226, 0
  %v309 = vsel %vm271, %v227, 0
  %v312 = vsel %vm271, %v228, 0
  %v315 = vsel %vm271, %v229, 0
  %v318 = vsel %vm271, %v230, 0
  %v321 = vsel %vm271, %v231, 0
  %v324 = vsel %vm271, %v232, 0
  %v327 = vsel %vm271, %v233, 0
  %v330 = vsel %vm271, %v234, 0
  %v333 = vsel %vm271, %v235, 0
  %v336 = vsel %vm271, %v236, 0
  %v339 = vsel %vm271, %v237, 0
  %v342 = vsel %vm271, %v238, 0
  %v345 = vsel %vm271, %v239, 0
  %v348 = vsel %vm271, %v240, 0
  %v351 = vsel %vm271, %v241, 0
  %v354 = vsel %vm271, %v242, 0
  %v357 = vsel %vm271, %v243, 0
  %v360 = vsel %vm271, %v244, 0
  %v363 = vsel %vm271, %v245, 0
  %v366 = vsel %vm271, %v246, 0
  %368 = vmatprep.subr.bf16.mxu0 0
  %369 = vmatpush1.bf16.msra.mxu0 %v263
  %370 = vmatprep.subr.bf16.mxu0 0
  %371 = vmatpush1.bf16.msra.mxu0 %v264
  %372 = vmatprep.subr.bf16.mxu0 0
  %373 = vmatpush1.bf16.msra.mxu0 %v265
  %374 = vmatprep.subr.bf16.mxu0 0
  %375 = vmatpush1.bf16.msra.mxu0 %v266
  %376 = vmatprep.subr.bf16.mxu0 0
  %377 = vmatpush1.bf16.msra.mxu0 0
  %378 = vmatprep.subr.bf16.mxu0 0
  %379 = vmatpush1.bf16.msra.mxu0 0
  %380 = vmatprep.subr.bf16.mxu0 0
  %381 = vmatpush1.bf16.msra.mxu0 0
  %382 = vmatprep.subr.bf16.mxu0 0
  %383 = vmatpush1.bf16.msra.mxu0 0
  %384 = vmatprep.subr.bf16.mxu0 0
  %385 = vmatpush1.bf16.msra.mxu0 0
  %386 = vmatprep.subr.bf16.mxu0 0
  %387 = vmatpush1.bf16.msra.mxu0 0
  %388 = vmatprep.subr.bf16.mxu0 0
  %389 = vmatpush1.bf16.msra.mxu0 0
  %390 = vmatprep.subr.bf16.mxu0 0
  %391 = vmatpush1.bf16.msra.mxu0 0
  %392 = vmatprep.subr.bf16.mxu0 0
  %393 = vmatpush1.bf16.msra.mxu0 0
  %394 = vmatprep.subr.bf16.mxu0 0
  %395 = vmatpush1.bf16.msra.mxu0 0
  %396 = vmatprep.subr.bf16.mxu0 0
  %397 = vmatpush1.bf16.msra.mxu0 0
  %398 = vmatprep.subr.bf16.mxu0 0
  %399 = vmatpush1.bf16.msra.mxu0 0
  %400 = vmatprep.mubr.bf16.mxu0 0
  %401 = vmatmul.mubr.bf16.gmra.mrb[0].mxu0 %v273
  %v402 = vpop.f32.mrb[0].mxu0
  %v403 = vadd.f32 0.0, %v402
  %v404 = vpop.f32.mrb[0].mxu0
  %v405 = vpop.f32.mrb[0].mxu0
  %v406 = vadd.f32 0.0, %v405
  %v407 = vpop.f32.mrb[0].mxu0
  %408 = vmatprep.mubr.bf16.mxu0 0
  %409 = vmatmul.mubr.bf16.gmra.mrb[0].mxu0 %v276
  %v410 = vpop.f32.mrb[0].mxu0
  %v411 = vadd.f32 0.0, %v410
  %v412 = vpop.f32.mrb[0].mxu0
  %v413 = vpop.f32.mrb[0].mxu0
  %v414 = vadd.f32 0.0, %v413
  %v415 = vpop.f32.mrb[0].mxu0
  %416 = vmatprep.mubr.bf16.mxu0 0
  %417 = vmatmul.mubr.bf16.gmra.mrb[0].mxu0 %v279
  %v418 = vpop.f32.mrb[0].mxu0
  %v419 = vadd.f32 0.0, %v418
  %v420 = vpop.f32.mrb[0].mxu0
  %v421 = vpop.f32.mrb[0].mxu0
  %v422 = vadd.f32 0.0, %v421
  %v423 = vpop.f32.mrb[0].mxu0
  %424 = vmatprep.mubr.bf16.mxu0 0
  %425 = vmatmul.mubr.bf16.gmra.mrb[0].mxu0 %v282
  %v426 = vpop.f32.mrb[0].mxu0
  %v427 = vadd.f32 0.0, %v426
  %v428 = vpop.f32.mrb[0].mxu0
  %v429 = vpop.f32.mrb[0].mxu0
  %v430 = vadd.f32 0.0, %v429
  %v431 = vpop.f32.mrb[0].mxu0
  %432 = vmatprep.mubr.bf16.mxu0 0
  %433 = vmatmul.mubr.bf16.gmra.mrb[0].mxu0 %v285
  %v434 = vpop.f32.mrb[0].mxu0
  %v435 = vadd.f32 0.0, %v434
  %v436 = vpop.f32.mrb[0].mxu0
  %v437 = vpop.f32.mrb[0].mxu0
  %v438 = vadd.f32 0.0, %v437
  %v439 = vpop.f32.mrb[0].mxu0
  %440 = vmatprep.mubr.bf16.mxu0 0
  %441 = vmatmul.mubr.bf16.gmra.mrb[0].mxu0 %v288
  %v442 = vpop.f32.mrb[0].mxu0
  %v443 = vadd.f32 0.0, %v442
  %v444 = vpop.f32.mrb[0].mxu0
  %v445 = vpop.f32.mrb[0].mxu0
  %v446 = vadd.f32 0.0, %v445
  %v447 = vpop.f32.mrb[0].mxu0
  %448 = vmatprep.mubr.bf16.mxu0 0
  %449 = vmatmul.mubr.bf16.gmra.mrb[0].mxu0 %v291
  %v450 = vpop.f32.mrb[0].mxu0
  %v451 = vadd.f32 0.0, %v450
  %v452 = vpop.f32.mrb[0].mxu0
  %v453 = vpop.f32.mrb[0].mxu0
  %v454 = vadd.f32 0.0, %v453
  %v455 = vpop.f32.mrb[0].mxu0
  %456 = vmatprep.mubr.bf16.mxu0 0
  %457 = vmatmul.mubr.bf16.gmra.mrb[0].mxu0 %v294
  %v458 = vpop.f32.mrb[0].mxu0
  %v459 = vadd.f32 0.0, %v458
  %v460 = vpop.f32.mrb[0].mxu0
  %v461 = vpop.f32.mrb[0].mxu0
  %v462 = vadd.f32 0.0, %v461
  %v463 = vpop.f32.mrb[0].mxu0
  %464 = vmatprep.mubr.bf16.mxu0 0
  %465 = vmatmul.mubr.bf16.gmra.mrb[0].mxu0 %v297
  %v466 = vpop.f32.mrb[0].mxu0
  %v467 = vadd.f32 0.0, %v466
  %v468 = vpop.f32.mrb[0].mxu0
  %v469 = vpop.f32.mrb[0].mxu0
  %v470 = vadd.f32 0.0, %v469
  %v471 = vpop.f32.mrb[0].mxu0
  %472 = vmatprep.mubr.bf16.mxu0 0
  %473 = vmatmul.mubr.bf16.gmra.mrb[0].mxu0 %v300
  %v474 = vpop.f32.mrb[0].mxu0
  %v475 = vadd.f32 0.0, %v474
  %v476 = vpop.f32.mrb[0].mxu0
  %v477 = vpop.f32.mrb[0].mxu0
  %v478 = vadd.f32 0.0, %v477
  %v479 = vpop.f32.mrb[0].mxu0
  %480 = vmatprep.mubr.bf16.mxu0 0
  %481 = vmatmul.mubr.bf16.gmra.mrb[0].mxu0 %v303
  %v482 = vpop.f32.mrb[0].mxu0
  %v483 = vadd.f32 0.0, %v482
  %v484 = vpop.f32.mrb[0].mxu0
  %v485 = vpop.f32.mrb[0].mxu0
  %v486 = vadd.f32 0.0, %v485
  %v487 = vpop.f32.mrb[0].mxu0
  %488 = vmatprep.mubr.bf16.mxu0 0
  %489 = vmatmul.mubr.bf16.gmra.mrb[0].mxu0 %v306
  %v490 = vpop.f32.mrb[0].mxu0
  %v491 = vadd.f32 0.0, %v490
  %v492 = vpop.f32.mrb[0].mxu0
  %v493 = vpop.f32.mrb[0].mxu0
  %v494 = vadd.f32 0.0, %v493
  %v495 = vpop.f32.mrb[0].mxu0
  %496 = vmatprep.mubr.bf16.mxu0 0
  %497 = vmatmul.mubr.bf16.gmra.mrb[0].mxu0 %v309
  %v498 = vpop.f32.mrb[0].mxu0
  %v499 = vadd.f32 0.0, %v498
  %v500 = vpop.f32.mrb[0].mxu0
  %v501 = vpop.f32.mrb[0].mxu0
  %v502 = vadd.f32 0.0, %v501
  %v503 = vpop.f32.mrb[0].mxu0
  %504 = vmatprep.mubr.bf16.mxu0 0
  %505 = vmatmul.mubr.bf16.gmra.mrb[0].mxu0 %v312
  %v506 = vpop.f32.mrb[0].mxu0
  %v507 = vadd.f32 0.0, %v506
  %v508 = vpop.f32.mrb[0].mxu0
  %v509 = vpop.f32.mrb[0].mxu0
  %v510 = vadd.f32 0.0, %v509
  %v511 = vpop.f32.mrb[0].mxu0
  %512 = vmatprep.mubr.bf16.mxu0 0
  %513 = vmatmul.mubr.bf16.gmra.mrb[0].mxu0 %v315
  %v514 = vpop.f32.mrb[0].mxu0
  %v515 = vadd.f32 0.0, %v514
  %v516 = vpop.f32.mrb[0].mxu0
  %v517 = vpop.f32.mrb[0].mxu0
  %v518 = vadd.f32 0.0, %v517
  %v519 = vpop.f32.mrb[0].mxu0
  %520 = vmatprep.mubr.bf16.mxu0 0
  %521 = vmatmul.mubr.bf16.gmra.mrb[0].mxu0 %v318
  %v522 = vpop.f32.mrb[0].mxu0
  %v523 = vadd.f32 0.0, %v522
  %v524 = vpop.f32.mrb[0].mxu0
  %v525 = vpop.f32.mrb[0].mxu0
  %v526 = vadd.f32 0.0, %v525
  %v527 = vpop.f32.mrb[0].mxu0
  %528 = vmatprep.mubr.bf16.mxu0 0
  %529 = vmatmul.mubr.bf16.gmra.mrb[0].mxu0 %v321
  %v530 = vpop.f32.mrb[0].mxu0
  %v531 = vadd.f32 0.0, %v530
  %v532 = vpop.f32.mrb[0].mxu0
  %v533 = vpop.f32.mrb[0].mxu0
  %v534 = vadd.f32 0.0, %v533
  %v535 = vpop.f32.mrb[0].mxu0
  %536 = vmatprep.mubr.bf16.mxu0 0
  %537 = vmatmul.mubr.bf16.gmra.mrb[0].mxu0 %v324
  %v538 = vpop.f32.mrb[0].mxu0
  %v539 = vadd.f32 0.0, %v538
  %v540 = vpop.f32.mrb[0].mxu0
  %v541 = vpop.f32.mrb[0].mxu0
  %v542 = vadd.f32 0.0, %v541
  %v543 = vpop.f32.mrb[0].mxu0
  %544 = vmatprep.mubr.bf16.mxu0 0
  %545 = vmatmul.mubr.bf16.gmra.mrb[0].mxu0 %v327
  %v546 = vpop.f32.mrb[0].mxu0
  %v547 = vadd.f32 0.0, %v546
  %v548 = vpop.f32.mrb[0].mxu0
  %v549 = vpop.f32.mrb[0].mxu0
  %v550 = vadd.f32 0.0, %v549
  %v551 = vpop.f32.mrb[0].mxu0
  %552 = vmatprep.mubr.bf16.mxu0 0
  %553 = vmatmul.mubr.bf16.gmra.mrb[0].mxu0 %v330
  %v554 = vpop.f32.mrb[0].mxu0
  %v555 = vadd.f32 0.0, %v554
  %v556 = vpop.f32.mrb[0].mxu0
  %v557 = vpop.f32.mrb[0].mxu0
  %v558 = vadd.f32 0.0, %v557
  %v559 = vpop.f32.mrb[0].mxu0
  %560 = vmatprep.mubr.bf16.mxu0 0
  %561 = vmatmul.mubr.bf16.gmra.mrb[0].mxu0 %v333
  %v562 = vpop.f32.mrb[0].mxu0
  %v563 = vadd.f32 0.0, %v562
  %v564 = vpop.f32.mrb[0].mxu0
  %v565 = vpop.f32.mrb[0].mxu0
  %v566 = vadd.f32 0.0, %v565
  %v567 = vpop.f32.mrb[0].mxu0
  %568 = vmatprep.mubr.bf16.mxu0 0
  %569 = vmatmul.mubr.bf16.gmra.mrb[0].mxu0 %v336
  %v570 = vpop.f32.mrb[0].mxu0
  %v571 = vadd.f32 0.0, %v570
  %v572 = vpop.f32.mrb[0].mxu0
  %v573 = vpop.f32.mrb[0].mxu0
  %v574 = vadd.f32 0.0, %v573
  %v575 = vpop.f32.mrb[0].mxu0
  %576 = vmatprep.mubr.bf16.mxu0 0
  %577 = vmatmul.mubr.bf16.gmra.mrb[0].mxu0 %v339
  %v578 = vpop.f32.mrb[0].mxu0
  %v579 = vadd.f32 0.0, %v578
  %v580 = vpop.f32.mrb[0].mxu0
  %v581 = vpop.f32.mrb[0].mxu0
  %v582 = vadd.f32 0.0, %v581
  %v583 = vpop.f32.mrb[0].mxu0
  %584 = vmatprep.mubr.bf16.mxu0 0
  %585 = vmatmul.mubr.bf16.gmra.mrb[0].mxu0 %v342
  %v586 = vpop.f32.mrb[0].mxu0
  %v587 = vadd.f32 0.0, %v586
  %v588 = vpop.f32.mrb[0].mxu0
  %v589 = vpop.f32.mrb[0].mxu0
  %v590 = vadd.f32 0.0, %v589
  %v591 = vpop.f32.mrb[0].mxu0
  %592 = vmatprep.mubr.bf16.mxu0 0
  %593 = vmatmul.mubr.bf16.gmra.mrb[0].mxu0 %v345
  %v594 = vpop.f32.mrb[0].mxu0
  %v595 = vadd.f32 0.0, %v594
  %v596 = vpop.f32.mrb[0].mxu0
  %v597 = vpop.f32.mrb[0].mxu0
  %v598 = vadd.f32 0.0, %v597
  %v599 = vpop.f32.mrb[0].mxu0
  %600 = vmatprep.mubr.bf16.mxu0 0
  %601 = vmatmul.mubr.bf16.gmra.mrb[0].mxu0 %v348
  %v602 = vpop.f32.mrb[0].mxu0
  %v603 = vadd.f32 0.0, %v602
  %v604 = vpop.f32.mrb[0].mxu0
  %v605 = vpop.f32.mrb[0].mxu0
  %v606 = vadd.f32 0.0, %v605
  %v607 = vpop.f32.mrb[0].mxu0
  %608 = vmatprep.mubr.bf16.mxu0 0
  %609 = vmatmul.mubr.bf16.gmra.mrb[0].mxu0 %v351
  %v610 = vpop.f32.mrb[0].mxu0
  %v611 = vadd.f32 0.0, %v610
  %v612 = vpop.f32.mrb[0].mxu0
  %v613 = vpop.f32.mrb[0].mxu0
  %v614 = vadd.f32 0.0, %v613
  %v615 = vpop.f32.mrb[0].mxu0
  %616 = vmatprep.mubr.bf16.mxu0 0
  %617 = vmatmul.mubr.bf16.gmra.mrb[0].mxu0 %v354
  %v618 = vpop.f32.mrb[0].mxu0
  %v619 = vadd.f32 0.0, %v618
  %v620 = vpop.f32.mrb[0].mxu0
  %v621 = vpop.f32.mrb[0].mxu0
  %v622 = vadd.f32 0.0, %v621
  %v623 = vpop.f32.mrb[0].mxu0
  %624 = vmatprep.mubr.bf16.mxu0 0
  %625 = vmatmul.mubr.bf16.gmra.mrb[0].mxu0 %v357
  %v626 = vpop.f32.mrb[0].mxu0
  %v627 = vadd.f32 0.0, %v626
  %v628 = vpop.f32.mrb[0].mxu0
  %v629 = vpop.f32.mrb[0].mxu0
  %v630 = vadd.f32 0.0, %v629
  %v631 = vpop.f32.mrb[0].mxu0
  %632 = vmatprep.mubr.bf16.mxu0 0
  %633 = vmatmul.mubr.bf16.gmra.mrb[0].mxu0 %v360
  %v634 = vpop.f32.mrb[0].mxu0
  %v635 = vadd.f32 0.0, %v634
  %v636 = vpop.f32.mrb[0].mxu0
  %v637 = vpop.f32.mrb[0].mxu0
  %v638 = vadd.f32 0.0, %v637
  %v639 = vpop.f32.mrb[0].mxu0
  %640 = vmatprep.mubr.bf16.mxu0 0
  %641 = vmatmul.mubr.bf16.gmra.mrb[0].mxu0 %v363
  %v642 = vpop.f32.mrb[0].mxu0
  %v643 = vadd.f32 0.0, %v642
  %v644 = vpop.f32.mrb[0].mxu0
  %v645 = vpop.f32.mrb[0].mxu0
  %v646 = vadd.f32 0.0, %v645
  %v647 = vpop.f32.mrb[0].mxu0
  %648 = vmatprep.mubr.bf16.mxu0 0
  %649 = vmatmul.mubr.bf16.gmra.mrb[0].mxu0 %v366
  %v650 = vpop.f32.mrb[0].mxu0
  %v651 = vadd.f32 0.0, %v650
  %v652 = vpop.f32.mrb[0].mxu0
  %v653 = vpop.f32.mrb[0].mxu0
  %v654 = vadd.f32 0.0, %v653
  %v655 = vpop.f32.mrb[0].mxu0
  %656 = vdwg.mxu0
  %v657 = vld [vmem:[%s2] sm:$0x1]
  %v658 = vlaneseq
  %v659 = vshrl.u32 %v658, 7
  %v660 = vsub.s32 0, %v659
  %v661 = vrot.slane %v657, %v660
  %v662 = vmul.f32 %v403, %v661
  %v663 = vmul.f32 %v406, %v661
  %v664 = vmul.f32 %v411, %v661
  %v665 = vmul.f32 %v414, %v661
  %v666 = vmul.f32 %v419, %v661
  %v667 = vmul.f32 %v422, %v661
  %v668 = vmul.f32 %v427, %v661
  %v669 = vmul.f32 %v430, %v661
  %v670 = vmul.f32 %v435, %v661
  %v671 = vmul.f32 %v438, %v661
  %v672 = vmul.f32 %v443, %v661
  %v673 = vmul.f32 %v446, %v661
  %v674 = vmul.f32 %v451, %v661
  %v675 = vmul.f32 %v454, %v661
  %v676 = vmul.f32 %v459, %v661
  %v677 = vmul.f32 %v462, %v661
  %v678 = vmul.f32 %v467, %v661
  %v679 = vmul.f32 %v470, %v661
  %v680 = vmul.f32 %v475, %v661
  %v681 = vmul.f32 %v478, %v661
  %v682 = vmul.f32 %v483, %v661
  %v683 = vmul.f32 %v486, %v661
  %v684 = vmul.f32 %v491, %v661
  %v685 = vmul.f32 %v494, %v661
  %v686 = vmul.f32 %v499, %v661
  %v687 = vmul.f32 %v502, %v661
  %v688 = vmul.f32 %v507, %v661
  %v689 = vmul.f32 %v510, %v661
  %v690 = vmul.f32 %v515, %v661
  %v691 = vmul.f32 %v518, %v661
  %v692 = vmul.f32 %v523, %v661
  %v693 = vmul.f32 %v526, %v661
  %v694 = vmul.f32 %v531, %v661
  %v695 = vmul.f32 %v534, %v661
  %v696 = vmul.f32 %v539, %v661
  %v697 = vmul.f32 %v542, %v661
  %v698 = vmul.f32 %v547, %v661
  %v699 = vmul.f32 %v550, %v661
  %v700 = vmul.f32 %v555, %v661
  %v701 = vmul.f32 %v558, %v661
  %v702 = vmul.f32 %v563, %v661
  %v703 = vmul.f32 %v566, %v661
  %v704 = vmul.f32 %v571, %v661
  %v705 = vmul.f32 %v574, %v661
  %v706 = vmul.f32 %v579, %v661
  %v707 = vmul.f32 %v582, %v661
  %v708 = vmul.f32 %v587, %v661
  %v709 = vmul.f32 %v590, %v661
  %v710 = vmul.f32 %v595, %v661
  %v711 = vmul.f32 %v598, %v661
  %v712 = vmul.f32 %v603, %v661
  %v713 = vmul.f32 %v606, %v661
  %v714 = vmul.f32 %v611, %v661
  %v715 = vmul.f32 %v614, %v661
  %v716 = vmul.f32 %v619, %v661
  %v717 = vmul.f32 %v622, %v661
  %v718 = vmul.f32 %v627, %v661
  %v719 = vmul.f32 %v630, %v661
  %v720 = vmul.f32 %v635, %v661
  %v721 = vmul.f32 %v638, %v661
  %v722 = vmul.f32 %v643, %v661
  %v723 = vmul.f32 %v646, %v661
  %v724 = vmul.f32 %v651, %v661
  %v725 = vmul.f32 %v654, %v661
  %v726 = vld [vmem:[%s2 + $0x1] sm:$0x1]
  %v727 = vlaneseq
  %v728 = vshrl.u32 %v727, 7
  %v729 = vsub.s32 0, %v728
  %v730 = vrot.slane %v726, %v729
  %v731 = vadd.f32 %v662, %v730
  %v732 = vadd.f32 %v663, %v730
  %v733 = vadd.f32 %v664, %v730
  %v734 = vadd.f32 %v665, %v730
  %v735 = vadd.f32 %v666, %v730
  %v736 = vadd.f32 %v667, %v730
  %v737 = vadd.f32 %v668, %v730
  %v738 = vadd.f32 %v669, %v730
  %v739 = vadd.f32 %v670, %v730
  %v740 = vadd.f32 %v671, %v730
  %v741 = vadd.f32 %v672, %v730
  %v742 = vadd.f32 %v673, %v730
  %v743 = vadd.f32 %v674, %v730
  %v744 = vadd.f32 %v675, %v730
  %v745 = vadd.f32 %v676, %v730
  %v746 = vadd.f32 %v677, %v730
  %v747 = vadd.f32 %v678, %v730
  %v748 = vadd.f32 %v679, %v730
  %v749 = vadd.f32 %v680, %v730
  %v750 = vadd.f32 %v681, %v730
  %v751 = vadd.f32 %v682, %v730
  %v752 = vadd.f32 %v683, %v730
  %v753 = vadd.f32 %v684, %v730
  %v754 = vadd.f32 %v685, %v730
  %v755 = vadd.f32 %v686, %v730
  %v756 = vadd.f32 %v687, %v730
  %v757 = vadd.f32 %v688, %v730
  %v758 = vadd.f32 %v689, %v730
  %v759 = vadd.f32 %v690, %v730
  %v760 = vadd.f32 %v691, %v730
  %v761 = vadd.f32 %v692, %v730
  %v762 = vadd.f32 %v693, %v730
  %v763 = vadd.f32 %v694, %v730
  %v764 = vadd.f32 %v695, %v730
  %v765 = vadd.f32 %v696, %v730
  %v766 = vadd.f32 %v697, %v730
  %v767 = vadd.f32 %v698, %v730
  %v768 = vadd.f32 %v699, %v730
  %v769 = vadd.f32 %v700, %v730
  %v770 = vadd.f32 %v701, %v730
  %v771 = vadd.f32 %v702, %v730
  %v772 = vadd.f32 %v703, %v730
  %v773 = vadd.f32 %v704, %v730
  %v774 = vadd.f32 %v705, %v730
  %v775 = vadd.f32 %v706, %v730
  %v776 = vadd.f32 %v707, %v730
  %v777 = vadd.f32 %v708, %v730
  %v778 = vadd.f32 %v709, %v730
  %v779 = vadd.f32 %v710, %v730
  %v780 = vadd.f32 %v711, %v730
  %v781 = vadd.f32 %v712, %v730
  %v782 = vadd.f32 %v713, %v730
  %v783 = vadd.f32 %v714, %v730
  %v784 = vadd.f32 %v715, %v730
  %v785 = vadd.f32 %v716, %v730
  %v786 = vadd.f32 %v717, %v730
  %v787 = vadd.f32 %v718, %v730
  %v788 = vadd.f32 %v719, %v730
  %v789 = vadd.f32 %v720, %v730
  %v790 = vadd.f32 %v721, %v730
  %v791 = vadd.f32 %v722, %v730
  %v792 = vadd.f32 %v723, %v730
  %v793 = vadd.f32 %v724, %v730
  %v794 = vadd.f32 %v725, %v730
  %v795 = vmax.f32 %v731, 0.0
  %v796 = vmax.f32 %v732, 0.0
  %v797 = vmax.f32 %v733, 0.0
  %v798 = vmax.f32 %v734, 0.0
  %v799 = vmax.f32 %v735, 0.0
  %v800 = vmax.f32 %v736, 0.0
  %v801 = vmax.f32 %v737, 0.0
  %v802 = vmax.f32 %v738, 0.0
  %v803 = vmax.f32 %v739, 0.0
  %v804 = vmax.f32 %v740, 0.0
  %v805 = vmax.f32 %v741, 0.0
  %v806 = vmax.f32 %v742, 0.0
  %v807 = vmax.f32 %v743, 0.0
  %v808 = vmax.f32 %v744, 0.0
  %v809 = vmax.f32 %v745, 0.0
  %v810 = vmax.f32 %v746, 0.0
  %v811 = vmax.f32 %v747, 0.0
  %v812 = vmax.f32 %v748, 0.0
  %v813 = vmax.f32 %v749, 0.0
  %v814 = vmax.f32 %v750, 0.0
  %v815 = vmax.f32 %v751, 0.0
  %v816 = vmax.f32 %v752, 0.0
  %v817 = vmax.f32 %v753, 0.0
  %v818 = vmax.f32 %v754, 0.0
  %v819 = vmax.f32 %v755, 0.0
  %v820 = vmax.f32 %v756, 0.0
  %v821 = vmax.f32 %v757, 0.0
  %v822 = vmax.f32 %v758, 0.0
  %v823 = vmax.f32 %v759, 0.0
  %v824 = vmax.f32 %v760, 0.0
  %v825 = vmax.f32 %v761, 0.0
  %v826 = vmax.f32 %v762, 0.0
  %v827 = vmax.f32 %v763, 0.0
  %v828 = vmax.f32 %v764, 0.0
  %v829 = vmax.f32 %v765, 0.0
  %v830 = vmax.f32 %v766, 0.0
  %v831 = vmax.f32 %v767, 0.0
  %v832 = vmax.f32 %v768, 0.0
  %v833 = vmax.f32 %v769, 0.0
  %v834 = vmax.f32 %v770, 0.0
  %v835 = vmax.f32 %v771, 0.0
  %v836 = vmax.f32 %v772, 0.0
  %v837 = vmax.f32 %v773, 0.0
  %v838 = vmax.f32 %v774, 0.0
  %v839 = vmax.f32 %v775, 0.0
  %v840 = vmax.f32 %v776, 0.0
  %v841 = vmax.f32 %v777, 0.0
  %v842 = vmax.f32 %v778, 0.0
  %v843 = vmax.f32 %v779, 0.0
  %v844 = vmax.f32 %v780, 0.0
  %v845 = vmax.f32 %v781, 0.0
  %v846 = vmax.f32 %v782, 0.0
  %v847 = vmax.f32 %v783, 0.0
  %v848 = vmax.f32 %v784, 0.0
  %v849 = vmax.f32 %v785, 0.0
  %v850 = vmax.f32 %v786, 0.0
  %v851 = vmax.f32 %v787, 0.0
  %v852 = vmax.f32 %v788, 0.0
  %v853 = vmax.f32 %v789, 0.0
  %v854 = vmax.f32 %v790, 0.0
  %v855 = vmax.f32 %v791, 0.0
  %v856 = vmax.f32 %v792, 0.0
  %v857 = vmax.f32 %v793, 0.0
  %v858 = vmax.f32 %v794, 0.0
  %v859 = vpack.c.bf16 %v796, %v795
  %v860 = vpack.c.bf16 %v798, %v797
  %v861 = vpack.c.bf16 %v800, %v799
  %v862 = vpack.c.bf16 %v802, %v801
  %v863 = vpack.c.bf16 %v804, %v803
  %v864 = vpack.c.bf16 %v806, %v805
  %v865 = vpack.c.bf16 %v808, %v807
  %v866 = vpack.c.bf16 %v810, %v809
  %v867 = vpack.c.bf16 %v812, %v811
  %v868 = vpack.c.bf16 %v814, %v813
  %v869 = vpack.c.bf16 %v816, %v815
  %v870 = vpack.c.bf16 %v818, %v817
  %v871 = vpack.c.bf16 %v820, %v819
  %v872 = vpack.c.bf16 %v822, %v821
  %v873 = vpack.c.bf16 %v824, %v823
  %v874 = vpack.c.bf16 %v826, %v825
  %v875 = vpack.c.bf16 %v828, %v827
  %v876 = vpack.c.bf16 %v830, %v829
  %v877 = vpack.c.bf16 %v832, %v831
  %v878 = vpack.c.bf16 %v834, %v833
  %v879 = vpack.c.bf16 %v836, %v835
  %v880 = vpack.c.bf16 %v838, %v837
  %v881 = vpack.c.bf16 %v840, %v839
  %v882 = vpack.c.bf16 %v842, %v841
  %v883 = vpack.c.bf16 %v844, %v843
  %v884 = vpack.c.bf16 %v846, %v845
  %v885 = vpack.c.bf16 %v848, %v847
  %v886 = vpack.c.bf16 %v850, %v849
  %v887 = vpack.c.bf16 %v852, %v851
  %v888 = vpack.c.bf16 %v854, %v853
  %v889 = vpack.c.bf16 %v856, %v855
  %v890 = vpack.c.bf16 %v858, %v857
  %v923 = vunpack.c.l.b16 %v859
  %v924 = vunpack.c.h.b16 %v859
  %v925 = vunpack.c.l.b16 %v860
  %v926 = vunpack.c.h.b16 %v860
  %v927 = vunpack.c.l.b16 %v861
  %v928 = vunpack.c.h.b16 %v861
  %v929 = vunpack.c.l.b16 %v862
  %v930 = vunpack.c.h.b16 %v862
  %v931 = vunpack.c.l.b16 %v863
  %v932 = vunpack.c.h.b16 %v863
  %v933 = vunpack.c.l.b16 %v864
  %v934 = vunpack.c.h.b16 %v864
  %v935 = vunpack.c.l.b16 %v865
  %v936 = vunpack.c.h.b16 %v865
  %v937 = vunpack.c.l.b16 %v866
  %v938 = vunpack.c.h.b16 %v866
  %v939 = vunpack.c.l.b16 %v867
  %v940 = vunpack.c.h.b16 %v867
  %v941 = vunpack.c.l.b16 %v868
  %v942 = vunpack.c.h.b16 %v868
  %v943 = vunpack.c.l.b16 %v869
  %v944 = vunpack.c.h.b16 %v869
  %v945 = vunpack.c.l.b16 %v870
  %v946 = vunpack.c.h.b16 %v870
  %v947 = vunpack.c.l.b16 %v871
  %v948 = vunpack.c.h.b16 %v871
  %v949 = vunpack.c.l.b16 %v872
  %v950 = vunpack.c.h.b16 %v872
  %v951 = vunpack.c.l.b16 %v873
  %v952 = vunpack.c.h.b16 %v873
  %v953 = vunpack.c.l.b16 %v874
  %v954 = vunpack.c.h.b16 %v874
  %v955 = vunpack.c.l.b16 %v875
  %v956 = vunpack.c.h.b16 %v875
  %v957 = vunpack.c.l.b16 %v876
  %v958 = vunpack.c.h.b16 %v876
  %v959 = vunpack.c.l.b16 %v877
  %v960 = vunpack.c.h.b16 %v877
  %v961 = vunpack.c.l.b16 %v878
  %v962 = vunpack.c.h.b16 %v878
  %v963 = vunpack.c.l.b16 %v879
  %v964 = vunpack.c.h.b16 %v879
  %v965 = vunpack.c.l.b16 %v880
  %v966 = vunpack.c.h.b16 %v880
  %v967 = vunpack.c.l.b16 %v881
  %v968 = vunpack.c.h.b16 %v881
  %v969 = vunpack.c.l.b16 %v882
  %v970 = vunpack.c.h.b16 %v882
  %v971 = vunpack.c.l.b16 %v883
  %v972 = vunpack.c.h.b16 %v883
  %v973 = vunpack.c.l.b16 %v884
  %v974 = vunpack.c.h.b16 %v884
  %v975 = vunpack.c.l.b16 %v885
  %v976 = vunpack.c.h.b16 %v885
  %v977 = vunpack.c.l.b16 %v886
  %v978 = vunpack.c.h.b16 %v886
  %v979 = vunpack.c.l.b16 %v887
  %v980 = vunpack.c.h.b16 %v887
  %v981 = vunpack.c.l.b16 %v888
  %v982 = vunpack.c.h.b16 %v888
  %v983 = vunpack.c.l.b16 %v889
  %v984 = vunpack.c.h.b16 %v889
  %v985 = vunpack.c.l.b16 %v890
  %v986 = vunpack.c.h.b16 %v890
  %v987 = vpack.c.b16 %v923, %v923
  %v988 = vpack.c.b16 %v924, %v924
  %v989 = vpack.c.b16 %v925, %v925
  %v990 = vpack.c.b16 %v926, %v926
  %v991 = vpack.c.b16 %v927, %v927
  %v992 = vpack.c.b16 %v928, %v928
  %v993 = vpack.c.b16 %v929, %v929
  %v994 = vpack.c.b16 %v930, %v930
  %v995 = vpack.c.b16 %v931, %v931
  %v996 = vpack.c.b16 %v932, %v932
  %v997 = vpack.c.b16 %v933, %v933
  %v998 = vpack.c.b16 %v934, %v934
  %v999 = vpack.c.b16 %v935, %v935
  %v1000 = vpack.c.b16 %v936, %v936
  %v1001 = vpack.c.b16 %v937, %v937
  %v1002 = vpack.c.b16 %v938, %v938
  %v1003 = vpack.c.b16 %v939, %v939
  %v1004 = vpack.c.b16 %v940, %v940
  %v1005 = vpack.c.b16 %v941, %v941
  %v1006 = vpack.c.b16 %v942, %v942
  %v1007 = vpack.c.b16 %v943, %v943
  %v1008 = vpack.c.b16 %v944, %v944
  %v1009 = vpack.c.b16 %v945, %v945
  %v1010 = vpack.c.b16 %v946, %v946
  %v1011 = vpack.c.b16 %v947, %v947
  %v1012 = vpack.c.b16 %v948, %v948
  %v1013 = vpack.c.b16 %v949, %v949
  %v1014 = vpack.c.b16 %v950, %v950
  %v1015 = vpack.c.b16 %v951, %v951
  %v1016 = vpack.c.b16 %v952, %v952
  %v1017 = vpack.c.b16 %v953, %v953
  %v1018 = vpack.c.b16 %v954, %v954
  %v1019 = vpack.c.b16 %v955, %v955
  %v1020 = vpack.c.b16 %v956, %v956
  %v1021 = vpack.c.b16 %v957, %v957
  %v1022 = vpack.c.b16 %v958, %v958
  %v1023 = vpack.c.b16 %v959, %v959
  %v1024 = vpack.c.b16 %v960, %v960
  %v1025 = vpack.c.b16 %v961, %v961
  %v1026 = vpack.c.b16 %v962, %v962
  %v1027 = vpack.c.b16 %v963, %v963
  %v1028 = vpack.c.b16 %v964, %v964
  %v1029 = vpack.c.b16 %v965, %v965
  %v1030 = vpack.c.b16 %v966, %v966
  %v1031 = vpack.c.b16 %v967, %v967
  %v1032 = vpack.c.b16 %v968, %v968
  %v1033 = vpack.c.b16 %v969, %v969
  %v1034 = vpack.c.b16 %v970, %v970
  %v1035 = vpack.c.b16 %v971, %v971
  %v1036 = vpack.c.b16 %v972, %v972
  %v1037 = vpack.c.b16 %v973, %v973
  %v1038 = vpack.c.b16 %v974, %v974
  %v1039 = vpack.c.b16 %v975, %v975
  %v1040 = vpack.c.b16 %v976, %v976
  %v1041 = vpack.c.b16 %v977, %v977
  %v1042 = vpack.c.b16 %v978, %v978
  %v1043 = vpack.c.b16 %v979, %v979
  %v1044 = vpack.c.b16 %v980, %v980
  %v1045 = vpack.c.b16 %v981, %v981
  %v1046 = vpack.c.b16 %v982, %v982
  %v1047 = vpack.c.b16 %v983, %v983
  %v1048 = vpack.c.b16 %v984, %v984
  %v1049 = vpack.c.b16 %v985, %v985
  %v1050 = vpack.c.b16 %v986, %v986
  %vm1115 = vcmask 125952
  %1116 = vst.msk [vmem:[%s3] sm:$0xf] %vm1115, %v987
  %1117 = vst.msk [vmem:[%s3 + $0x4] sm:$0xf] %vm1115, %v988
  %1118 = vst.msk [vmem:[%s3 + $0x8] sm:$0xf] %vm1115, %v989
  %1119 = vst.msk [vmem:[%s3 + $0xc] sm:$0xf] %vm1115, %v990
  %1120 = vst.msk [vmem:[%s3 + $0x10] sm:$0xf] %vm1115, %v991
  %1121 = vst.msk [vmem:[%s3 + $0x14] sm:$0xf] %vm1115, %v992
  %1122 = vst.msk [vmem:[%s3 + $0x18] sm:$0xf] %vm1115, %v993
  %1123 = vst.msk [vmem:[%s3 + $0x1c] sm:$0xf] %vm1115, %v994
  %1124 = vst.msk [vmem:[%s3 + $0x20] sm:$0xf] %vm1115, %v995
  %1125 = vst.msk [vmem:[%s3 + $0x24] sm:$0xf] %vm1115, %v996
  %1126 = vst.msk [vmem:[%s3 + $0x28] sm:$0xf] %vm1115, %v997
  %1127 = vst.msk [vmem:[%s3 + $0x2c] sm:$0xf] %vm1115, %v998
  %1128 = vst.msk [vmem:[%s3 + $0x30] sm:$0xf] %vm1115, %v999
  %1129 = vst.msk [vmem:[%s3 + $0x34] sm:$0xf] %vm1115, %v1000
  %1130 = vst.msk [vmem:[%s3 + $0x38] sm:$0xf] %vm1115, %v1001
  %1131 = vst.msk [vmem:[%s3 + $0x3c] sm:$0xf] %vm1115, %v1002
  %1132 = vst.msk [vmem:[%s3 + $0x40] sm:$0xf] %vm1115, %v1003
  %1133 = vst.msk [vmem:[%s3 + $0x44] sm:$0xf] %vm1115, %v1004
  %1134 = vst.msk [vmem:[%s3 + $0x48] sm:$0xf] %vm1115, %v1005
  %1135 = vst.msk [vmem:[%s3 + $0x4c] sm:$0xf] %vm1115, %v1006
  %1136 = vst.msk [vmem:[%s3 + $0x50] sm:$0xf] %vm1115, %v1007
  %1137 = vst.msk [vmem:[%s3 + $0x54] sm:$0xf] %vm1115, %v1008
  %1138 = vst.msk [vmem:[%s3 + $0x58] sm:$0xf] %vm1115, %v1009
  %1139 = vst.msk [vmem:[%s3 + $0x5c] sm:$0xf] %vm1115, %v1010
  %1140 = vst.msk [vmem:[%s3 + $0x60] sm:$0xf] %vm1115, %v1011
  %1141 = vst.msk [vmem:[%s3 + $0x64] sm:$0xf] %vm1115, %v1012
  %1142 = vst.msk [vmem:[%s3 + $0x68] sm:$0xf] %vm1115, %v1013
  %1143 = vst.msk [vmem:[%s3 + $0x6c] sm:$0xf] %vm1115, %v1014
  %1144 = vst.msk [vmem:[%s3 + $0x70] sm:$0xf] %vm1115, %v1015
  %1145 = vst.msk [vmem:[%s3 + $0x74] sm:$0xf] %vm1115, %v1016
  %1146 = vst.msk [vmem:[%s3 + $0x78] sm:$0xf] %vm1115, %v1017
  %1147 = vst.msk [vmem:[%s3 + $0x7c] sm:$0xf] %vm1115, %v1018
  %1148 = vst.msk [vmem:[%s3 + $0x80] sm:$0xf] %vm1115, %v1019
  %1149 = vst.msk [vmem:[%s3 + $0x84] sm:$0xf] %vm1115, %v1020
  %1150 = vst.msk [vmem:[%s3 + $0x88] sm:$0xf] %vm1115, %v1021
  %1151 = vst.msk [vmem:[%s3 + $0x8c] sm:$0xf] %vm1115, %v1022
  %1152 = vst.msk [vmem:[%s3 + $0x90] sm:$0xf] %vm1115, %v1023
  %1153 = vst.msk [vmem:[%s3 + $0x94] sm:$0xf] %vm1115, %v1024
  %1154 = vst.msk [vmem:[%s3 + $0x98] sm:$0xf] %vm1115, %v1025
  %1155 = vst.msk [vmem:[%s3 + $0x9c] sm:$0xf] %vm1115, %v1026
  %1156 = vst.msk [vmem:[%s3 + $0xa0] sm:$0xf] %vm1115, %v1027
  %1157 = vst.msk [vmem:[%s3 + $0xa4] sm:$0xf] %vm1115, %v1028
  %1158 = vst.msk [vmem:[%s3 + $0xa8] sm:$0xf] %vm1115, %v1029
  %1159 = vst.msk [vmem:[%s3 + $0xac] sm:$0xf] %vm1115, %v1030
  %1160 = vst.msk [vmem:[%s3 + $0xb0] sm:$0xf] %vm1115, %v1031
  %1161 = vst.msk [vmem:[%s3 + $0xb4] sm:$0xf] %vm1115, %v1032
  %1162 = vst.msk [vmem:[%s3 + $0xb8] sm:$0xf] %vm1115, %v1033
  %1163 = vst.msk [vmem:[%s3 + $0xbc] sm:$0xf] %vm1115, %v1034
  %1164 = vst.msk [vmem:[%s3 + $0xc0] sm:$0xf] %vm1115, %v1035
  %1165 = vst.msk [vmem:[%s3 + $0xc4] sm:$0xf] %vm1115, %v1036
  %1166 = vst.msk [vmem:[%s3 + $0xc8] sm:$0xf] %vm1115, %v1037
  %1167 = vst.msk [vmem:[%s3 + $0xcc] sm:$0xf] %vm1115, %v1038
  %1168 = vst.msk [vmem:[%s3 + $0xd0] sm:$0xf] %vm1115, %v1039
  %1169 = vst.msk [vmem:[%s3 + $0xd4] sm:$0xf] %vm1115, %v1040
  %1170 = vst.msk [vmem:[%s3 + $0xd8] sm:$0xf] %vm1115, %v1041
  %1171 = vst.msk [vmem:[%s3 + $0xdc] sm:$0xf] %vm1115, %v1042
  %1172 = vst.msk [vmem:[%s3 + $0xe0] sm:$0xf] %vm1115, %v1043
  %1173 = vst.msk [vmem:[%s3 + $0xe4] sm:$0xf] %vm1115, %v1044
  %1174 = vst.msk [vmem:[%s3 + $0xe8] sm:$0xf] %vm1115, %v1045
  %1175 = vst.msk [vmem:[%s3 + $0xec] sm:$0xf] %vm1115, %v1046
  %1176 = vst.msk [vmem:[%s3 + $0xf0] sm:$0xf] %vm1115, %v1047
  %1177 = vst.msk [vmem:[%s3 + $0xf4] sm:$0xf] %vm1115, %v1048
  %1178 = vst.msk [vmem:[%s3 + $0xf8] sm:$0xf] %vm1115, %v1049
  %1179 = vst.msk [vmem:[%s3 + $0xfc] sm:$0xf] %vm1115, %v1050
  // Predicated region
  $region14: #{run_pallas.7} parent=0 // pred_check
    _
  $region15: #{run_pallas.7} parent=0 // pred_check_branch
    %1181 = sbr.rel (0) target = $region17
  $region16: #{run_pallas.7} parent=0 // pred_region
    _
  $region17: #{run_pallas.7} parent=0 // pred_fallthru
    _
  // Predicated region
  $region18: #{run_pallas.7} parent=0 // pred_check
    _
  $region19: #{run_pallas.7} parent=0 // pred_check_branch
    %1183 = sbr.rel (0) target = $region21
  $region20: #{run_pallas.7} parent=0 // pred_region
    _
  $region21: #{run_pallas.7} parent=0 // pred_fallthru
    _

// kernel: run_pallas.9
$region0: #{run_pallas.9}
  #allocation0 [shape = 'u32[]', space=smem, size = 0x4, offset = 0x4, fixed_abs, tag = 'smem constant byte address 0x4 - core index']
  #allocation1 [shape = 'u32[144,128]{1,0:T(1,128)}', space=vmem, size = 0x12000, scoped, tag = 'internal scratch']
  %s0 = inlined_call_operand.vmem [shape: bf16[128,64], index: 0, kind: input, shape index: {}]
  %s1 = inlined_call_operand.vmem [shape: bf16[64,64], index: 1, kind: input, shape index: {}]
  %s2 = inlined_call_operand.vmem [shape: f32[2,64], index: 2, kind: input, shape index: {}]
  %s3 = inlined_call_operand.vmem [shape: bf16[128,64], index: 3, kind: output, shape index: {}]
  %s4 = sld [smem:[#allocation0]]
  $region22: #{run_pallas.9} parent=0
    _
  %s6 = ssub.s32 1, %s4
  %s7 = scalar_select 0, %s6, %s4
  // Predicated region
  $region2: #{run_pallas.9} parent=0 // pred_check
    _
  $region3: #{run_pallas.9} parent=0 // pred_check_branch
    %9 = sbr.rel (0) target = $region5
  $region4: #{run_pallas.9} parent=0 // pred_region
    _
  $region5: #{run_pallas.9} parent=0 // pred_fallthru
    _
  // Predicated region
  $region6: #{run_pallas.9} parent=0 // pred_check
    _
  $region7: #{run_pallas.9} parent=0 // pred_check_branch
    %11 = sbr.rel (0) target = $region9
  $region8: #{run_pallas.9} parent=0 // pred_region
    _
  $region9: #{run_pallas.9} parent=0 // pred_fallthru
    _
  // Predicated region
  $region10: #{run_pallas.9} parent=0 // pred_check
    _
  $region11: #{run_pallas.9} parent=0 // pred_check_branch
    %13 = sbr.rel (0) target = $region13
  $region12: #{run_pallas.9} parent=0 // pred_region
    _
  $region13: #{run_pallas.9} parent=0 // pred_fallthru
    _
  %v15 = vld [vmem:[%s0] sm:$0xf]
  %v16 = vld [vmem:[%s0 + $0x4] sm:$0xf]
  %v17 = vld [vmem:[%s0 + $0x8] sm:$0xf]
  %v18 = vld [vmem:[%s0 + $0xc] sm:$0xf]
  %v19 = vld [vmem:[%s0 + $0x10] sm:$0xf]
  %v20 = vld [vmem:[%s0 + $0x14] sm:$0xf]
  %v21 = vld [vmem:[%s0 + $0x18] sm:$0xf]
  %v22 = vld [vmem:[%s0 + $0x1c] sm:$0xf]
  %v23 = vld [vmem:[%s0 + $0x20] sm:$0xf]
  %v24 = vld [vmem:[%s0 + $0x24] sm:$0xf]
  %v25 = vld [vmem:[%s0 + $0x28] sm:$0xf]
  %v26 = vld [vmem:[%s0 + $0x2c] sm:$0xf]
  %v27 = vld [vmem:[%s0 + $0x30] sm:$0xf]
  %v28 = vld [vmem:[%s0 + $0x34] sm:$0xf]
  %v29 = vld [vmem:[%s0 + $0x38] sm:$0xf]
  %v30 = vld [vmem:[%s0 + $0x3c] sm:$0xf]
  %v31 = vld [vmem:[%s1] sm:$0xf]
  %v32 = vld [vmem:[%s1 + $0x4] sm:$0xf]
  %v33 = vld [vmem:[%s1 + $0x8] sm:$0xf]
  %v34 = vld [vmem:[%s1 + $0xc] sm:$0xf]
  %v35 = vld [vmem:[%s1 + $0x10] sm:$0xf]
  %v36 = vld [vmem:[%s1 + $0x14] sm:$0xf]
  %v37 = vld [vmem:[%s1 + $0x18] sm:$0xf]
  %v38 = vld [vmem:[%s1 + $0x1c] sm:$0xf]
  %v55 = vunpack.c.l.b16 %v15
  %v56 = vunpack.c.l.b16 %v16
  %v57 = vunpack.c.l.b16 %v17
  %v58 = vunpack.c.l.b16 %v18
  %v59 = vunpack.c.l.b16 %v19
  %v60 = vunpack.c.l.b16 %v20
  %v61 = vunpack.c.l.b16 %v21
  %v62 = vunpack.c.l.b16 %v22
  %v63 = vunpack.c.l.b16 %v23
  %v64 = vunpack.c.l.b16 %v24
  %v65 = vunpack.c.l.b16 %v25
  %v66 = vunpack.c.l.b16 %v26
  %v67 = vunpack.c.l.b16 %v27
  %v68 = vunpack.c.l.b16 %v28
  %v69 = vunpack.c.l.b16 %v29
  %v70 = vunpack.c.l.b16 %v30
  %v71 = vpack.c.b16 %v56, %v55
  %v72 = vpack.c.b16 %v58, %v57
  %v73 = vpack.c.b16 %v60, %v59
  %v74 = vpack.c.b16 %v62, %v61
  %v75 = vpack.c.b16 %v64, %v63
  %v76 = vpack.c.b16 %v66, %v65
  %v77 = vpack.c.b16 %v68, %v67
  %v78 = vpack.c.b16 %v70, %v69
  %v87 = vunpack.c.l.b16 %v31
  %v88 = vunpack.c.l.b16 %v32
  %v89 = vunpack.c.l.b16 %v33
  %v90 = vunpack.c.l.b16 %v34
  %v91 = vunpack.c.l.b16 %v35
  %v92 = vunpack.c.l.b16 %v36
  %v93 = vunpack.c.l.b16 %v37
  %v94 = vunpack.c.l.b16 %v38
  %v95 = vpack.c.b16 %v88, %v87
  %v96 = vpack.c.b16 %v90, %v89
  %v97 = vpack.c.b16 %v92, %v91
  %v98 = vpack.c.b16 %v94, %v93
  %vm103 = vcmask 523264
  %v105 = vsel %vm103, %v71, 0
  %v108 = vsel %vm103, %v72, 0
  %v111 = vsel %vm103, %v73, 0
  %v114 = vsel %vm103, %v74, 0
  %v117 = vsel %vm103, %v75, 0
  %v120 = vsel %vm103, %v76, 0
  %v123 = vsel %vm103, %v77, 0
  %v126 = vsel %vm103, %v78, 0
  %128 = vmatprep.subr.bf16.mxu0 0
  %129 = vmatpush1.bf16.msra.mxu0 %v95
  %130 = vmatprep.subr.bf16.mxu0 0
  %131 = vmatpush1.bf16.msra.mxu0 %v96
  %132 = vmatprep.subr.bf16.mxu0 0
  %133 = vmatpush1.bf16.msra.mxu0 %v97
  %134 = vmatprep.subr.bf16.mxu0 0
  %135 = vmatpush1.bf16.msra.mxu0 %v98
  %136 = vmatprep.subr.bf16.mxu0 0
  %137 = vmatpush1.bf16.msra.mxu0 0
  %138 = vmatprep.subr.bf16.mxu0 0
  %139 = vmatpush1.bf16.msra.mxu0 0
  %140 = vmatprep.subr.bf16.mxu0 0
  %141 = vmatpush1.bf16.msra.mxu0 0
  %142 = vmatprep.subr.bf16.mxu0 0
  %143 = vmatpush1.bf16.msra.mxu0 0
  %144 = vmatprep.subr.bf16.mxu0 0
  %145 = vmatpush1.bf16.msra.mxu0 0
  %146 = vmatprep.subr.bf16.mxu0 0
  %147 = vmatpush1.bf16.msra.mxu0 0
  %148 = vmatprep.subr.bf16.mxu0 0
  %149 = vmatpush1.bf16.msra.mxu0 0
  %150 = vmatprep.subr.bf16.mxu0 0
  %151 = vmatpush1.bf16.msra.mxu0 0
  %152 = vmatprep.subr.bf16.mxu0 0
  %153 = vmatpush1.bf16.msra.mxu0 0
  %154 = vmatprep.subr.bf16.mxu0 0
  %155 = vmatpush1.bf16.msra.mxu0 0
  %156 = vmatprep.subr.bf16.mxu0 0
  %157 = vmatpush1.bf16.msra.mxu0 0
  %158 = vmatprep.subr.bf16.mxu0 0
  %159 = vmatpush1.bf16.msra.mxu0 0
  %160 = vmatprep.mubr.bf16.mxu0 0
  %161 = vmatmul.mubr.bf16.gmra.mrb[0].mxu0 %v105
  %v162 = vpop.f32.mrb[0].mxu0
  %v163 = vadd.f32 0.0, %v162
  %v164 = vpop.f32.mrb[0].mxu0
  %v165 = vpop.f32.mrb[0].mxu0
  %v166 = vadd.f32 0.0, %v165
  %v167 = vpop.f32.mrb[0].mxu0
  %168 = vmatprep.mubr.bf16.mxu0 0
  %169 = vmatmul.mubr.bf16.gmra.mrb[0].mxu0 %v108
  %v170 = vpop.f32.mrb[0].mxu0
  %v171 = vadd.f32 0.0, %v170
  %v172 = vpop.f32.mrb[0].mxu0
  %v173 = vpop.f32.mrb[0].mxu0
  %v174 = vadd.f32 0.0, %v173
  %v175 = vpop.f32.mrb[0].mxu0
  %176 = vmatprep.mubr.bf16.mxu0 0
  %177 = vmatmul.mubr.bf16.gmra.mrb[0].mxu0 %v111
  %v178 = vpop.f32.mrb[0].mxu0
  %v179 = vadd.f32 0.0, %v178
  %v180 = vpop.f32.mrb[0].mxu0
  %v181 = vpop.f32.mrb[0].mxu0
  %v182 = vadd.f32 0.0, %v181
  %v183 = vpop.f32.mrb[0].mxu0
  %184 = vmatprep.mubr.bf16.mxu0 0
  %185 = vmatmul.mubr.bf16.gmra.mrb[0].mxu0 %v114
  %v186 = vpop.f32.mrb[0].mxu0
  %v187 = vadd.f32 0.0, %v186
  %v188 = vpop.f32.mrb[0].mxu0
  %v189 = vpop.f32.mrb[0].mxu0
  %v190 = vadd.f32 0.0, %v189
  %v191 = vpop.f32.mrb[0].mxu0
  %192 = vmatprep.mubr.bf16.mxu0 0
  %193 = vmatmul.mubr.bf16.gmra.mrb[0].mxu0 %v117
  %v194 = vpop.f32.mrb[0].mxu0
  %v195 = vadd.f32 0.0, %v194
  %v196 = vpop.f32.mrb[0].mxu0
  %v197 = vpop.f32.mrb[0].mxu0
  %v198 = vadd.f32 0.0, %v197
  %v199 = vpop.f32.mrb[0].mxu0
  %200 = vmatprep.mubr.bf16.mxu0 0
  %201 = vmatmul.mubr.bf16.gmra.mrb[0].mxu0 %v120
  %v202 = vpop.f32.mrb[0].mxu0
  %v203 = vadd.f32 0.0, %v202
  %v204 = vpop.f32.mrb[0].mxu0
  %v205 = vpop.f32.mrb[0].mxu0
  %v206 = vadd.f32 0.0, %v205
  %v207 = vpop.f32.mrb[0].mxu0
  %208 = vmatprep.mubr.bf16.mxu0 0
  %209 = vmatmul.mubr.bf16.gmra.mrb[0].mxu0 %v123
  %v210 = vpop.f32.mrb[0].mxu0
  %v211 = vadd.f32 0.0, %v210
  %v212 = vpop.f32.mrb[0].mxu0
  %v213 = vpop.f32.mrb[0].mxu0
  %v214 = vadd.f32 0.0, %v213
  %v215 = vpop.f32.mrb[0].mxu0
  %216 = vmatprep.mubr.bf16.mxu0 0
  %217 = vmatmul.mubr.bf16.gmra.mrb[0].mxu0 %v126
  %v218 = vpop.f32.mrb[0].mxu0
  %v219 = vadd.f32 0.0, %v218
  %v220 = vpop.f32.mrb[0].mxu0
  %v221 = vpop.f32.mrb[0].mxu0
  %v222 = vadd.f32 0.0, %v221
  %v223 = vpop.f32.mrb[0].mxu0
  %224 = vdwg.mxu0
  %v225 = vld [vmem:[%s2] sm:$0x1]
  %v226 = vlaneseq
  %v227 = vshrl.u32 %v226, 7
  %v228 = vsub.s32 0, %v227
  %v229 = vrot.slane %v225, %v228
  %v230 = vmul.f32 %v163, %v229
  %v231 = vmul.f32 %v166, %v229
  %v232 = vmul.f32 %v171, %v229
  %v233 = vmul.f32 %v174, %v229
  %v234 = vmul.f32 %v179, %v229
  %v235 = vmul.f32 %v182, %v229
  %v236 = vmul.f32 %v187, %v229
  %v237 = vmul.f32 %v190, %v229
  %v238 = vmul.f32 %v195, %v229
  %v239 = vmul.f32 %v198, %v229
  %v240 = vmul.f32 %v203, %v229
  %v241 = vmul.f32 %v206, %v229
  %v242 = vmul.f32 %v211, %v229
  %v243 = vmul.f32 %v214, %v229
  %v244 = vmul.f32 %v219, %v229
  %v245 = vmul.f32 %v222, %v229
  %v246 = vld [vmem:[%s2 + $0x1] sm:$0x1]
  %v247 = vlaneseq
  %v248 = vshrl.u32 %v247, 7
  %v249 = vsub.s32 0, %v248
  %v250 = vrot.slane %v246, %v249
  %v251 = vadd.f32 %v230, %v250
  %v252 = vadd.f32 %v231, %v250
  %v253 = vadd.f32 %v232, %v250
  %v254 = vadd.f32 %v233, %v250
  %v255 = vadd.f32 %v234, %v250
  %v256 = vadd.f32 %v235, %v250
  %v257 = vadd.f32 %v236, %v250
  %v258 = vadd.f32 %v237, %v250
  %v259 = vadd.f32 %v238, %v250
  %v260 = vadd.f32 %v239, %v250
  %v261 = vadd.f32 %v240, %v250
  %v262 = vadd.f32 %v241, %v250
  %v263 = vadd.f32 %v242, %v250
  %v264 = vadd.f32 %v243, %v250
  %v265 = vadd.f32 %v244, %v250
  %v266 = vadd.f32 %v245, %v250
  %v267 = vpack.c.bf16 %v252, %v251
  %v268 = vpack.c.bf16 %v254, %v253
  %v269 = vpack.c.bf16 %v256, %v255
  %v270 = vpack.c.bf16 %v258, %v257
  %v271 = vpack.c.bf16 %v260, %v259
  %v272 = vpack.c.bf16 %v262, %v261
  %v273 = vpack.c.bf16 %v264, %v263
  %v274 = vpack.c.bf16 %v266, %v265
  %v283 = vunpack.c.l.b16 %v267
  %v284 = vunpack.c.h.b16 %v267
  %v285 = vunpack.c.l.b16 %v268
  %v286 = vunpack.c.h.b16 %v268
  %v287 = vunpack.c.l.b16 %v269
  %v288 = vunpack.c.h.b16 %v269
  %v289 = vunpack.c.l.b16 %v270
  %v290 = vunpack.c.h.b16 %v270
  %v291 = vunpack.c.l.b16 %v271
  %v292 = vunpack.c.h.b16 %v271
  %v293 = vunpack.c.l.b16 %v272
  %v294 = vunpack.c.h.b16 %v272
  %v295 = vunpack.c.l.b16 %v273
  %v296 = vunpack.c.h.b16 %v273
  %v297 = vunpack.c.l.b16 %v274
  %v298 = vunpack.c.h.b16 %v274
  %v299 = vpack.c.b16 %v283, %v283
  %v300 = vpack.c.b16 %v284, %v284
  %v301 = vpack.c.b16 %v285, %v285
  %v302 = vpack.c.b16 %v286, %v286
  %v303 = vpack.c.b16 %v287, %v287
  %v304 = vpack.c.b16 %v288, %v288
  %v305 = vpack.c.b16 %v289, %v289
  %v306 = vpack.c.b16 %v290, %v290
  %v307 = vpack.c.b16 %v291, %v291
  %v308 = vpack.c.b16 %v292, %v292
  %v309 = vpack.c.b16 %v293, %v293
  %v310 = vpack.c.b16 %v294, %v294
  %v311 = vpack.c.b16 %v295, %v295
  %v312 = vpack.c.b16 %v296, %v296
  %v313 = vpack.c.b16 %v297, %v297
  %v314 = vpack.c.b16 %v298, %v298
  %vm331 = vcmask 519168
  %332 = vst.msk [vmem:[%s3] sm:$0xf] %vm331, %v299
  %333 = vst.msk [vmem:[%s3 + $0x4] sm:$0xf] %vm331, %v300
  %334 = vst.msk [vmem:[%s3 + $0x8] sm:$0xf] %vm331, %v301
  %335 = vst.msk [vmem:[%s3 + $0xc] sm:$0xf] %vm331, %v302
  %336 = vst.msk [vmem:[%s3 + $0x10] sm:$0xf] %vm331, %v303
  %337 = vst.msk [vmem:[%s3 + $0x14] sm:$0xf] %vm331, %v304
  %338 = vst.msk [vmem:[%s3 + $0x18] sm:$0xf] %vm331, %v305
  %339 = vst.msk [vmem:[%s3 + $0x1c] sm:$0xf] %vm331, %v306
  %340 = vst.msk [vmem:[%s3 + $0x20] sm:$0xf] %vm331, %v307
  %341 = vst.msk [vmem:[%s3 + $0x24] sm:$0xf] %vm331, %v308
  %342 = vst.msk [vmem:[%s3 + $0x28] sm:$0xf] %vm331, %v309
  %343 = vst.msk [vmem:[%s3 + $0x2c] sm:$0xf] %vm331, %v310
  %344 = vst.msk [vmem:[%s3 + $0x30] sm:$0xf] %vm331, %v311
  %345 = vst.msk [vmem:[%s3 + $0x34] sm:$0xf] %vm331, %v312
  %346 = vst.msk [vmem:[%s3 + $0x38] sm:$0xf] %vm331, %v313
  %347 = vst.msk [vmem:[%s3 + $0x3c] sm:$0xf] %vm331, %v314
  // Predicated region
  $region14: #{run_pallas.9} parent=0 // pred_check
    _
  $region15: #{run_pallas.9} parent=0 // pred_check_branch
    %349 = sbr.rel (0) target = $region17
  $region16: #{run_pallas.9} parent=0 // pred_region
    _
  $region17: #{run_pallas.9} parent=0 // pred_fallthru
    _
  // Predicated region
  $region18: #{run_pallas.9} parent=0 // pred_check
    _
  $region19: #{run_pallas.9} parent=0 // pred_check_branch
    %351 = sbr.rel (0) target = $region21
  $region20: #{run_pallas.9} parent=0 // pred_region
    _
  $region21: #{run_pallas.9} parent=0 // pred_fallthru
    _

// kernel: run_pallas.8
$region0: #{run_pallas.8}
  #allocation0 [shape = 'u32[]', space=smem, size = 0x4, offset = 0x4, fixed_abs, tag = 'smem constant byte address 0x4 - core index']
  #allocation1 [shape = 'u32[144,128]{1,0:T(1,128)}', space=vmem, size = 0x12000, scoped, tag = 'internal scratch']
  %s0 = inlined_call_operand.vmem [shape: bf16[8,9,9,16], index: 0, kind: input, shape index: {}]
  %s1 = inlined_call_operand.vmem [shape: bf16[9,16,16], index: 1, kind: input, shape index: {}]
  %s2 = inlined_call_operand.vmem [shape: f32[2,16], index: 2, kind: input, shape index: {}]
  %s3 = inlined_call_operand.vmem [shape: bf16[2,8,8,16], index: 3, kind: output, shape index: {}]
  %s4 = sld [smem:[#allocation0]]
  $region45: #{run_pallas.8} parent=0
    _
  %s6 = ssub.s32 1, %s4
  %s7 = scalar_select 0, %s6, %s4
  loop: start=0, step=1, limit=4
  $region2: #{run_pallas.8} parent=0 // loop_pre_header
    _
  $region3: #{run_pallas.8} parent=0 // loop_header
    %s9 = sphi 0, %s13
    %p10 = scmp.ge.s32.totalorder %s9, 4
    %s16 = sphi 0, %s28
    %s17 = sphi 0, %s24
    %s18 = sphi 0, %s16
    %s19 = sphi 0, %s17
    %s20 = sphi 0, %s18
    %s21 = sphi 0, %s19
    %s31 = sphi 0, %s33
    %s34 = sphi 0, %s31
    %s35 = sphi 0, %s34
    %s51 = sphi 0, %s35
    %s57 = sphi 0, %s59
    %s60 = sphi 0, %s57
    %s61 = sphi 0, %s60
    %s77 = sphi 0, %s61
    %s83 = sphi 0, %s85
    %s86 = sphi 0, %s83
    %s87 = sphi 0, %s86
    %s103 = sphi 0, %s87
    %s111 = sphi 0, %s113
    %s114 = sphi 0, %s111
    %s115 = sphi 0, %s114
    %s131 = sphi 0, %s115
  $region4: #{run_pallas.8} parent=0 // loop_header_branch
    %12 = sbr.rel (%p10) target = $region8
  $region5: #{run_pallas.8} parent=0 // loop_body
    %s14 = ssub.s32 %s9, 1
    %s15 = ssub.s32 %s9, 2
    %s22 = sadd.s32 1, %s17
    %p23 = scmp.ge.s32.totalorder %s22, 1
    %s24 = scalar_select %p23, 0, %s22
    %s25 = sadd.s32 1, %s16
    %s26 = scalar_select %p23, %s25, %s16
    %p27 = scmp.ge.s32.totalorder %s26, 2
    %s28 = scalar_select %p27, 0, %s26
    %s29 = ssub.s32 %s16, %s28
    %p30 = scmp.eq.s32.totalorder %s29, 0
    %s32 = sadd.s32 %s31, 1
    %s33 = scalar_select %p30, %s31, %s32
    %p36 = pneg %p30
    %p37 = scmp.eq.s32.totalorder %s9, 1
    %p38 = por %p36, %p37
    %p39 = scmp.ne.s32.totalorder %s31, %s34
    %p40 = scmp.eq.s32.totalorder %s9, 0
    %p41 = por %p39, %p40
    %p42 = scmp.ne.s32.totalorder %s31, %s34
    %p43 = scmp.eq.s32.totalorder %s14, 1
    %p44 = por %p42, %p43
    %p45 = scmp.ne.s32.totalorder %s34, %s35
    %p46 = scmp.eq.s32.totalorder %s14, 0
    %p47 = por %p45, %p46
    %p48 = scmp.ne.s32.totalorder %s34, %s35
    %p49 = scmp.eq.s32.totalorder %s15, 1
    %p50 = por %p48, %p49
    %p52 = scmp.ne.s32.totalorder %s35, %s51
    %p53 = scmp.eq.s32.totalorder %s15, 0
    %p54 = por %p52, %p53
    %s55 = ssub.s32 %s17, %s24
    %p56 = scmp.eq.s32.totalorder %s55, 0
    %s58 = sadd.s32 %s57, 1
    %s59 = scalar_select %p56, %s57, %s58
    %p62 = pneg %p56
    %p63 = scmp.eq.s32.totalorder %s9, 1
    %p64 = por %p62, %p63
    %p65 = scmp.ne.s32.totalorder %s57, %s60
    %p66 = scmp.eq.s32.totalorder %s9, 0
    %p67 = por %p65, %p66
    %p68 = scmp.ne.s32.totalorder %s57, %s60
    %p69 = scmp.eq.s32.totalorder %s14, 1
    %p70 = por %p68, %p69
    %p71 = scmp.ne.s32.totalorder %s60, %s61
    %p72 = scmp.eq.s32.totalorder %s14, 0
    %p73 = por %p71, %p72
    %p74 = scmp.ne.s32.totalorder %s60, %s61
    %p75 = scmp.eq.s32.totalorder %s15, 1
    %p76 = por %p74, %p75
    %p78 = scmp.ne.s32.totalorder %s61, %s77
    %p79 = scmp.eq.s32.totalorder %s15, 0
    %p80 = por %p78, %p79
    %s81 = ssub.s32 %s17, %s24
    %p82 = scmp.eq.s32.totalorder %s81, 0
    %s84 = sadd.s32 %s83, 1
    %s85 = scalar_select %p82, %s83, %s84
    %p88 = pneg %p82
    %p89 = scmp.eq.s32.totalorder %s9, 1
    %p90 = por %p88, %p89
    %p91 = scmp.ne.s32.totalorder %s83, %s86
    %p92 = scmp.eq.s32.totalorder %s9, 0
    %p93 = por %p91, %p92
    %p94 = scmp.ne.s32.totalorder %s83, %s86
    %p95 = scmp.eq.s32.totalorder %s14, 1
    %p96 = por %p94, %p95
    %p97 = scmp.ne.s32.totalorder %s86, %s87
    %p98 = scmp.eq.s32.totalorder %s14, 0
    %p99 = por %p97, %p98
    %p100 = scmp.ne.s32.totalorder %s86, %s87
    %p101 = scmp.eq.s32.totalorder %s15, 1
    %p102 = por %p100, %p101
    %p104 = scmp.ne.s32.totalorder %s87, %s103
    %p105 = scmp.eq.s32.totalorder %s15, 0
    %p106 = por %p104, %p105
    %s107 = ssub.s32 %s16, %s28
    %s108 = ssub.s32 %s17, %s24
    %s109 = sor.u32 %s107, %s108
    %p110 = scmp.eq.s32.totalorder %s109, 0
    %s112 = sadd.s32 %s111, 1
    %s113 = scalar_select %p110, %s111, %s112
    %p116 = pneg %p110
    %p117 = scmp.eq.s32.totalorder %s9, 1
    %p118 = por %p116, %p117
    %p119 = scmp.ne.s32.totalorder %s111, %s114
    %p120 = scmp.eq.s32.totalorder %s9, 0
    %p121 = por %p119, %p120
    %p122 = scmp.ne.s32.totalorder %s111, %s114
    %p123 = scmp.eq.s32.totalorder %s14, 1
    %p124 = por %p122, %p123
    %p125 = scmp.ne.s32.totalorder %s114, %s115
    %p126 = scmp.eq.s32.totalorder %s14, 0
    %p127 = por %p125, %p126
    %p128 = scmp.ne.s32.totalorder %s114, %s115
    %p129 = scmp.eq.s32.totalorder %s15, 1
    %p130 = por %p128, %p129
    %p132 = scmp.ne.s32.totalorder %s115, %s131
    %p133 = scmp.eq.s32.totalorder %s15, 0
    %p134 = por %p132, %p133
    %p135 = scmp.le.s32.totalorder 1, %s9
    %p136 = scmp.lt.s32.totalorder %s9, 3
    %p137 = pnand %p135, %p136
    %p138 = pneg %p137
    // Predicated region
    $region9: #{run_pallas.8} parent=5 // pred_check
      _
    $region10: #{run_pallas.8} parent=5 // pred_check_branch
      %140 = sbr.rel (%p137) target = $region12
    $region11: #{run_pallas.8} parent=5 // pred_region
      %s141 = ssub.s32 %s9, 1
      // Predicated region
      $region13: #{run_pallas.8} parent=11 // pred_check
        %p142 = pneg %p73
      $region14: #{run_pallas.8} parent=11 // pred_check_branch
        %144 = sbr.rel (%p142) target = $region16
      $region15: #{run_pallas.8} parent=11 // pred_region
        %p145 = scmp.lt.s32.totalorder %s19, 0
        %s146 = scalar_select %p145, %s19, 0
        %s147 = smul.addr %s146, 4
        %s148 = scalar_lea.vmem %s1, %s147
      $region16: #{run_pallas.8} parent=11 // pred_fallthru
        _
      // Predicated region
      $region17: #{run_pallas.8} parent=11 // pred_check
        %p149 = pneg %p99
      $region18: #{run_pallas.8} parent=11 // pred_check_branch
        %151 = sbr.rel (%p149) target = $region20
      $region19: #{run_pallas.8} parent=11 // pred_region
        %p152 = scmp.lt.s32.totalorder %s19, 0
        %s153 = scalar_select %p152, %s19, 0
        %s154 = smul.addr %s153, 2
        %s155 = scalar_lea.vmem %s2, %s154
      $region20: #{run_pallas.8} parent=11 // pred_fallthru
        _
    $region12: #{run_pallas.8} parent=5 // pred_fallthru
      _
    %p156 = scmp.lt.s32.totalorder %s9, 2
    // Predicated region
    $region21: #{run_pallas.8} parent=5 // pred_check
      %p157 = pneg %p156
    $region22: #{run_pallas.8} parent=5 // pred_check_branch
      %159 = sbr.rel (%p157) target = $region24
    $region23: #{run_pallas.8} parent=5 // pred_region
      // Predicated region
      $region25: #{run_pallas.8} parent=23 // pred_check
        %p160 = pneg %p41
      $region26: #{run_pallas.8} parent=23 // pred_check_branch
        %162 = sbr.rel (%p160) target = $region28
      $region27: #{run_pallas.8} parent=23 // pred_region
        %s163 = smul.u32 4, %s16
        %p164 = scmp.lt.s32.totalorder %s163, 7
        %s165 = scalar_select %p164, %s163, 7
        %s166 = smul.addr %s165, 18
        %s167 = smul.addr %s166, 4
        %s168 = scalar_lea.vmem %s0, %s167
        %s169 = smul.u32 4, %s16
      $region28: #{run_pallas.8} parent=23 // pred_fallthru
        _
    $region24: #{run_pallas.8} parent=5 // pred_fallthru
      _
    %p170 = scmp.le.s32.totalorder 1, %s9
    %p171 = scmp.lt.s32.totalorder %s9, 3
    %p172 = pnand %p170, %p171
    %p173 = pneg %p172
    // Predicated region
    $region29: #{run_pallas.8} parent=5 // pred_check
      _
    $region30: #{run_pallas.8} parent=5 // pred_check_branch
      %175 = sbr.rel (%p172) target = $region32
    $region31: #{run_pallas.8} parent=5 // pred_region
      %s176 = ssub.s32 %s9, 1
      %s177 = smul.u32 4, %s18
      %p178 = scmp.lt.s32.totalorder %s177, 7
      %s179 = scalar_select %p178, %s177, 7
      %s180 = smul.addr %s179, 18
      %s181 = smul.addr %s180, 4
      %s182 = scalar_lea.vmem %s0, %s181
      %p183 = pneg %p47
      %p184 = pneg %p44
      %p185 = scmp.lt.s32.totalorder %s19, 0
      %s186 = scalar_select %p185, %s19, 0
      %s187 = smul.addr %s186, 4
      %s188 = scalar_lea.vmem %s1, %s187
      %p189 = pneg %p73
      %p190 = pneg %p70
      %p191 = scmp.lt.s32.totalorder %s19, 0
      %s192 = scalar_select %p191, %s19, 0
      %s193 = smul.addr %s192, 2
      %s194 = scalar_lea.vmem %s2, %s193
      %p195 = pneg %p99
      %p196 = pneg %p96
      %p197 = pneg %p127
      %p198 = pneg %p124
      %p199 = scmp.lt.s32.totalorder %s18, 1
      %s200 = scalar_select %p199, %s18, 1
      %p201 = scmp.lt.s32.totalorder %s19, 0
      %s202 = scalar_select %p201, %s19, 0
      %s203 = smul.addr %s200, 8
      %s204 = sadd.s32 %s202, %s203
      %s205 = smul.addr %s204, 4
      %s206 = scalar_lea.vmem %s3, %s205
      %s207 = smul.u32 4, %s18
      %p208 = scmp.lt.s32.totalorder %s207, 7
      %s209 = scalar_select %p208, %s207, 7
      %s210 = smul.addr %s209, 18
      %s211 = smul.addr %s210, 4
      %s212 = scalar_lea.vmem %s0, %s211
      %s213 = smul.u32 4, %s18
      %p214 = scmp.lt.s32.totalorder %s19, 0
      %s215 = scalar_select %p214, %s19, 0
      %s216 = smul.addr %s215, 4
      %s217 = scalar_lea.vmem %s1, %s216
      %p218 = scmp.lt.s32.totalorder %s19, 0
      %s219 = scalar_select %p218, %s19, 0
      %s220 = smul.addr %s219, 2
      %s221 = scalar_lea.vmem %s2, %s220
      %p222 = scmp.lt.s32.totalorder %s18, 1
      %s223 = scalar_select %p222, %s18, 1
      %p224 = scmp.lt.s32.totalorder %s19, 0
      %s225 = scalar_select %p224, %s19, 0
      %s226 = smul.addr %s223, 8
      %s227 = sadd.s32 %s225, %s226
      %s228 = smul.addr %s227, 4
      %s229 = scalar_lea.vmem %s3, %s228
      %v231 = vld [vmem:[%s212] sm:$0xf]
      %v232 = vld [vmem:[%s212 + $0x8] sm:$0xf]
      %v233 = vld [vmem:[%s212 + $0x10] sm:$0xf]
      %v234 = vld [vmem:[%s212 + $0x18] sm:$0xf]
      %v235 = vld [vmem:[%s212 + $0x20] sm:$0xf]
      %v236 = vld [vmem:[%s212 + $0x28] sm:$0xf]
      %v237 = vld [vmem:[%s212 + $0x30] sm:$0xf]
      %v238 = vld [vmem:[%s212 + $0x38] sm:$0xf]
      %v239 = vld [vmem:[%s217] sm:$0xf]
      %v240 = vld [vmem:[%s217 + $0x4] sm:$0xf]
      %s241 = scalar_lea.vmem %s212, 72
      %v242 = vld [vmem:[%s241] sm:$0xf]
      %v243 = vld [vmem:[%s241 + $0x8] sm:$0xf]
      %v244 = vld [vmem:[%s241 + $0x10] sm:$0xf]
      %v245 = vld [vmem:[%s241 + $0x18] sm:$0xf]
      %v246 = vld [vmem:[%s241 + $0x20] sm:$0xf]
      %v247 = vld [vmem:[%s241 + $0x28] sm:$0xf]
      %v248 = vld [vmem:[%s241 + $0x30] sm:$0xf]
      %v249 = vld [vmem:[%s241 + $0x38] sm:$0xf]
      %s250 = scalar_lea.vmem %s217, 8
      %v251 = vld [vmem:[%s250] sm:$0xf]
      %v252 = vld [vmem:[%s250 + $0x4] sm:$0xf]
      %v261 = vunpack.c.l.b16 %v242
      %v262 = vunpack.c.l.b16 %v243
      %v263 = vunpack.c.l.b16 %v244
      %v264 = vunpack.c.l.b16 %v245
      %v265 = vunpack.c.l.b16 %v246
      %v266 = vunpack.c.l.b16 %v247
      %v267 = vunpack.c.l.b16 %v248
      %v268 = vunpack.c.l.b16 %v249
      %v269 = vpack.c.b16 %v262, %v261
      %v270 = vpack.c.b16 %v264, %v263
      %v271 = vpack.c.b16 %v266, %v265
      %v272 = vpack.c.b16 %v268, %v267
      %v275 = vunpack.c.l.b16 %v251
      %v276 = vunpack.c.l.b16 %v252
      %v277 = vpack.c.b16 %v276, %v275
      %vm279 = vcmask 130048
      %v281 = vsel %vm279, %v269, 0
      %v284 = vsel %vm279, %v270, 0
      %v287 = vsel %vm279, %v271, 0
      %v290 = vsel %vm279, %v272, 0
      %292 = vmatprep.subr.bf16.mxu0 0
      %293 = vmatpush1.bf16.msra.mxu0 %v277
      %294 = vmatprep.subr.bf16.mxu0 0
      %295 = vmatpush1.bf16.msra.mxu0 0
      %296 = vmatprep.subr.bf16.mxu0 0
      %297 = vmatpush1.bf16.msra.mxu0 0
      %298 = vmatprep.subr.bf16.mxu0 0
      %299 = vmatpush1.bf16.msra.mxu0 0
      %300 = vmatprep.subr.bf16.mxu0 0
      %301 = vmatpush1.bf16.msra.mxu0 0
      %302 = vmatprep.subr.bf16.mxu0 0
      %303 = vmatpush1.bf16.msra.mxu0 0
      %304 = vmatprep.subr.bf16.mxu0 0
      %305 = vmatpush1.bf16.msra.mxu0 0
      %306 = vmatprep.subr.bf16.mxu0 0
      %307 = vmatpush1.bf16.msra.mxu0 0
      %308 = vmatprep.subr.bf16.mxu0 0
      %309 = vmatpush1.bf16.msra.mxu0 0
      %310 = vmatprep.subr.bf16.mxu0 0
      %311 = vmatpush1.bf16.msra.mxu0 0
      %312 = vmatprep.subr.bf16.mxu0 0
      %313 = vmatpush1.bf16.msra.mxu0 0
      %314 = vmatprep.subr.bf16.mxu0 0
      %315 = vmatpush1.bf16.msra.mxu0 0
      %316 = vmatprep.subr.bf16.mxu0 0
      %317 = vmatpush1.bf16.msra.mxu0 0
      %318 = vmatprep.subr.bf16.mxu0 0
      %319 = vmatpush1.bf16.msra.mxu0 0
      %320 = vmatprep.subr.bf16.mxu0 0
      %321 = vmatpush1.bf16.msra.mxu0 0
      %322 = vmatprep.subr.bf16.mxu0 0
      %323 = vmatpush1.bf16.msra.mxu0 0
      %324 = vmatprep.mubr.bf16.mxu0 0
      %325 = vmatmul.mubr.bf16.gmra.mrb[0].mxu0 %v281
      %v326 = vpop.f32.mrb[0].mxu0
      %v327 = vadd.f32 0.0, %v326
      %v328 = vpop.f32.mrb[0].mxu0
      %v329 = vpop.f32.mrb[0].mxu0
      %v330 = vadd.f32 0.0, %v329
      %v331 = vpop.f32.mrb[0].mxu0
      %332 = vmatprep.mubr.bf16.mxu0 0
      %333 = vmatmul.mubr.bf16.gmra.mrb[0].mxu0 %v284
      %v334 = vpop.f32.mrb[0].mxu0
      %v335 = vadd.f32 0.0, %v334
      %v336 = vpop.f32.mrb[0].mxu0
      %v337 = vpop.f32.mrb[0].mxu0
      %v338 = vadd.f32 0.0, %v337
      %v339 = vpop.f32.mrb[0].mxu0
      %340 = vmatprep.mubr.bf16.mxu0 0
      %341 = vmatmul.mubr.bf16.gmra.mrb[0].mxu0 %v287
      %v342 = vpop.f32.mrb[0].mxu0
      %v343 = vadd.f32 0.0, %v342
      %v344 = vpop.f32.mrb[0].mxu0
      %v345 = vpop.f32.mrb[0].mxu0
      %v346 = vadd.f32 0.0, %v345
      %v347 = vpop.f32.mrb[0].mxu0
      %348 = vmatprep.mubr.bf16.mxu0 0
      %349 = vmatmul.mubr.bf16.gmra.mrb[0].mxu0 %v290
      %v350 = vpop.f32.mrb[0].mxu0
      %v351 = vadd.f32 0.0, %v350
      %v352 = vpop.f32.mrb[0].mxu0
      %v353 = vpop.f32.mrb[0].mxu0
      %v354 = vadd.f32 0.0, %v353
      %v355 = vpop.f32.mrb[0].mxu0
      %356 = vdwg.mxu0
      %v365 = vunpack.c.l.b16 %v231
      %v366 = vunpack.c.l.b16 %v232
      %v367 = vunpack.c.l.b16 %v233
      %v368 = vunpack.c.l.b16 %v234
      %v369 = vunpack.c.l.b16 %v235
      %v370 = vunpack.c.l.b16 %v236
      %v371 = vunpack.c.l.b16 %v237
      %v372 = vunpack.c.l.b16 %v238
      %v373 = vpack.c.b16 %v366, %v365
      %v374 = vpack.c.b16 %v368, %v367
      %v375 = vpack.c.b16 %v370, %v369
      %v376 = vpack.c.b16 %v372, %v371
      %v379 = vunpack.c.l.b16 %v239
      %v380 = vunpack.c.l.b16 %v240
      %v381 = vpack.c.b16 %v380, %v379
      %v384 = vsel %vm279, %v373, 0
      %v387 = vsel %vm279, %v374, 0
      %v390 = vsel %vm279, %v375, 0
      %v393 = vsel %vm279, %v376, 0
      %395 = vmatprep.subr.bf16.mxu0 0
      %396 = vmatpush1.bf16.msra.mxu0 %v381
      %397 = vmatprep.subr.bf16.mxu0 0
      %398 = vmatpush1.bf16.msra.mxu0 0
      %399 = vmatprep.subr.bf16.mxu0 0
      %400 = vmatpush1.bf16.msra.mxu0 0
      %401 = vmatprep.subr.bf16.mxu0 0
      %402 = vmatpush1.bf16.msra.mxu0 0
      %403 = vmatprep.subr.bf16.mxu0 0
      %404 = vmatpush1.bf16.msra.mxu0 0
      %405 = vmatprep.subr.bf16.mxu0 0
      %406 = vmatpush1.bf16.msra.mxu0 0
      %407 = vmatprep.subr.bf16.mxu0 0
      %408 = vmatpush1.bf16.msra.mxu0 0
      %409 = vmatprep.subr.bf16.mxu0 0
      %410 = vmatpush1.bf16.msra.mxu0 0
      %411 = vmatprep.subr.bf16.mxu0 0
      %412 = vmatpush1.bf16.msra.mxu0 0
      %413 = vmatprep.subr.bf16.mxu0 0
      %414 = vmatpush1.bf16.msra.mxu0 0
      %415 = vmatprep.subr.bf16.mxu0 0
      %416 = vmatpush1.bf16.msra.mxu0 0
      %417 = vmatprep.subr.bf16.mxu0 0
      %418 = vmatpush1.bf16.msra.mxu0 0
      %419 = vmatprep.subr.bf16.mxu0 0
      %420 = vmatpush1.bf16.msra.mxu0 0
      %421 = vmatprep.subr.bf16.mxu0 0
      %422 = vmatpush1.bf16.msra.mxu0 0
      %423 = vmatprep.subr.bf16.mxu0 0
      %424 = vmatpush1.bf16.msra.mxu0 0
      %425 = vmatprep.subr.bf16.mxu0 0
      %426 = vmatpush1.bf16.msra.mxu0 0
      %427 = vmatprep.mubr.bf16.mxu0 0
      %428 = vmatmul.mubr.bf16.gmra.mrb[0].mxu0 %v384
      %v429 = vpop.f32.mrb[0].mxu0
      %v430 = vadd.f32 %v327, %v429
      %v431 = vpop.f32.mrb[0].mxu0
      %v432 = vpop.f32.mrb[0].mxu0
      %v433 = vadd.f32 %v330, %v432
      %v434 = vpop.f32.mrb[0].mxu0
      %435 = vmatprep.mubr.bf16.mxu0 0
      %436 = vmatmul.mubr.bf16.gmra.mrb[0].mxu0 %v387
      %v437 = vpop.f32.mrb[0].mxu0
      %v438 = vadd.f32 %v335, %v437
      %v439 = vpop.f32.mrb[0].mxu0
      %v440 = vpop.f32.mrb[0].mxu0
      %v441 = vadd.f32 %v338, %v440
      %v442 = vpop.f32.mrb[0].mxu0
      %443 = vmatprep.mubr.bf16.mxu0 0
      %444 = vmatmul.mubr.bf16.gmra.mrb[0].mxu0 %v390
      %v445 = vpop.f32.mrb[0].mxu0
      %v446 = vadd.f32 %v343, %v445
      %v447 = vpop.f32.mrb[0].mxu0
      %v448 = vpop.f32.mrb[0].mxu0
      %v449 = vadd.f32 %v346, %v448
      %v450 = vpop.f32.mrb[0].mxu0
      %451 = vmatprep.mubr.bf16.mxu0 0
      %452 = vmatmul.mubr.bf16.gmra.mrb[0].mxu0 %v393
      %v453 = vpop.f32.mrb[0].mxu0
      %v454 = vadd.f32 %v351, %v453
      %v455 = vpop.f32.mrb[0].mxu0
      %v456 = vpop.f32.mrb[0].mxu0
      %v457 = vadd.f32 %v354, %v456
      %v458 = vpop.f32.mrb[0].mxu0
      %459 = vdwg.mxu0
      %v460 = vld [vmem:[%s212] sm:$0xf]
      %v461 = vld [vmem:[%s212 + $0x4] sm:$0x1]
      %v462 = vld [vmem:[%s212 + $0x8] sm:$0xf]
      %v463 = vld [vmem:[%s212 + $0xc] sm:$0x1]
      %v464 = vld [vmem:[%s212 + $0x10] sm:$0xf]
      %v465 = vld [vmem:[%s212 + $0x14] sm:$0x1]
      %v466 = vld [vmem:[%s212 + $0x18] sm:$0xf]
      %v467 = vld [vmem:[%s212 + $0x1c] sm:$0x1]
      %v468 = vld [vmem:[%s212 + $0x20] sm:$0xf]
      %v469 = vld [vmem:[%s212 + $0x24] sm:$0x1]
      %v470 = vld [vmem:[%s212 + $0x28] sm:$0xf]
      %v471 = vld [vmem:[%s212 + $0x2c] sm:$0x1]
      %v472 = vld [vmem:[%s212 + $0x30] sm:$0xf]
      %v473 = vld [vmem:[%s212 + $0x34] sm:$0x1]
      %v474 = vld [vmem:[%s212 + $0x38] sm:$0xf]
      %v475 = vld [vmem:[%s212 + $0x3c] sm:$0x1]
      %vm476 = vsmask.f32 3328
      %vm477 = vsmask.f32 7440
      %vm478 = vmor %vm476, %vm477
      %v480 = vshrl.u32 %v460, 16
      %v482 = vrot.slane %v480, 4
      %v483 = vshll.u32 %v460, 16
      %v485 = vrot.slane %v483, 5
      %v486 = vor.u32 %v482, %v485
      %v487 = vrot.slane %v486, 4
      %v489 = vshll.u32 %v461, 16
      %v491 = vrot.slane %v489, 5
      %v492 = vsel %vm478, %v487, %v491
      %v494 = vshrl.u32 %v462, 16
      %v496 = vrot.slane %v494, 4
      %v497 = vshll.u32 %v462, 16
      %v499 = vrot.slane %v497, 5
      %v500 = vor.u32 %v496, %v499
      %v501 = vrot.slane %v500, 4
      %v503 = vshll.u32 %v463, 16
      %v505 = vrot.slane %v503, 5
      %v506 = vsel %vm478, %v501, %v505
      %v508 = vshrl.u32 %v464, 16
      %v510 = vrot.slane %v508, 4
      %v511 = vshll.u32 %v464, 16
      %v513 = vrot.slane %v511, 5
      %v514 = vor.u32 %v510, %v513
      %v515 = vrot.slane %v514, 4
      %v517 = vshll.u32 %v465, 16
      %v519 = vrot.slane %v517, 5
      %v520 = vsel %vm478, %v515, %v519
      %v522 = vshrl.u32 %v466, 16
      %v524 = vrot.slane %v522, 4
      %v525 = vshll.u32 %v466, 16
      %v527 = vrot.slane %v525, 5
      %v528 = vor.u32 %v524, %v527
      %v529 = vrot.slane %v528, 4
      %v531 = vshll.u32 %v467, 16
      %v533 = vrot.slane %v531, 5
      %v534 = vsel %vm478, %v529, %v533
      %v536 = vshrl.u32 %v468, 16
      %v538 = vrot.slane %v536, 4
      %v539 = vshll.u32 %v468, 16
      %v541 = vrot.slane %v539, 5
      %v542 = vor.u32 %v538, %v541
      %v543 = vrot.slane %v542, 4
      %v545 = vshll.u32 %v469, 16
      %v547 = vrot.slane %v545, 5
      %v548 = vsel %vm478, %v543, %v547
      %v550 = vshrl.u32 %v470, 16
      %v552 = vrot.slane %v550, 4
      %v553 = vshll.u32 %v470, 16
      %v555 = vrot.slane %v553, 5
      %v556 = vor.u32 %v552, %v555
      %v557 = vrot.slane %v556, 4
      %v559 = vshll.u32 %v471, 16
      %v561 = vrot.slane %v559, 5
      %v562 = vsel %vm478, %v557, %v561
      %v564 = vshrl.u32 %v472, 16
      %v566 = vrot.slane %v564, 4
      %v567 = vshll.u32 %v472, 16
      %v569 = vrot.slane %v567, 5
      %v570 = vor.u32 %v566, %v569
      %v571 = vrot.slane %v570, 4
      %v573 = vshll.u32 %v473, 16
      %v575 = vrot.slane %v573, 5
      %v576 = vsel %vm478, %v571, %v575
      %v578 = vshrl.u32 %v474, 16
      %v580 = vrot.slane %v578, 4
      %v581 = vshll.u32 %v474, 16
      %v583 = vrot.slane %v581, 5
      %v584 = vor.u32 %v580, %v583
      %v585 = vrot.slane %v584, 4
      %v587 = vshll.u32 %v475, 16
      %v589 = vrot.slane %v587, 5
      %v590 = vsel %vm478, %v585, %v589
      %s591 = scalar_lea.vmem %s217, 16
      %v592 = vld [vmem:[%s591] sm:$0xf]
      %v593 = vld [vmem:[%s591 + $0x4] sm:$0xf]
      %v594 = vunpack.c.l.b16 %v492
      %v595 = vunpack.c.l.b16 %v506
      %v596 = vunpack.c.l.b16 %v520
      %v597 = vunpack.c.l.b16 %v534
      %v598 = vunpack.c.l.b16 %v548
      %v599 = vunpack.c.l.b16 %v562
      %v600 = vunpack.c.l.b16 %v576
      %v601 = vunpack.c.l.b16 %v590
      %v602 = vpack.c.b16 %v595, %v594
      %v603 = vpack.c.b16 %v597, %v596
      %v604 = vpack.c.b16 %v599, %v598
      %v605 = vpack.c.b16 %v601, %v600
      %v608 = vunpack.c.l.b16 %v592
      %v609 = vunpack.c.l.b16 %v593
      %v610 = vpack.c.b16 %v609, %v608
      %v613 = vsel %vm279, %v602, 0
      %v616 = vsel %vm279, %v603, 0
      %v619 = vsel %vm279, %v604, 0
      %v622 = vsel %vm279, %v605, 0
      %624 = vmatprep.subr.bf16.mxu0 0
      %625 = vmatpush1.bf16.msra.mxu0 %v610
      %626 = vmatprep.subr.bf16.mxu0 0
      %627 = vmatpush1.bf16.msra.mxu0 0
      %628 = vmatprep.subr.bf16.mxu0 0
      %629 = vmatpush1.bf16.msra.mxu0 0
      %630 = vmatprep.subr.bf16.mxu0 0
      %631 = vmatpush1.bf16.msra.mxu0 0
      %632 = vmatprep.subr.bf16.mxu0 0
      %633 = vmatpush1.bf16.msra.mxu0 0
      %634 = vmatprep.subr.bf16.mxu0 0
      %635 = vmatpush1.bf16.msra.mxu0 0
      %636 = vmatprep.subr.bf16.mxu0 0
      %637 = vmatpush1.bf16.msra.mxu0 0
      %638 = vmatprep.subr.bf16.mxu0 0
      %639 = vmatpush1.bf16.msra.mxu0 0
      %640 = vmatprep.subr.bf16.mxu0 0
      %641 = vmatpush1.bf16.msra.mxu0 0
      %642 = vmatprep.subr.bf16.mxu0 0
      %643 = vmatpush1.bf16.msra.mxu0 0
      %644 = vmatprep.subr.bf16.mxu0 0
      %645 = vmatpush1.bf16.msra.mxu0 0
      %646 = vmatprep.subr.bf16.mxu0 0
      %647 = vmatpush1.bf16.msra.mxu0 0
      %648 = vmatprep.subr.bf16.mxu0 0
      %649 = vmatpush1.bf16.msra.mxu0 0
      %650 = vmatprep.subr.bf16.mxu0 0
      %651 = vmatpush1.bf16.msra.mxu0 0
      %652 = vmatprep.subr.bf16.mxu0 0
      %653 = vmatpush1.bf16.msra.mxu0 0
      %654 = vmatprep.subr.bf16.mxu0 0
      %655 = vmatpush1.bf16.msra.mxu0 0
      %656 = vmatprep.mubr.bf16.mxu0 0
      %657 = vmatmul.mubr.bf16.gmra.mrb[0].mxu0 %v613
      %v658 = vpop.f32.mrb[0].mxu0
      %v659 = vadd.f32 0.0, %v658
      %v660 = vpop.f32.mrb[0].mxu0
      %v661 = vpop.f32.mrb[0].mxu0
      %v662 = vadd.f32 0.0, %v661
      %v663 = vpop.f32.mrb[0].mxu0
      %664 = vmatprep.mubr.bf16.mxu0 0
      %665 = vmatmul.mubr.bf16.gmra.mrb[0].mxu0 %v616
      %v666 = vpop.f32.mrb[0].mxu0
      %v667 = vadd.f32 0.0, %v666
      %v668 = vpop.f32.mrb[0].mxu0
      %v669 = vpop.f32.mrb[0].mxu0
      %v670 = vadd.f32 0.0, %v669
      %v671 = vpop.f32.mrb[0].mxu0
      %672 = vmatprep.mubr.bf16.mxu0 0
      %673 = vmatmul.mubr.bf16.gmra.mrb[0].mxu0 %v619
      %v674 = vpop.f32.mrb[0].mxu0
      %v675 = vadd.f32 0.0, %v674
      %v676 = vpop.f32.mrb[0].mxu0
      %v677 = vpop.f32.mrb[0].mxu0
      %v678 = vadd.f32 0.0, %v677
      %v679 = vpop.f32.mrb[0].mxu0
      %680 = vmatprep.mubr.bf16.mxu0 0
      %681 = vmatmul.mubr.bf16.gmra.mrb[0].mxu0 %v622
      %v682 = vpop.f32.mrb[0].mxu0
      %v683 = vadd.f32 0.0, %v682
      %v684 = vpop.f32.mrb[0].mxu0
      %v685 = vpop.f32.mrb[0].mxu0
      %v686 = vadd.f32 0.0, %v685
      %v687 = vpop.f32.mrb[0].mxu0
      %688 = vdwg.mxu0
      %v689 = vadd.f32 %v430, %v659
      %v690 = vadd.f32 %v433, %v662
      %v691 = vadd.f32 %v438, %v667
      %v692 = vadd.f32 %v441, %v670
      %v693 = vadd.f32 %v446, %v675
      %v694 = vadd.f32 %v449, %v678
      %v695 = vadd.f32 %v454, %v683
      %v696 = vadd.f32 %v457, %v686
      %s697 = scalar_lea.vmem %s212, 144
      %v698 = vld [vmem:[%s697] sm:$0xf]
      %v699 = vld [vmem:[%s697 + $0x8] sm:$0xf]
      %v700 = vld [vmem:[%s697 + $0x10] sm:$0xf]
      %v701 = vld [vmem:[%s697 + $0x18] sm:$0xf]
      %v702 = vld [vmem:[%s697 + $0x20] sm:$0xf]
      %v703 = vld [vmem:[%s697 + $0x28] sm:$0xf]
      %v704 = vld [vmem:[%s697 + $0x30] sm:$0xf]
      %v705 = vld [vmem:[%s697 + $0x38] sm:$0xf]
      %s706 = scalar_lea.vmem %s217, 24
      %v707 = vld [vmem:[%s706] sm:$0xf]
      %v708 = vld [vmem:[%s706 + $0x4] sm:$0xf]
      %v717 = vunpack.c.l.b16 %v698
      %v718 = vunpack.c.l.b16 %v699
      %v719 = vunpack.c.l.b16 %v700
      %v720 = vunpack.c.l.b16 %v701
      %v721 = vunpack.c.l.b16 %v702
      %v722 = vunpack.c.l.b16 %v703
      %v723 = vunpack.c.l.b16 %v704
      %v724 = vunpack.c.l.b16 %v705
      %v725 = vpack.c.b16 %v718, %v717
      %v726 = vpack.c.b16 %v720, %v719
      %v727 = vpack.c.b16 %v722, %v721
      %v728 = vpack.c.b16 %v724, %v723
      %v731 = vunpack.c.l.b16 %v707
      %v732 = vunpack.c.l.b16 %v708
      %v733 = vpack.c.b16 %v732, %v731
      %v736 = vsel %vm279, %v725, 0
      %v739 = vsel %vm279, %v726, 0
      %v742 = vsel %vm279, %v727, 0
      %v745 = vsel %vm279, %v728, 0
      %747 = vmatprep.subr.bf16.mxu0 0
      %748 = vmatpush1.bf16.msra.mxu0 %v733
      %749 = vmatprep.subr.bf16.mxu0 0
      %750 = vmatpush1.bf16.msra.mxu0 0
      %751 = vmatprep.subr.bf16.mxu0 0
      %752 = vmatpush1.bf16.msra.mxu0 0
      %753 = vmatprep.subr.bf16.mxu0 0
      %754 = vmatpush1.bf16.msra.mxu0 0
      %755 = vmatprep.subr.bf16.mxu0 0
      %756 = vmatpush1.bf16.msra.mxu0 0
      %757 = vmatprep.subr.bf16.mxu0 0
      %758 = vmatpush1.bf16.msra.mxu0 0
      %759 = vmatprep.subr.bf16.mxu0 0
      %760 = vmatpush1.bf16.msra.mxu0 0
      %761 = vmatprep.subr.bf16.mxu0 0
      %762 = vmatpush1.bf16.msra.mxu0 0
      %763 = vmatprep.subr.bf16.mxu0 0
      %764 = vmatpush1.bf16.msra.mxu0 0
      %765 = vmatprep.subr.bf16.mxu0 0
      %766 = vmatpush1.bf16.msra.mxu0 0
      %767 = vmatprep.subr.bf16.mxu0 0
      %768 = vmatpush1.bf16.msra.mxu0 0
      %769 = vmatprep.subr.bf16.mxu0 0
      %770 = vmatpush1.bf16.msra.mxu0 0
      %771 = vmatprep.subr.bf16.mxu0 0
      %772 = vmatpush1.bf16.msra.mxu0 0
      %773 = vmatprep.subr.bf16.mxu0 0
      %774 = vmatpush1.bf16.msra.mxu0 0
      %775 = vmatprep.subr.bf16.mxu0 0
      %776 = vmatpush1.bf16.msra.mxu0 0
      %777 = vmatprep.subr.bf16.mxu0 0
      %778 = vmatpush1.bf16.msra.mxu0 0
      %779 = vmatprep.mubr.bf16.mxu0 0
      %780 = vmatmul.mubr.bf16.gmra.mrb[0].mxu0 %v736
      %v781 = vpop.f32.mrb[0].mxu0
      %v782 = vadd.f32 0.0, %v781
      %v783 = vpop.f32.mrb[0].mxu0
      %v784 = vpop.f32.mrb[0].mxu0
      %v785 = vadd.f32 0.0, %v784
      %v786 = vpop.f32.mrb[0].mxu0
      %787 = vmatprep.mubr.bf16.mxu0 0
      %788 = vmatmul.mubr.bf16.gmra.mrb[0].mxu0 %v739
      %v789 = vpop.f32.mrb[0].mxu0
      %v790 = vadd.f32 0.0, %v789
      %v791 = vpop.f32.mrb[0].mxu0
      %v792 = vpop.f32.mrb[0].mxu0
      %v793 = vadd.f32 0.0, %v792
      %v794 = vpop.f32.mrb[0].mxu0
      %795 = vmatprep.mubr.bf16.mxu0 0
      %796 = vmatmul.mubr.bf16.gmra.mrb[0].mxu0 %v742
      %v797 = vpop.f32.mrb[0].mxu0
      %v798 = vadd.f32 0.0, %v797
      %v799 = vpop.f32.mrb[0].mxu0
      %v800 = vpop.f32.mrb[0].mxu0
      %v801 = vadd.f32 0.0, %v800
      %v802 = vpop.f32.mrb[0].mxu0
      %803 = vmatprep.mubr.bf16.mxu0 0
      %804 = vmatmul.mubr.bf16.gmra.mrb[0].mxu0 %v745
      %v805 = vpop.f32.mrb[0].mxu0
      %v806 = vadd.f32 0.0, %v805
      %v807 = vpop.f32.mrb[0].mxu0
      %v808 = vpop.f32.mrb[0].mxu0
      %v809 = vadd.f32 0.0, %v808
      %v810 = vpop.f32.mrb[0].mxu0
      %811 = vdwg.mxu0
      %v812 = vadd.f32 %v689, %v782
      %v813 = vadd.f32 %v690, %v785
      %v814 = vadd.f32 %v691, %v790
      %v815 = vadd.f32 %v692, %v793
      %v816 = vadd.f32 %v693, %v798
      %v817 = vadd.f32 %v694, %v801
      %v818 = vadd.f32 %v695, %v806
      %v819 = vadd.f32 %v696, %v809
      %s820 = scalar_lea.vmem %s212, 216
      %v821 = vld [vmem:[%s820] sm:$0xf]
      %v822 = vld [vmem:[%s820 + $0x8] sm:$0xf]
      %v823 = vld [vmem:[%s820 + $0x10] sm:$0xf]
      %v824 = vld [vmem:[%s820 + $0x18] sm:$0xf]
      %v825 = vld [vmem:[%s820 + $0x20] sm:$0xf]
      %v826 = vld [vmem:[%s820 + $0x28] sm:$0xf]
      %v827 = vld [vmem:[%s820 + $0x30] sm:$0xf]
      %v828 = vld [vmem:[%s820 + $0x38] sm:$0xf]
      %s829 = scalar_lea.vmem %s217, 32
      %v830 = vld [vmem:[%s829] sm:$0xf]
      %v831 = vld [vmem:[%s829 + $0x4] sm:$0xf]
      %v840 = vunpack.c.l.b16 %v821
      %v841 = vunpack.c.l.b16 %v822
      %v842 = vunpack.c.l.b16 %v823
      %v843 = vunpack.c.l.b16 %v824
      %v844 = vunpack.c.l.b16 %v825
      %v845 = vunpack.c.l.b16 %v826
      %v846 = vunpack.c.l.b16 %v827
      %v847 = vunpack.c.l.b16 %v828
      %v848 = vpack.c.b16 %v841, %v840
      %v849 = vpack.c.b16 %v843, %v842
      %v850 = vpack.c.b16 %v845, %v844
      %v851 = vpack.c.b16 %v847, %v846
      %v854 = vunpack.c.l.b16 %v830
      %v855 = vunpack.c.l.b16 %v831
      %v856 = vpack.c.b16 %v855, %v854
      %v859 = vsel %vm279, %v848, 0
      %v862 = vsel %vm279, %v849, 0
      %v865 = vsel %vm279, %v850, 0
      %v868 = vsel %vm279, %v851, 0
      %870 = vmatprep.subr.bf16.mxu0 0
      %871 = vmatpush1.bf16.msra.mxu0 %v856
      %872 = vmatprep.subr.bf16.mxu0 0
      %873 = vmatpush1.bf16.msra.mxu0 0
      %874 = vmatprep.subr.bf16.mxu0 0
      %875 = vmatpush1.bf16.msra.mxu0 0
      %876 = vmatprep.subr.bf16.mxu0 0
      %877 = vmatpush1.bf16.msra.mxu0 0
      %878 = vmatprep.subr.bf16.mxu0 0
      %879 = vmatpush1.bf16.msra.mxu0 0
      %880 = vmatprep.subr.bf16.mxu0 0
      %881 = vmatpush1.bf16.msra.mxu0 0
      %882 = vmatprep.subr.bf16.mxu0 0
      %883 = vmatpush1.bf16.msra.mxu0 0
      %884 = vmatprep.subr.bf16.mxu0 0
      %885 = vmatpush1.bf16.msra.mxu0 0
      %886 = vmatprep.subr.bf16.mxu0 0
      %887 = vmatpush1.bf16.msra.mxu0 0
      %888 = vmatprep.subr.bf16.mxu0 0
      %889 = vmatpush1.bf16.msra.mxu0 0
      %890 = vmatprep.subr.bf16.mxu0 0
      %891 = vmatpush1.bf16.msra.mxu0 0
      %892 = vmatprep.subr.bf16.mxu0 0
      %893 = vmatpush1.bf16.msra.mxu0 0
      %894 = vmatprep.subr.bf16.mxu0 0
      %895 = vmatpush1.bf16.msra.mxu0 0
      %896 = vmatprep.subr.bf16.mxu0 0
      %897 = vmatpush1.bf16.msra.mxu0 0
      %898 = vmatprep.subr.bf16.mxu0 0
      %899 = vmatpush1.bf16.msra.mxu0 0
      %900 = vmatprep.subr.bf16.mxu0 0
      %901 = vmatpush1.bf16.msra.mxu0 0
      %902 = vmatprep.mubr.bf16.mxu0 0
      %903 = vmatmul.mubr.bf16.gmra.mrb[0].mxu0 %v859
      %v904 = vpop.f32.mrb[0].mxu0
      %v905 = vadd.f32 0.0, %v904
      %v906 = vpop.f32.mrb[0].mxu0
      %v907 = vpop.f32.mrb[0].mxu0
      %v908 = vadd.f32 0.0, %v907
      %v909 = vpop.f32.mrb[0].mxu0
      %910 = vmatprep.mubr.bf16.mxu0 0
      %911 = vmatmul.mubr.bf16.gmra.mrb[0].mxu0 %v862
      %v912 = vpop.f32.mrb[0].mxu0
      %v913 = vadd.f32 0.0, %v912
      %v914 = vpop.f32.mrb[0].mxu0
      %v915 = vpop.f32.mrb[0].mxu0
      %v916 = vadd.f32 0.0, %v915
      %v917 = vpop.f32.mrb[0].mxu0
      %918 = vmatprep.mubr.bf16.mxu0 0
      %919 = vmatmul.mubr.bf16.gmra.mrb[0].mxu0 %v865
      %v920 = vpop.f32.mrb[0].mxu0
      %v921 = vadd.f32 0.0, %v920
      %v922 = vpop.f32.mrb[0].mxu0
      %v923 = vpop.f32.mrb[0].mxu0
      %v924 = vadd.f32 0.0, %v923
      %v925 = vpop.f32.mrb[0].mxu0
      %926 = vmatprep.mubr.bf16.mxu0 0
      %927 = vmatmul.mubr.bf16.gmra.mrb[0].mxu0 %v868
      %v928 = vpop.f32.mrb[0].mxu0
      %v929 = vadd.f32 0.0, %v928
      %v930 = vpop.f32.mrb[0].mxu0
      %v931 = vpop.f32.mrb[0].mxu0
      %v932 = vadd.f32 0.0, %v931
      %v933 = vpop.f32.mrb[0].mxu0
      %934 = vdwg.mxu0
      %v935 = vadd.f32 %v812, %v905
      %v936 = vadd.f32 %v813, %v908
      %v937 = vadd.f32 %v814, %v913
      %v938 = vadd.f32 %v815, %v916
      %v939 = vadd.f32 %v816, %v921
      %v940 = vadd.f32 %v817, %v924
      %v941 = vadd.f32 %v818, %v929
      %v942 = vadd.f32 %v819, %v932
      %v943 = vld [vmem:[%s697] sm:$0xf]
      %v944 = vld [vmem:[%s697 + $0x4] sm:$0x1]
      %v945 = vld [vmem:[%s697 + $0x8] sm:$0xf]
      %v946 = vld [vmem:[%s697 + $0xc] sm:$0x1]
      %v947 = vld [vmem:[%s697 + $0x10] sm:$0xf]
      %v948 = vld [vmem:[%s697 + $0x14] sm:$0x1]
      %v949 = vld [vmem:[%s697 + $0x18] sm:$0xf]
      %v950 = vld [vmem:[%s697 + $0x1c] sm:$0x1]
      %v951 = vld [vmem:[%s697 + $0x20] sm:$0xf]
      %v952 = vld [vmem:[%s697 + $0x24] sm:$0x1]
      %v953 = vld [vmem:[%s697 + $0x28] sm:$0xf]
      %v954 = vld [vmem:[%s697 + $0x2c] sm:$0x1]
      %v955 = vld [vmem:[%s697 + $0x30] sm:$0xf]
      %v956 = vld [vmem:[%s697 + $0x34] sm:$0x1]
      %v957 = vld [vmem:[%s697 + $0x38] sm:$0xf]
      %v958 = vld [vmem:[%s697 + $0x3c] sm:$0x1]
      %v960 = vshrl.u32 %v943, 16
      %v962 = vrot.slane %v960, 4
      %v963 = vshll.u32 %v943, 16
      %v965 = vrot.slane %v963, 5
      %v966 = vor.u32 %v962, %v965
      %v967 = vrot.slane %v966, 4
      %v969 = vshll.u32 %v944, 16
      %v971 = vrot.slane %v969, 5
      %v972 = vsel %vm478, %v967, %v971
      %v974 = vshrl.u32 %v945, 16
      %v976 = vrot.slane %v974, 4
      %v977 = vshll.u32 %v945, 16
      %v979 = vrot.slane %v977, 5
      %v980 = vor.u32 %v976, %v979
      %v981 = vrot.slane %v980, 4
      %v983 = vshll.u32 %v946, 16
      %v985 = vrot.slane %v983, 5
      %v986 = vsel %vm478, %v981, %v985
      %v988 = vshrl.u32 %v947, 16
      %v990 = vrot.slane %v988, 4
      %v991 = vshll.u32 %v947, 16
      %v993 = vrot.slane %v991, 5
      %v994 = vor.u32 %v990, %v993
      %v995 = vrot.slane %v994, 4
      %v997 = vshll.u32 %v948, 16
      %v999 = vrot.slane %v997, 5
      %v1000 = vsel %vm478, %v995, %v999
      %v1002 = vshrl.u32 %v949, 16
      %v1004 = vrot.slane %v1002, 4
      %v1005 = vshll.u32 %v949, 16
      %v1007 = vrot.slane %v1005, 5
      %v1008 = vor.u32 %v1004, %v1007
      %v1009 = vrot.slane %v1008, 4
      %v1011 = vshll.u32 %v950, 16
      %v1013 = vrot.slane %v1011, 5
      %v1014 = vsel %vm478, %v1009, %v1013
      %v1016 = vshrl.u32 %v951, 16
      %v1018 = vrot.slane %v1016, 4
      %v1019 = vshll.u32 %v951, 16
      %v1021 = vrot.slane %v1019, 5
      %v1022 = vor.u32 %v1018, %v1021
      %v1023 = vrot.slane %v1022, 4
      %v1025 = vshll.u32 %v952, 16
      %v1027 = vrot.slane %v1025, 5
      %v1028 = vsel %vm478, %v1023, %v1027
      %v1030 = vshrl.u32 %v953, 16
      %v1032 = vrot.slane %v1030, 4
      %v1033 = vshll.u32 %v953, 16
      %v1035 = vrot.slane %v1033, 5
      %v1036 = vor.u32 %v1032, %v1035
      %v1037 = vrot.slane %v1036, 4
      %v1039 = vshll.u32 %v954, 16
      %v1041 = vrot.slane %v1039, 5
      %v1042 = vsel %vm478, %v1037, %v1041
      %v1044 = vshrl.u32 %v955, 16
      %v1046 = vrot.slane %v1044, 4
      %v1047 = vshll.u32 %v955, 16
      %v1049 = vrot.slane %v1047, 5
      %v1050 = vor.u32 %v1046, %v1049
      %v1051 = vrot.slane %v1050, 4
      %v1053 = vshll.u32 %v956, 16
      %v1055 = vrot.slane %v1053, 5
      %v1056 = vsel %vm478, %v1051, %v1055
      %v1058 = vshrl.u32 %v957, 16
      %v1060 = vrot.slane %v1058, 4
      %v1061 = vshll.u32 %v957, 16
      %v1063 = vrot.slane %v1061, 5
      %v1064 = vor.u32 %v1060, %v1063
      %v1065 = vrot.slane %v1064, 4
      %v1067 = vshll.u32 %v958, 16
      %v1069 = vrot.slane %v1067, 5
      %v1070 = vsel %vm478, %v1065, %v1069
      %s1071 = scalar_lea.vmem %s217, 40
      %v1072 = vld [vmem:[%s1071] sm:$0xf]
      %v1073 = vld [vmem:[%s1071 + $0x4] sm:$0xf]
      %v1074 = vunpack.c.l.b16 %v972
      %v1075 = vunpack.c.l.b16 %v986
      %v1076 = vunpack.c.l.b16 %v1000
      %v1077 = vunpack.c.l.b16 %v1014
      %v1078 = vunpack.c.l.b16 %v1028
      %v1079 = vunpack.c.l.b16 %v1042
      %v1080 = vunpack.c.l.b16 %v1056
      %v1081 = vunpack.c.l.b16 %v1070
      %v1082 = vpack.c.b16 %v1075, %v1074
      %v1083 = vpack.c.b16 %v1077, %v1076
      %v1084 = vpack.c.b16 %v1079, %v1078
      %v1085 = vpack.c.b16 %v1081, %v1080
      %v1088 = vunpack.c.l.b16 %v1072
      %v1089 = vunpack.c.l.b16 %v1073
      %v1090 = vpack.c.b16 %v1089, %v1088
      %v1093 = vsel %vm279, %v1082, 0
      %v1096 = vsel %vm279, %v1083, 0
      %v1099 = vsel %vm279, %v1084, 0
      %v1102 = vsel %vm279, %v1085, 0
      %1104 = vmatprep.subr.bf16.mxu0 0
      %1105 = vmatpush1.bf16.msra.mxu0 %v1090
      %1106 = vmatprep.subr.bf16.mxu0 0
      %1107 = vmatpush1.bf16.msra.mxu0 0
      %1108 = vmatprep.subr.bf16.mxu0 0
      %1109 = vmatpush1.bf16.msra.mxu0 0
      %1110 = vmatprep.subr.bf16.mxu0 0
      %1111 = vmatpush1.bf16.msra.mxu0 0
      %1112 = vmatprep.subr.bf16.mxu0 0
      %1113 = vmatpush1.bf16.msra.mxu0 0
      %1114 = vmatprep.subr.bf16.mxu0 0
      %1115 = vmatpush1.bf16.msra.mxu0 0
      %1116 = vmatprep.subr.bf16.mxu0 0
      %1117 = vmatpush1.bf16.msra.mxu0 0
      %1118 = vmatprep.subr.bf16.mxu0 0
      %1119 = vmatpush1.bf16.msra.mxu0 0
      %1120 = vmatprep.subr.bf16.mxu0 0
      %1121 = vmatpush1.bf16.msra.mxu0 0
      %1122 = vmatprep.subr.bf16.mxu0 0
      %1123 = vmatpush1.bf16.msra.mxu0 0
      %1124 = vmatprep.subr.bf16.mxu0 0
      %1125 = vmatpush1.bf16.msra.mxu0 0
      %1126 = vmatprep.subr.bf16.mxu0 0
      %1127 = vmatpush1.bf16.msra.mxu0 0
      %1128 = vmatprep.subr.bf16.mxu0 0
      %1129 = vmatpush1.bf16.msra.mxu0 0
      %1130 = vmatprep.subr.bf16.mxu0 0
      %1131 = vmatpush1.bf16.msra.mxu0 0
      %1132 = vmatprep.subr.bf16.mxu0 0
      %1133 = vmatpush1.bf16.msra.mxu0 0
      %1134 = vmatprep.subr.bf16.mxu0 0
      %1135 = vmatpush1.bf16.msra.mxu0 0
      %1136 = vmatprep.mubr.bf16.mxu0 0
      %1137 = vmatmul.mubr.bf16.gmra.mrb[0].mxu0 %v1093
      %v1138 = vpop.f32.mrb[0].mxu0
      %v1139 = vadd.f32 0.0, %v1138
      %v1140 = vpop.f32.mrb[0].mxu0
      %v1141 = vpop.f32.mrb[0].mxu0
      %v1142 = vadd.f32 0.0, %v1141
      %v1143 = vpop.f32.mrb[0].mxu0
      %1144 = vmatprep.mubr.bf16.mxu0 0
      %1145 = vmatmul.mubr.bf16.gmra.mrb[0].mxu0 %v1096
      %v1146 = vpop.f32.mrb[0].mxu0
      %v1147 = vadd.f32 0.0, %v1146
      %v1148 = vpop.f32.mrb[0].mxu0
      %v1149 = vpop.f32.mrb[0].mxu0
      %v1150 = vadd.f32 0.0, %v1149
      %v1151 = vpop.f32.mrb[0].mxu0
      %1152 = vmatprep.mubr.bf16.mxu0 0
      %1153 = vmatmul.mubr.bf16.gmra.mrb[0].mxu0 %v1099
      %v1154 = vpop.f32.mrb[0].mxu0
      %v1155 = vadd.f32 0.0, %v1154
      %v1156 = vpop.f32.mrb[0].mxu0
      %v1157 = vpop.f32.mrb[0].mxu0
      %v1158 = vadd.f32 0.0, %v1157
      %v1159 = vpop.f32.mrb[0].mxu0
      %1160 = vmatprep.mubr.bf16.mxu0 0
      %1161 = vmatmul.mubr.bf16.gmra.mrb[0].mxu0 %v1102
      %v1162 = vpop.f32.mrb[0].mxu0
      %v1163 = vadd.f32 0.0, %v1162
      %v1164 = vpop.f32.mrb[0].mxu0
      %v1165 = vpop.f32.mrb[0].mxu0
      %v1166 = vadd.f32 0.0, %v1165
      %v1167 = vpop.f32.mrb[0].mxu0
      %1168 = vdwg.mxu0
      %v1169 = vadd.f32 %v935, %v1139
      %v1170 = vadd.f32 %v936, %v1142
      %v1171 = vadd.f32 %v937, %v1147
      %v1172 = vadd.f32 %v938, %v1150
      %v1173 = vadd.f32 %v939, %v1155
      %v1174 = vadd.f32 %v940, %v1158
      %v1175 = vadd.f32 %v941, %v1163
      %v1176 = vadd.f32 %v942, %v1166
      %s1177 = scalar_lea.vmem %s212, 8
      %v1178 = vld [vmem:[%s1177] sm:$0xf]
      %v1179 = vld [vmem:[%s1177 + $0x8] sm:$0xf]
      %v1180 = vld [vmem:[%s1177 + $0x10] sm:$0xf]
      %v1181 = vld [vmem:[%s1177 + $0x18] sm:$0xf]
      %v1182 = vld [vmem:[%s1177 + $0x20] sm:$0xf]
      %v1183 = vld [vmem:[%s1177 + $0x28] sm:$0xf]
      %v1184 = vld [vmem:[%s1177 + $0x30] sm:$0xf]
      %v1185 = vld [vmem:[%s1177 + $0x38] sm:$0xf]
      %s1186 = scalar_lea.vmem %s217, 48
      %v1187 = vld [vmem:[%s1186] sm:$0xf]
      %v1188 = vld [vmem:[%s1186 + $0x4] sm:$0xf]
      %v1197 = vunpack.c.l.b16 %v1178
      %v1198 = vunpack.c.l.b16 %v1179
      %v1199 = vunpack.c.l.b16 %v1180
      %v1200 = vunpack.c.l.b16 %v1181
      %v1201 = vunpack.c.l.b16 %v1182
      %v1202 = vunpack.c.l.b16 %v1183
      %v1203 = vunpack.c.l.b16 %v1184
      %v1204 = vunpack.c.l.b16 %v1185
      %v1205 = vpack.c.b16 %v1198, %v1197
      %v1206 = vpack.c.b16 %v1200, %v1199
      %v1207 = vpack.c.b16 %v1202, %v1201
      %v1208 = vpack.c.b16 %v1204, %v1203
      %v1211 = vunpack.c.l.b16 %v1187
      %v1212 = vunpack.c.l.b16 %v1188
      %v1213 = vpack.c.b16 %v1212, %v1211
      %v1216 = vsel %vm279, %v1205, 0
      %v1219 = vsel %vm279, %v1206, 0
      %v1222 = vsel %vm279, %v1207, 0
      %v1225 = vsel %vm279, %v1208, 0
      %1227 = vmatprep.subr.bf16.mxu0 0
      %1228 = vmatpush1.bf16.msra.mxu0 %v1213
      %1229 = vmatprep.subr.bf16.mxu0 0
      %1230 = vmatpush1.bf16.msra.mxu0 0
      %1231 = vmatprep.subr.bf16.mxu0 0
      %1232 = vmatpush1.bf16.msra.mxu0 0
      %1233 = vmatprep.subr.bf16.mxu0 0
      %1234 = vmatpush1.bf16.msra.mxu0 0
      %1235 = vmatprep.subr.bf16.mxu0 0
      %1236 = vmatpush1.bf16.msra.mxu0 0
      %1237 = vmatprep.subr.bf16.mxu0 0
      %1238 = vmatpush1.bf16.msra.mxu0 0
      %1239 = vmatprep.subr.bf16.mxu0 0
      %1240 = vmatpush1.bf16.msra.mxu0 0
      %1241 = vmatprep.subr.bf16.mxu0 0
      %1242 = vmatpush1.bf16.msra.mxu0 0
      %1243 = vmatprep.subr.bf16.mxu0 0
      %1244 = vmatpush1.bf16.msra.mxu0 0
      %1245 = vmatprep.subr.bf16.mxu0 0
      %1246 = vmatpush1.bf16.msra.mxu0 0
      %1247 = vmatprep.subr.bf16.mxu0 0
      %1248 = vmatpush1.bf16.msra.mxu0 0
      %1249 = vmatprep.subr.bf16.mxu0 0
      %1250 = vmatpush1.bf16.msra.mxu0 0
      %1251 = vmatprep.subr.bf16.mxu0 0
      %1252 = vmatpush1.bf16.msra.mxu0 0
      %1253 = vmatprep.subr.bf16.mxu0 0
      %1254 = vmatpush1.bf16.msra.mxu0 0
      %1255 = vmatprep.subr.bf16.mxu0 0
      %1256 = vmatpush1.bf16.msra.mxu0 0
      %1257 = vmatprep.subr.bf16.mxu0 0
      %1258 = vmatpush1.bf16.msra.mxu0 0
      %1259 = vmatprep.mubr.bf16.mxu0 0
      %1260 = vmatmul.mubr.bf16.gmra.mrb[0].mxu0 %v1216
      %v1261 = vpop.f32.mrb[0].mxu0
      %v1262 = vadd.f32 0.0, %v1261
      %v1263 = vpop.f32.mrb[0].mxu0
      %v1264 = vpop.f32.mrb[0].mxu0
      %v1265 = vadd.f32 0.0, %v1264
      %v1266 = vpop.f32.mrb[0].mxu0
      %1267 = vmatprep.mubr.bf16.mxu0 0
      %1268 = vmatmul.mubr.bf16.gmra.mrb[0].mxu0 %v1219
      %v1269 = vpop.f32.mrb[0].mxu0
      %v1270 = vadd.f32 0.0, %v1269
      %v1271 = vpop.f32.mrb[0].mxu0
      %v1272 = vpop.f32.mrb[0].mxu0
      %v1273 = vadd.f32 0.0, %v1272
      %v1274 = vpop.f32.mrb[0].mxu0
      %1275 = vmatprep.mubr.bf16.mxu0 0
      %1276 = vmatmul.mubr.bf16.gmra.mrb[0].mxu0 %v1222
      %v1277 = vpop.f32.mrb[0].mxu0
      %v1278 = vadd.f32 0.0, %v1277
      %v1279 = vpop.f32.mrb[0].mxu0
      %v1280 = vpop.f32.mrb[0].mxu0
      %v1281 = vadd.f32 0.0, %v1280
      %v1282 = vpop.f32.mrb[0].mxu0
      %1283 = vmatprep.mubr.bf16.mxu0 0
      %1284 = vmatmul.mubr.bf16.gmra.mrb[0].mxu0 %v1225
      %v1285 = vpop.f32.mrb[0].mxu0
      %v1286 = vadd.f32 0.0, %v1285
      %v1287 = vpop.f32.mrb[0].mxu0
      %v1288 = vpop.f32.mrb[0].mxu0
      %v1289 = vadd.f32 0.0, %v1288
      %v1290 = vpop.f32.mrb[0].mxu0
      %1291 = vdwg.mxu0
      %v1292 = vadd.f32 %v1169, %v1262
      %v1293 = vadd.f32 %v1170, %v1265
      %v1294 = vadd.f32 %v1171, %v1270
      %v1295 = vadd.f32 %v1172, %v1273
      %v1296 = vadd.f32 %v1173, %v1278
      %v1297 = vadd.f32 %v1174, %v1281
      %v1298 = vadd.f32 %v1175, %v1286
      %v1299 = vadd.f32 %v1176, %v1289
      %s1300 = scalar_lea.vmem %s212, 80
      %v1301 = vld [vmem:[%s1300] sm:$0xf]
      %v1302 = vld [vmem:[%s1300 + $0x8] sm:$0xf]
      %v1303 = vld [vmem:[%s1300 + $0x10] sm:$0xf]
      %v1304 = vld [vmem:[%s1300 + $0x18] sm:$0xf]
      %v1305 = vld [vmem:[%s1300 + $0x20] sm:$0xf]
      %v1306 = vld [vmem:[%s1300 + $0x28] sm:$0xf]
      %v1307 = vld [vmem:[%s1300 + $0x30] sm:$0xf]
      %v1308 = vld [vmem:[%s1300 + $0x38] sm:$0xf]
      %s1309 = scalar_lea.vmem %s217, 56
      %v1310 = vld [vmem:[%s1309] sm:$0xf]
      %v1311 = vld [vmem:[%s1309 + $0x4] sm:$0xf]
      %v1320 = vunpack.c.l.b16 %v1301
      %v1321 = vunpack.c.l.b16 %v1302
      %v1322 = vunpack.c.l.b16 %v1303
      %v1323 = vunpack.c.l.b16 %v1304
      %v1324 = vunpack.c.l.b16 %v1305
      %v1325 = vunpack.c.l.b16 %v1306
      %v1326 = vunpack.c.l.b16 %v1307
      %v1327 = vunpack.c.l.b16 %v1308
      %v1328 = vpack.c.b16 %v1321, %v1320
      %v1329 = vpack.c.b16 %v1323, %v1322
      %v1330 = vpack.c.b16 %v1325, %v1324
      %v1331 = vpack.c.b16 %v1327, %v1326
      %v1334 = vunpack.c.l.b16 %v1310
      %v1335 = vunpack.c.l.b16 %v1311
      %v1336 = vpack.c.b16 %v1335, %v1334
      %v1339 = vsel %vm279, %v1328, 0
      %v1342 = vsel %vm279, %v1329, 0
      %v1345 = vsel %vm279, %v1330, 0
      %v1348 = vsel %vm279, %v1331, 0
      %1350 = vmatprep.subr.bf16.mxu0 0
      %1351 = vmatpush1.bf16.msra.mxu0 %v1336
      %1352 = vmatprep.subr.bf16.mxu0 0
      %1353 = vmatpush1.bf16.msra.mxu0 0
      %1354 = vmatprep.subr.bf16.mxu0 0
      %1355 = vmatpush1.bf16.msra.mxu0 0
      %1356 = vmatprep.subr.bf16.mxu0 0
      %1357 = vmatpush1.bf16.msra.mxu0 0
      %1358 = vmatprep.subr.bf16.mxu0 0
      %1359 = vmatpush1.bf16.msra.mxu0 0
      %1360 = vmatprep.subr.bf16.mxu0 0
      %1361 = vmatpush1.bf16.msra.mxu0 0
      %1362 = vmatprep.subr.bf16.mxu0 0
      %1363 = vmatpush1.bf16.msra.mxu0 0
      %1364 = vmatprep.subr.bf16.mxu0 0
      %1365 = vmatpush1.bf16.msra.mxu0 0
      %1366 = vmatprep.subr.bf16.mxu0 0
      %1367 = vmatpush1.bf16.msra.mxu0 0
      %1368 = vmatprep.subr.bf16.mxu0 0
      %1369 = vmatpush1.bf16.msra.mxu0 0
      %1370 = vmatprep.subr.bf16.mxu0 0
      %1371 = vmatpush1.bf16.msra.mxu0 0
      %1372 = vmatprep.subr.bf16.mxu0 0
      %1373 = vmatpush1.bf16.msra.mxu0 0
      %1374 = vmatprep.subr.bf16.mxu0 0
      %1375 = vmatpush1.bf16.msra.mxu0 0
      %1376 = vmatprep.subr.bf16.mxu0 0
      %1377 = vmatpush1.bf16.msra.mxu0 0
      %1378 = vmatprep.subr.bf16.mxu0 0
      %1379 = vmatpush1.bf16.msra.mxu0 0
      %1380 = vmatprep.subr.bf16.mxu0 0
      %1381 = vmatpush1.bf16.msra.mxu0 0
      %1382 = vmatprep.mubr.bf16.mxu0 0
      %1383 = vmatmul.mubr.bf16.gmra.mrb[0].mxu0 %v1339
      %v1384 = vpop.f32.mrb[0].mxu0
      %v1385 = vadd.f32 0.0, %v1384
      %v1386 = vpop.f32.mrb[0].mxu0
      %v1387 = vpop.f32.mrb[0].mxu0
      %v1388 = vadd.f32 0.0, %v1387
      %v1389 = vpop.f32.mrb[0].mxu0
      %1390 = vmatprep.mubr.bf16.mxu0 0
      %1391 = vmatmul.mubr.bf16.gmra.mrb[0].mxu0 %v1342
      %v1392 = vpop.f32.mrb[0].mxu0
      %v1393 = vadd.f32 0.0, %v1392
      %v1394 = vpop.f32.mrb[0].mxu0
      %v1395 = vpop.f32.mrb[0].mxu0
      %v1396 = vadd.f32 0.0, %v1395
      %v1397 = vpop.f32.mrb[0].mxu0
      %1398 = vmatprep.mubr.bf16.mxu0 0
      %1399 = vmatmul.mubr.bf16.gmra.mrb[0].mxu0 %v1345
      %v1400 = vpop.f32.mrb[0].mxu0
      %v1401 = vadd.f32 0.0, %v1400
      %v1402 = vpop.f32.mrb[0].mxu0
      %v1403 = vpop.f32.mrb[0].mxu0
      %v1404 = vadd.f32 0.0, %v1403
      %v1405 = vpop.f32.mrb[0].mxu0
      %1406 = vmatprep.mubr.bf16.mxu0 0
      %1407 = vmatmul.mubr.bf16.gmra.mrb[0].mxu0 %v1348
      %v1408 = vpop.f32.mrb[0].mxu0
      %v1409 = vadd.f32 0.0, %v1408
      %v1410 = vpop.f32.mrb[0].mxu0
      %v1411 = vpop.f32.mrb[0].mxu0
      %v1412 = vadd.f32 0.0, %v1411
      %v1413 = vpop.f32.mrb[0].mxu0
      %1414 = vdwg.mxu0
      %v1415 = vadd.f32 %v1292, %v1385
      %v1416 = vadd.f32 %v1293, %v1388
      %v1417 = vadd.f32 %v1294, %v1393
      %v1418 = vadd.f32 %v1295, %v1396
      %v1419 = vadd.f32 %v1296, %v1401
      %v1420 = vadd.f32 %v1297, %v1404
      %v1421 = vadd.f32 %v1298, %v1409
      %v1422 = vadd.f32 %v1299, %v1412
      %v1423 = vld [vmem:[%s1177] sm:$0xf]
      %v1424 = vld [vmem:[%s1177 + $0x4] sm:$0x1]
      %v1425 = vld [vmem:[%s1177 + $0x8] sm:$0xf]
      %v1426 = vld [vmem:[%s1177 + $0xc] sm:$0x1]
      %v1427 = vld [vmem:[%s1177 + $0x10] sm:$0xf]
      %v1428 = vld [vmem:[%s1177 + $0x14] sm:$0x1]
      %v1429 = vld [vmem:[%s1177 + $0x18] sm:$0xf]
      %v1430 = vld [vmem:[%s1177 + $0x1c] sm:$0x1]
      %v1431 = vld [vmem:[%s1177 + $0x20] sm:$0xf]
      %v1432 = vld [vmem:[%s1177 + $0x24] sm:$0x1]
      %v1433 = vld [vmem:[%s1177 + $0x28] sm:$0xf]
      %v1434 = vld [vmem:[%s1177 + $0x2c] sm:$0x1]
      %v1435 = vld [vmem:[%s1177 + $0x30] sm:$0xf]
      %v1436 = vld [vmem:[%s1177 + $0x34] sm:$0x1]
      %v1437 = vld [vmem:[%s1177 + $0x38] sm:$0xf]
      %v1438 = vld [vmem:[%s1177 + $0x3c] sm:$0x1]
      %v1440 = vshrl.u32 %v1423, 16
      %v1442 = vrot.slane %v1440, 4
      %v1443 = vshll.u32 %v1423, 16
      %v1445 = vrot.slane %v1443, 5
      %v1446 = vor.u32 %v1442, %v1445
      %v1447 = vrot.slane %v1446, 4
      %v1449 = vshll.u32 %v1424, 16
      %v1451 = vrot.slane %v1449, 5
      %v1452 = vsel %vm478, %v1447, %v1451
      %v1454 = vshrl.u32 %v1425, 16
      %v1456 = vrot.slane %v1454, 4
      %v1457 = vshll.u32 %v1425, 16
      %v1459 = vrot.slane %v1457, 5
      %v1460 = vor.u32 %v1456, %v1459
      %v1461 = vrot.slane %v1460, 4
      %v1463 = vshll.u32 %v1426, 16
      %v1465 = vrot.slane %v1463, 5
      %v1466 = vsel %vm478, %v1461, %v1465
      %v1468 = vshrl.u32 %v1427, 16
      %v1470 = vrot.slane %v1468, 4
      %v1471 = vshll.u32 %v1427, 16
      %v1473 = vrot.slane %v1471, 5
      %v1474 = vor.u32 %v1470, %v1473
      %v1475 = vrot.slane %v1474, 4
      %v1477 = vshll.u32 %v1428, 16
      %v1479 = vrot.slane %v1477, 5
      %v1480 = vsel %vm478, %v1475, %v1479
      %v1482 = vshrl.u32 %v1429, 16
      %v1484 = vrot.slane %v1482, 4
      %v1485 = vshll.u32 %v1429, 16
      %v1487 = vrot.slane %v1485, 5
      %v1488 = vor.u32 %v1484, %v1487
      %v1489 = vrot.slane %v1488, 4
      %v1491 = vshll.u32 %v1430, 16
      %v1493 = vrot.slane %v1491, 5
      %v1494 = vsel %vm478, %v1489, %v1493
      %v1496 = vshrl.u32 %v1431, 16
      %v1498 = vrot.slane %v1496, 4
      %v1499 = vshll.u32 %v1431, 16
      %v1501 = vrot.slane %v1499, 5
      %v1502 = vor.u32 %v1498, %v1501
      %v1503 = vrot.slane %v1502, 4
      %v1505 = vshll.u32 %v1432, 16
      %v1507 = vrot.slane %v1505, 5
      %v1508 = vsel %vm478, %v1503, %v1507
      %v1510 = vshrl.u32 %v1433, 16
      %v1512 = vrot.slane %v1510, 4
      %v1513 = vshll.u32 %v1433, 16
      %v1515 = vrot.slane %v1513, 5
      %v1516 = vor.u32 %v1512, %v1515
      %v1517 = vrot.slane %v1516, 4
      %v1519 = vshll.u32 %v1434, 16
      %v1521 = vrot.slane %v1519, 5
      %v1522 = vsel %vm478, %v1517, %v1521
      %v1524 = vshrl.u32 %v1435, 16
      %v1526 = vrot.slane %v1524, 4
      %v1527 = vshll.u32 %v1435, 16
      %v1529 = vrot.slane %v1527, 5
      %v1530 = vor.u32 %v1526, %v1529
      %v1531 = vrot.slane %v1530, 4
      %v1533 = vshll.u32 %v1436, 16
      %v1535 = vrot.slane %v1533, 5
      %v1536 = vsel %vm478, %v1531, %v1535
      %v1538 = vshrl.u32 %v1437, 16
      %v1540 = vrot.slane %v1538, 4
      %v1541 = vshll.u32 %v1437, 16
      %v1543 = vrot.slane %v1541, 5
      %v1544 = vor.u32 %v1540, %v1543
      %v1545 = vrot.slane %v1544, 4
      %v1547 = vshll.u32 %v1438, 16
      %v1549 = vrot.slane %v1547, 5
      %v1550 = vsel %vm478, %v1545, %v1549
      %s1551 = scalar_lea.vmem %s217, 64
      %v1552 = vld [vmem:[%s1551] sm:$0xf]
      %v1553 = vld [vmem:[%s1551 + $0x4] sm:$0xf]
      %v1554 = vunpack.c.l.b16 %v1452
      %v1555 = vunpack.c.l.b16 %v1466
      %v1556 = vunpack.c.l.b16 %v1480
      %v1557 = vunpack.c.l.b16 %v1494
      %v1558 = vunpack.c.l.b16 %v1508
      %v1559 = vunpack.c.l.b16 %v1522
      %v1560 = vunpack.c.l.b16 %v1536
      %v1561 = vunpack.c.l.b16 %v1550
      %v1562 = vpack.c.b16 %v1555, %v1554
      %v1563 = vpack.c.b16 %v1557, %v1556
      %v1564 = vpack.c.b16 %v1559, %v1558
      %v1565 = vpack.c.b16 %v1561, %v1560
      %v1568 = vunpack.c.l.b16 %v1552
      %v1569 = vunpack.c.l.b16 %v1553
      %v1570 = vpack.c.b16 %v1569, %v1568
      %v1573 = vsel %vm279, %v1562, 0
      %v1576 = vsel %vm279, %v1563, 0
      %v1579 = vsel %vm279, %v1564, 0
      %v1582 = vsel %vm279, %v1565, 0
      %1584 = vmatprep.subr.bf16.mxu0 0
      %1585 = vmatpush1.bf16.msra.mxu0 %v1570
      %1586 = vmatprep.subr.bf16.mxu0 0
      %1587 = vmatpush1.bf16.msra.mxu0 0
      %1588 = vmatprep.subr.bf16.mxu0 0
      %1589 = vmatpush1.bf16.msra.mxu0 0
      %1590 = vmatprep.subr.bf16.mxu0 0
      %1591 = vmatpush1.bf16.msra.mxu0 0
      %1592 = vmatprep.subr.bf16.mxu0 0
      %1593 = vmatpush1.bf16.msra.mxu0 0
      %1594 = vmatprep.subr.bf16.mxu0 0
      %1595 = vmatpush1.bf16.msra.mxu0 0
      %1596 = vmatprep.subr.bf16.mxu0 0
      %1597 = vmatpush1.bf16.msra.mxu0 0
      %1598 = vmatprep.subr.bf16.mxu0 0
      %1599 = vmatpush1.bf16.msra.mxu0 0
      %1600 = vmatprep.subr.bf16.mxu0 0
      %1601 = vmatpush1.bf16.msra.mxu0 0
      %1602 = vmatprep.subr.bf16.mxu0 0
      %1603 = vmatpush1.bf16.msra.mxu0 0
      %1604 = vmatprep.subr.bf16.mxu0 0
      %1605 = vmatpush1.bf16.msra.mxu0 0
      %1606 = vmatprep.subr.bf16.mxu0 0
      %1607 = vmatpush1.bf16.msra.mxu0 0
      %1608 = vmatprep.subr.bf16.mxu0 0
      %1609 = vmatpush1.bf16.msra.mxu0 0
      %1610 = vmatprep.subr.bf16.mxu0 0
      %1611 = vmatpush1.bf16.msra.mxu0 0
      %1612 = vmatprep.subr.bf16.mxu0 0
      %1613 = vmatpush1.bf16.msra.mxu0 0
      %1614 = vmatprep.subr.bf16.mxu0 0
      %1615 = vmatpush1.bf16.msra.mxu0 0
      %1616 = vmatprep.mubr.bf16.mxu0 0
      %1617 = vmatmul.mubr.bf16.gmra.mrb[0].mxu0 %v1573
      %v1618 = vpop.f32.mrb[0].mxu0
      %v1619 = vadd.f32 0.0, %v1618
      %v1620 = vpop.f32.mrb[0].mxu0
      %v1621 = vpop.f32.mrb[0].mxu0
      %v1622 = vadd.f32 0.0, %v1621
      %v1623 = vpop.f32.mrb[0].mxu0
      %1624 = vmatprep.mubr.bf16.mxu0 0
      %1625 = vmatmul.mubr.bf16.gmra.mrb[0].mxu0 %v1576
      %v1626 = vpop.f32.mrb[0].mxu0
      %v1627 = vadd.f32 0.0, %v1626
      %v1628 = vpop.f32.mrb[0].mxu0
      %v1629 = vpop.f32.mrb[0].mxu0
      %v1630 = vadd.f32 0.0, %v1629
      %v1631 = vpop.f32.mrb[0].mxu0
      %1632 = vmatprep.mubr.bf16.mxu0 0
      %1633 = vmatmul.mubr.bf16.gmra.mrb[0].mxu0 %v1579
      %v1634 = vpop.f32.mrb[0].mxu0
      %v1635 = vadd.f32 0.0, %v1634
      %v1636 = vpop.f32.mrb[0].mxu0
      %v1637 = vpop.f32.mrb[0].mxu0
      %v1638 = vadd.f32 0.0, %v1637
      %v1639 = vpop.f32.mrb[0].mxu0
      %1640 = vmatprep.mubr.bf16.mxu0 0
      %1641 = vmatmul.mubr.bf16.gmra.mrb[0].mxu0 %v1582
      %v1642 = vpop.f32.mrb[0].mxu0
      %v1643 = vadd.f32 0.0, %v1642
      %v1644 = vpop.f32.mrb[0].mxu0
      %v1645 = vpop.f32.mrb[0].mxu0
      %v1646 = vadd.f32 0.0, %v1645
      %v1647 = vpop.f32.mrb[0].mxu0
      %1648 = vdwg.mxu0
      %v1649 = vadd.f32 %v1415, %v1619
      %v1650 = vadd.f32 %v1416, %v1622
      %v1651 = vadd.f32 %v1417, %v1627
      %v1652 = vadd.f32 %v1418, %v1630
      %v1653 = vadd.f32 %v1419, %v1635
      %v1654 = vadd.f32 %v1420, %v1638
      %v1655 = vadd.f32 %v1421, %v1643
      %v1656 = vadd.f32 %v1422, %v1646
      %v1657 = vld [vmem:[%s221] sm:$0x1]
      %v1658 = vlaneseq
      %v1659 = vshrl.u32 %v1658, 7
      %v1660 = vsub.s32 0, %v1659
      %v1661 = vrot.slane %v1657, %v1660
      %v1662 = vmul.f32 %v1649, %v1661
      %v1663 = vmul.f32 %v1650, %v1661
      %v1664 = vmul.f32 %v1651, %v1661
      %v1665 = vmul.f32 %v1652, %v1661
      %v1666 = vmul.f32 %v1653, %v1661
      %v1667 = vmul.f32 %v1654, %v1661
      %v1668 = vmul.f32 %v1655, %v1661
      %v1669 = vmul.f32 %v1656, %v1661
      %v1670 = vld [vmem:[%s221 + $0x1] sm:$0x1]
      %v1671 = vlaneseq
      %v1672 = vshrl.u32 %v1671, 7
      %v1673 = vsub.s32 0, %v1672
      %v1674 = vrot.slane %v1670, %v1673
      %v1675 = vadd.f32 %v1662, %v1674
      %v1676 = vadd.f32 %v1663, %v1674
      %v1677 = vadd.f32 %v1664, %v1674
      %v1678 = vadd.f32 %v1665, %v1674
      %v1679 = vadd.f32 %v1666, %v1674
      %v1680 = vadd.f32 %v1667, %v1674
      %v1681 = vadd.f32 %v1668, %v1674
      %v1682 = vadd.f32 %v1669, %v1674
      %v1683 = vmax.f32 %v1675, 0.0
      %v1684 = vmax.f32 %v1676, 0.0
      %v1685 = vmax.f32 %v1677, 0.0
      %v1686 = vmax.f32 %v1678, 0.0
      %v1687 = vmax.f32 %v1679, 0.0
      %v1688 = vmax.f32 %v1680, 0.0
      %v1689 = vmax.f32 %v1681, 0.0
      %v1690 = vmax.f32 %v1682, 0.0
      %v1691 = vpack.c.bf16 %v1683, %v1683
      %v1692 = vpack.c.bf16 %v1684, %v1684
      %v1693 = vpack.c.bf16 %v1685, %v1685
      %v1694 = vpack.c.bf16 %v1686, %v1686
      %v1695 = vpack.c.bf16 %v1687, %v1687
      %v1696 = vpack.c.bf16 %v1688, %v1688
      %v1697 = vpack.c.bf16 %v1689, %v1689
      %v1698 = vpack.c.bf16 %v1690, %v1690
      %vm1699 = vcmask 125952
      %1700 = vst.msk [vmem:[%s229] sm:$0xf] %vm1699, %v1691
      %1701 = vst.msk [vmem:[%s229 + $0x4] sm:$0xf] %vm1699, %v1692
      %1702 = vst.msk [vmem:[%s229 + $0x8] sm:$0xf] %vm1699, %v1693
      %1703 = vst.msk [vmem:[%s229 + $0xc] sm:$0xf] %vm1699, %v1694
      %1704 = vst.msk [vmem:[%s229 + $0x10] sm:$0xf] %vm1699, %v1695
      %1705 = vst.msk [vmem:[%s229 + $0x14] sm:$0xf] %vm1699, %v1696
      %1706 = vst.msk [vmem:[%s229 + $0x18] sm:$0xf] %vm1699, %v1697
      %1707 = vst.msk [vmem:[%s229 + $0x1c] sm:$0xf] %vm1699, %v1698
      %p1708 = scmp.lt.s32.totalorder %s18, 1
      %s1709 = scalar_select %p1708, %s18, 1
      %p1710 = scmp.lt.s32.totalorder %s19, 0
      %s1711 = scalar_select %p1710, %s19, 0
      %s1712 = smul.addr %s1709, 8
      %s1713 = sadd.s32 %s1711, %s1712
      %s1714 = smul.addr %s1713, 4
      %s1715 = scalar_lea.vmem %s3, %s1714
      // Predicated region
      $region33: #{run_pallas.8} parent=31 // pred_check
        %p1716 = pneg %p124
      $region34: #{run_pallas.8} parent=31 // pred_check_branch
        %1718 = sbr.rel (%p1716) target = $region36
      $region35: #{run_pallas.8} parent=31 // pred_region
        _
      $region36: #{run_pallas.8} parent=31 // pred_fallthru
        _
    $region32: #{run_pallas.8} parent=5 // pred_fallthru
      _
    %p1719 = scmp.le.s32.totalorder 2, %s9
    // Predicated region
    $region37: #{run_pallas.8} parent=5 // pred_check
      %p1720 = pneg %p1719
    $region38: #{run_pallas.8} parent=5 // pred_check_branch
      %1722 = sbr.rel (%p1720) target = $region40
    $region39: #{run_pallas.8} parent=5 // pred_region
      %s1723 = ssub.s32 %s9, 2
      // Predicated region
      $region41: #{run_pallas.8} parent=39 // pred_check
        %p1724 = pneg %p130
      $region42: #{run_pallas.8} parent=39 // pred_check_branch
        %1726 = sbr.rel (%p1724) target = $region44
      $region43: #{run_pallas.8} parent=39 // pred_region
        %p1727 = scmp.lt.s32.totalorder %s20, 1
        %s1728 = scalar_select %p1727, %s20, 1
        %p1729 = scmp.lt.s32.totalorder %s21, 0
        %s1730 = scalar_select %p1729, %s21, 0
        %s1731 = smul.addr %s1728, 8
        %s1732 = sadd.s32 %s1730, %s1731
        %s1733 = smul.addr %s1732, 4
        %s1734 = scalar_lea.vmem %s3, %s1733
      $region44: #{run_pallas.8} parent=39 // pred_fallthru
        _
    $region40: #{run_pallas.8} parent=5 // pred_fallthru
      _
  $region6: #{run_pallas.8} parent=0 // loop_footer
    %s13 = sadd.s32 1, %s9
  $region7: #{run_pallas.8} parent=0 // loop_footer_branch
    %8 = sbr.rel target = $region3
  $region8: #{run_pallas.8} parent=0 // loop_exit
    _

// kernel: run_pallas.10
$region0: #{run_pallas.10}
  #allocation0 [shape = 'u32[]', space=smem, size = 0x4, offset = 0x4, fixed_abs, tag = 'smem constant byte address 0x4 - core index']
  #allocation1 [shape = 'u32[144,128]{1,0:T(1,128)}', space=vmem, size = 0x12000, scoped, tag = 'internal scratch']
  %s0 = inlined_call_operand.vmem [shape: bf16[128,16], index: 0, kind: input, shape index: {}]
  %s1 = inlined_call_operand.vmem [shape: bf16[16,64], index: 1, kind: input, shape index: {}]
  %s2 = inlined_call_operand.vmem [shape: f32[2,64], index: 2, kind: input, shape index: {}]
  %s3 = inlined_call_operand.vmem [shape: bf16[128,64], index: 3, kind: input, shape index: {}]
  %s4 = inlined_call_operand.vmem [shape: bf16[128,64], index: 4, kind: output, shape index: {}]
  %s5 = sld [smem:[#allocation0]]
  $region26: #{run_pallas.10} parent=0
    _
  %s7 = ssub.s32 1, %s5
  %s8 = scalar_select 0, %s7, %s5
  // Predicated region
  $region2: #{run_pallas.10} parent=0 // pred_check
    _
  $region3: #{run_pallas.10} parent=0 // pred_check_branch
    %10 = sbr.rel (0) target = $region5
  $region4: #{run_pallas.10} parent=0 // pred_region
    _
  $region5: #{run_pallas.10} parent=0 // pred_fallthru
    _
  // Predicated region
  $region6: #{run_pallas.10} parent=0 // pred_check
    _
  $region7: #{run_pallas.10} parent=0 // pred_check_branch
    %12 = sbr.rel (0) target = $region9
  $region8: #{run_pallas.10} parent=0 // pred_region
    _
  $region9: #{run_pallas.10} parent=0 // pred_fallthru
    _
  // Predicated region
  $region10: #{run_pallas.10} parent=0 // pred_check
    _
  $region11: #{run_pallas.10} parent=0 // pred_check_branch
    %14 = sbr.rel (0) target = $region13
  $region12: #{run_pallas.10} parent=0 // pred_region
    _
  $region13: #{run_pallas.10} parent=0 // pred_fallthru
    _
  // Predicated region
  $region14: #{run_pallas.10} parent=0 // pred_check
    _
  $region15: #{run_pallas.10} parent=0 // pred_check_branch
    %16 = sbr.rel (0) target = $region17
  $region16: #{run_pallas.10} parent=0 // pred_region
    _
  $region17: #{run_pallas.10} parent=0 // pred_fallthru
    _
  %v18 = vld [vmem:[%s0] sm:$0xf]
  %v19 = vld [vmem:[%s0 + $0x4] sm:$0xf]
  %v20 = vld [vmem:[%s0 + $0x8] sm:$0xf]
  %v21 = vld [vmem:[%s0 + $0xc] sm:$0xf]
  %v22 = vld [vmem:[%s0 + $0x10] sm:$0xf]
  %v23 = vld [vmem:[%s0 + $0x14] sm:$0xf]
  %v24 = vld [vmem:[%s0 + $0x18] sm:$0xf]
  %v25 = vld [vmem:[%s0 + $0x1c] sm:$0xf]
  %v26 = vld [vmem:[%s0 + $0x20] sm:$0xf]
  %v27 = vld [vmem:[%s0 + $0x24] sm:$0xf]
  %v28 = vld [vmem:[%s0 + $0x28] sm:$0xf]
  %v29 = vld [vmem:[%s0 + $0x2c] sm:$0xf]
  %v30 = vld [vmem:[%s0 + $0x30] sm:$0xf]
  %v31 = vld [vmem:[%s0 + $0x34] sm:$0xf]
  %v32 = vld [vmem:[%s0 + $0x38] sm:$0xf]
  %v33 = vld [vmem:[%s0 + $0x3c] sm:$0xf]
  %v34 = vld [vmem:[%s1] sm:$0xf]
  %v35 = vld [vmem:[%s1 + $0x4] sm:$0xf]
  %v52 = vunpack.c.l.b16 %v18
  %v53 = vunpack.c.l.b16 %v19
  %v54 = vunpack.c.l.b16 %v20
  %v55 = vunpack.c.l.b16 %v21
  %v56 = vunpack.c.l.b16 %v22
  %v57 = vunpack.c.l.b16 %v23
  %v58 = vunpack.c.l.b16 %v24
  %v59 = vunpack.c.l.b16 %v25
  %v60 = vunpack.c.l.b16 %v26
  %v61 = vunpack.c.l.b16 %v27
  %v62 = vunpack.c.l.b16 %v28
  %v63 = vunpack.c.l.b16 %v29
  %v64 = vunpack.c.l.b16 %v30
  %v65 = vunpack.c.l.b16 %v31
  %v66 = vunpack.c.l.b16 %v32
  %v67 = vunpack.c.l.b16 %v33
  %v68 = vpack.c.b16 %v53, %v52
  %v69 = vpack.c.b16 %v55, %v54
  %v70 = vpack.c.b16 %v57, %v56
  %v71 = vpack.c.b16 %v59, %v58
  %v72 = vpack.c.b16 %v61, %v60
  %v73 = vpack.c.b16 %v63, %v62
  %v74 = vpack.c.b16 %v65, %v64
  %v75 = vpack.c.b16 %v67, %v66
  %v78 = vunpack.c.l.b16 %v34
  %v79 = vunpack.c.l.b16 %v35
  %v80 = vpack.c.b16 %v79, %v78
  %vm82 = vcmask 130048
  %v84 = vsel %vm82, %v68, 0
  %v87 = vsel %vm82, %v69, 0
  %v90 = vsel %vm82, %v70, 0
  %v93 = vsel %vm82, %v71, 0
  %v96 = vsel %vm82, %v72, 0
  %v99 = vsel %vm82, %v73, 0
  %v102 = vsel %vm82, %v74, 0
  %v105 = vsel %vm82, %v75, 0
  %107 = vmatprep.subr.bf16.mxu0 0
  %108 = vmatpush1.bf16.msra.mxu0 %v80
  %109 = vmatprep.subr.bf16.mxu0 0
  %110 = vmatpush1.bf16.msra.mxu0 0
  %111 = vmatprep.subr.bf16.mxu0 0
  %112 = vmatpush1.bf16.msra.mxu0 0
  %113 = vmatprep.subr.bf16.mxu0 0
  %114 = vmatpush1.bf16.msra.mxu0 0
  %115 = vmatprep.subr.bf16.mxu0 0
  %116 = vmatpush1.bf16.msra.mxu0 0
  %117 = vmatprep.subr.bf16.mxu0 0
  %118 = vmatpush1.bf16.msra.mxu0 0
  %119 = vmatprep.subr.bf16.mxu0 0
  %120 = vmatpush1.bf16.msra.mxu0 0
  %121 = vmatprep.subr.bf16.mxu0 0
  %122 = vmatpush1.bf16.msra.mxu0 0
  %123 = vmatprep.subr.bf16.mxu0 0
  %124 = vmatpush1.bf16.msra.mxu0 0
  %125 = vmatprep.subr.bf16.mxu0 0
  %126 = vmatpush1.bf16.msra.mxu0 0
  %127 = vmatprep.subr.bf16.mxu0 0
  %128 = vmatpush1.bf16.msra.mxu0 0
  %129 = vmatprep.subr.bf16.mxu0 0
  %130 = vmatpush1.bf16.msra.mxu0 0
  %131 = vmatprep.subr.bf16.mxu0 0
  %132 = vmatpush1.bf16.msra.mxu0 0
  %133 = vmatprep.subr.bf16.mxu0 0
  %134 = vmatpush1.bf16.msra.mxu0 0
  %135 = vmatprep.subr.bf16.mxu0 0
  %136 = vmatpush1.bf16.msra.mxu0 0
  %137 = vmatprep.subr.bf16.mxu0 0
  %138 = vmatpush1.bf16.msra.mxu0 0
  %139 = vmatprep.mubr.bf16.mxu0 0
  %140 = vmatmul.mubr.bf16.gmra.mrb[0].mxu0 %v84
  %v141 = vpop.f32.mrb[0].mxu0
  %v142 = vadd.f32 0.0, %v141
  %v143 = vpop.f32.mrb[0].mxu0
  %v144 = vpop.f32.mrb[0].mxu0
  %v145 = vadd.f32 0.0, %v144
  %v146 = vpop.f32.mrb[0].mxu0
  %147 = vmatprep.mubr.bf16.mxu0 0
  %148 = vmatmul.mubr.bf16.gmra.mrb[0].mxu0 %v87
  %v149 = vpop.f32.mrb[0].mxu0
  %v150 = vadd.f32 0.0, %v149
  %v151 = vpop.f32.mrb[0].mxu0
  %v152 = vpop.f32.mrb[0].mxu0
  %v153 = vadd.f32 0.0, %v152
  %v154 = vpop.f32.mrb[0].mxu0
  %155 = vmatprep.mubr.bf16.mxu0 0
  %156 = vmatmul.mubr.bf16.gmra.mrb[0].mxu0 %v90
  %v157 = vpop.f32.mrb[0].mxu0
  %v158 = vadd.f32 0.0, %v157
  %v159 = vpop.f32.mrb[0].mxu0
  %v160 = vpop.f32.mrb[0].mxu0
  %v161 = vadd.f32 0.0, %v160
  %v162 = vpop.f32.mrb[0].mxu0
  %163 = vmatprep.mubr.bf16.mxu0 0
  %164 = vmatmul.mubr.bf16.gmra.mrb[0].mxu0 %v93
  %v165 = vpop.f32.mrb[0].mxu0
  %v166 = vadd.f32 0.0, %v165
  %v167 = vpop.f32.mrb[0].mxu0
  %v168 = vpop.f32.mrb[0].mxu0
  %v169 = vadd.f32 0.0, %v168
  %v170 = vpop.f32.mrb[0].mxu0
  %171 = vmatprep.mubr.bf16.mxu0 0
  %172 = vmatmul.mubr.bf16.gmra.mrb[0].mxu0 %v96
  %v173 = vpop.f32.mrb[0].mxu0
  %v174 = vadd.f32 0.0, %v173
  %v175 = vpop.f32.mrb[0].mxu0
  %v176 = vpop.f32.mrb[0].mxu0
  %v177 = vadd.f32 0.0, %v176
  %v178 = vpop.f32.mrb[0].mxu0
  %179 = vmatprep.mubr.bf16.mxu0 0
  %180 = vmatmul.mubr.bf16.gmra.mrb[0].mxu0 %v99
  %v181 = vpop.f32.mrb[0].mxu0
  %v182 = vadd.f32 0.0, %v181
  %v183 = vpop.f32.mrb[0].mxu0
  %v184 = vpop.f32.mrb[0].mxu0
  %v185 = vadd.f32 0.0, %v184
  %v186 = vpop.f32.mrb[0].mxu0
  %187 = vmatprep.mubr.bf16.mxu0 0
  %188 = vmatmul.mubr.bf16.gmra.mrb[0].mxu0 %v102
  %v189 = vpop.f32.mrb[0].mxu0
  %v190 = vadd.f32 0.0, %v189
  %v191 = vpop.f32.mrb[0].mxu0
  %v192 = vpop.f32.mrb[0].mxu0
  %v193 = vadd.f32 0.0, %v192
  %v194 = vpop.f32.mrb[0].mxu0
  %195 = vmatprep.mubr.bf16.mxu0 0
  %196 = vmatmul.mubr.bf16.gmra.mrb[0].mxu0 %v105
  %v197 = vpop.f32.mrb[0].mxu0
  %v198 = vadd.f32 0.0, %v197
  %v199 = vpop.f32.mrb[0].mxu0
  %v200 = vpop.f32.mrb[0].mxu0
  %v201 = vadd.f32 0.0, %v200
  %v202 = vpop.f32.mrb[0].mxu0
  %203 = vdwg.mxu0
  %v204 = vld [vmem:[%s2] sm:$0x1]
  %v205 = vlaneseq
  %v206 = vshrl.u32 %v205, 7
  %v207 = vsub.s32 0, %v206
  %v208 = vrot.slane %v204, %v207
  %v209 = vmul.f32 %v142, %v208
  %v210 = vmul.f32 %v145, %v208
  %v211 = vmul.f32 %v150, %v208
  %v212 = vmul.f32 %v153, %v208
  %v213 = vmul.f32 %v158, %v208
  %v214 = vmul.f32 %v161, %v208
  %v215 = vmul.f32 %v166, %v208
  %v216 = vmul.f32 %v169, %v208
  %v217 = vmul.f32 %v174, %v208
  %v218 = vmul.f32 %v177, %v208
  %v219 = vmul.f32 %v182, %v208
  %v220 = vmul.f32 %v185, %v208
  %v221 = vmul.f32 %v190, %v208
  %v222 = vmul.f32 %v193, %v208
  %v223 = vmul.f32 %v198, %v208
  %v224 = vmul.f32 %v201, %v208
  %v225 = vld [vmem:[%s2 + $0x1] sm:$0x1]
  %v226 = vlaneseq
  %v227 = vshrl.u32 %v226, 7
  %v228 = vsub.s32 0, %v227
  %v229 = vrot.slane %v225, %v228
  %v230 = vadd.f32 %v209, %v229
  %v231 = vadd.f32 %v210, %v229
  %v232 = vadd.f32 %v211, %v229
  %v233 = vadd.f32 %v212, %v229
  %v234 = vadd.f32 %v213, %v229
  %v235 = vadd.f32 %v214, %v229
  %v236 = vadd.f32 %v215, %v229
  %v237 = vadd.f32 %v216, %v229
  %v238 = vadd.f32 %v217, %v229
  %v239 = vadd.f32 %v218, %v229
  %v240 = vadd.f32 %v219, %v229
  %v241 = vadd.f32 %v220, %v229
  %v242 = vadd.f32 %v221, %v229
  %v243 = vadd.f32 %v222, %v229
  %v244 = vadd.f32 %v223, %v229
  %v245 = vadd.f32 %v224, %v229
  %v246 = vld [vmem:[%s3] sm:$0xf]
  %v247 = vld [vmem:[%s3 + $0x4] sm:$0xf]
  %v248 = vld [vmem:[%s3 + $0x8] sm:$0xf]
  %v249 = vld [vmem:[%s3 + $0xc] sm:$0xf]
  %v250 = vld [vmem:[%s3 + $0x10] sm:$0xf]
  %v251 = vld [vmem:[%s3 + $0x14] sm:$0xf]
  %v252 = vld [vmem:[%s3 + $0x18] sm:$0xf]
  %v253 = vld [vmem:[%s3 + $0x1c] sm:$0xf]
  %v254 = vld [vmem:[%s3 + $0x20] sm:$0xf]
  %v255 = vld [vmem:[%s3 + $0x24] sm:$0xf]
  %v256 = vld [vmem:[%s3 + $0x28] sm:$0xf]
  %v257 = vld [vmem:[%s3 + $0x2c] sm:$0xf]
  %v258 = vld [vmem:[%s3 + $0x30] sm:$0xf]
  %v259 = vld [vmem:[%s3 + $0x34] sm:$0xf]
  %v260 = vld [vmem:[%s3 + $0x38] sm:$0xf]
  %v261 = vld [vmem:[%s3 + $0x3c] sm:$0xf]
  %v262 = vunpack.c.l.bf16 %v246
  %v263 = vunpack.c.l.bf16 %v247
  %v264 = vunpack.c.l.bf16 %v248
  %v265 = vunpack.c.l.bf16 %v249
  %v266 = vunpack.c.l.bf16 %v250
  %v267 = vunpack.c.l.bf16 %v251
  %v268 = vunpack.c.l.bf16 %v252
  %v269 = vunpack.c.l.bf16 %v253
  %v270 = vunpack.c.l.bf16 %v254
  %v271 = vunpack.c.l.bf16 %v255
  %v272 = vunpack.c.l.bf16 %v256
  %v273 = vunpack.c.l.bf16 %v257
  %v274 = vunpack.c.l.bf16 %v258
  %v275 = vunpack.c.l.bf16 %v259
  %v276 = vunpack.c.l.bf16 %v260
  %v277 = vunpack.c.l.bf16 %v261
  %v278 = vadd.f32 %v230, %v262
  %v279 = vadd.f32 %v231, %v263
  %v280 = vadd.f32 %v232, %v264
  %v281 = vadd.f32 %v233, %v265
  %v282 = vadd.f32 %v234, %v266
  %v283 = vadd.f32 %v235, %v267
  %v284 = vadd.f32 %v236, %v268
  %v285 = vadd.f32 %v237, %v269
  %v286 = vadd.f32 %v238, %v270
  %v287 = vadd.f32 %v239, %v271
  %v288 = vadd.f32 %v240, %v272
  %v289 = vadd.f32 %v241, %v273
  %v290 = vadd.f32 %v242, %v274
  %v291 = vadd.f32 %v243, %v275
  %v292 = vadd.f32 %v244, %v276
  %v293 = vadd.f32 %v245, %v277
  %v294 = vmax.f32 %v278, 0.0
  %v295 = vmax.f32 %v279, 0.0
  %v296 = vmax.f32 %v280, 0.0
  %v297 = vmax.f32 %v281, 0.0
  %v298 = vmax.f32 %v282, 0.0
  %v299 = vmax.f32 %v283, 0.0
  %v300 = vmax.f32 %v284, 0.0
  %v301 = vmax.f32 %v285, 0.0
  %v302 = vmax.f32 %v286, 0.0
  %v303 = vmax.f32 %v287, 0.0
  %v304 = vmax.f32 %v288, 0.0
  %v305 = vmax.f32 %v289, 0.0
  %v306 = vmax.f32 %v290, 0.0
  %v307 = vmax.f32 %v291, 0.0
  %v308 = vmax.f32 %v292, 0.0
  %v309 = vmax.f32 %v293, 0.0
  %v310 = vpack.c.bf16 %v295, %v294
  %v311 = vpack.c.bf16 %v297, %v296
  %v312 = vpack.c.bf16 %v299, %v298
  %v313 = vpack.c.bf16 %v301, %v300
  %v314 = vpack.c.bf16 %v303, %v302
  %v315 = vpack.c.bf16 %v305, %v304
  %v316 = vpack.c.bf16 %v307, %v306
  %v317 = vpack.c.bf16 %v309, %v308
  %v326 = vunpack.c.l.b16 %v310
  %v327 = vunpack.c.h.b16 %v310
  %v328 = vunpack.c.l.b16 %v311
  %v329 = vunpack.c.h.b16 %v311
  %v330 = vunpack.c.l.b16 %v312
  %v331 = vunpack.c.h.b16 %v312
  %v332 = vunpack.c.l.b16 %v313
  %v333 = vunpack.c.h.b16 %v313
  %v334 = vunpack.c.l.b16 %v314
  %v335 = vunpack.c.h.b16 %v314
  %v336 = vunpack.c.l.b16 %v315
  %v337 = vunpack.c.h.b16 %v315
  %v338 = vunpack.c.l.b16 %v316
  %v339 = vunpack.c.h.b16 %v316
  %v340 = vunpack.c.l.b16 %v317
  %v341 = vunpack.c.h.b16 %v317
  %v342 = vpack.c.b16 %v326, %v326
  %v343 = vpack.c.b16 %v327, %v327
  %v344 = vpack.c.b16 %v328, %v328
  %v345 = vpack.c.b16 %v329, %v329
  %v346 = vpack.c.b16 %v330, %v330
  %v347 = vpack.c.b16 %v331, %v331
  %v348 = vpack.c.b16 %v332, %v332
  %v349 = vpack.c.b16 %v333, %v333
  %v350 = vpack.c.b16 %v334, %v334
  %v351 = vpack.c.b16 %v335, %v335
  %v352 = vpack.c.b16 %v336, %v336
  %v353 = vpack.c.b16 %v337, %v337
  %v354 = vpack.c.b16 %v338, %v338
  %v355 = vpack.c.b16 %v339, %v339
  %v356 = vpack.c.b16 %v340, %v340
  %v357 = vpack.c.b16 %v341, %v341
  %vm374 = vcmask 519168
  %375 = vst.msk [vmem:[%s4] sm:$0xf] %vm374, %v342
  %376 = vst.msk [vmem:[%s4 + $0x4] sm:$0xf] %vm374, %v343
  %377 = vst.msk [vmem:[%s4 + $0x8] sm:$0xf] %vm374, %v344
  %378 = vst.msk [vmem:[%s4 + $0xc] sm:$0xf] %vm374, %v345
  %379 = vst.msk [vmem:[%s4 + $0x10] sm:$0xf] %vm374, %v346
  %380 = vst.msk [vmem:[%s4 + $0x14] sm:$0xf] %vm374, %v347
  %381 = vst.msk [vmem:[%s4 + $0x18] sm:$0xf] %vm374, %v348
  %382 = vst.msk [vmem:[%s4 + $0x1c] sm:$0xf] %vm374, %v349
  %383 = vst.msk [vmem:[%s4 + $0x20] sm:$0xf] %vm374, %v350
  %384 = vst.msk [vmem:[%s4 + $0x24] sm:$0xf] %vm374, %v351
  %385 = vst.msk [vmem:[%s4 + $0x28] sm:$0xf] %vm374, %v352
  %386 = vst.msk [vmem:[%s4 + $0x2c] sm:$0xf] %vm374, %v353
  %387 = vst.msk [vmem:[%s4 + $0x30] sm:$0xf] %vm374, %v354
  %388 = vst.msk [vmem:[%s4 + $0x34] sm:$0xf] %vm374, %v355
  %389 = vst.msk [vmem:[%s4 + $0x38] sm:$0xf] %vm374, %v356
  %390 = vst.msk [vmem:[%s4 + $0x3c] sm:$0xf] %vm374, %v357
  // Predicated region
  $region18: #{run_pallas.10} parent=0 // pred_check
    _
  $region19: #{run_pallas.10} parent=0 // pred_check_branch
    %392 = sbr.rel (0) target = $region21
  $region20: #{run_pallas.10} parent=0 // pred_region
    _
  $region21: #{run_pallas.10} parent=0 // pred_fallthru
    _
  // Predicated region
  $region22: #{run_pallas.10} parent=0 // pred_check
    _
  $region23: #{run_pallas.10} parent=0 // pred_check_branch
    %394 = sbr.rel (0) target = $region25
  $region24: #{run_pallas.10} parent=0 // pred_region
    _
  $region25: #{run_pallas.10} parent=0 // pred_fallthru
    _

// kernel: run_pallas.11
$region0: #{run_pallas.11}
  #allocation0 [shape = 'u32[]', space=smem, size = 0x4, offset = 0x4, fixed_abs, tag = 'smem constant byte address 0x4 - core index']
  #allocation1 [shape = 'u32[144,128]{1,0:T(1,128)}', space=vmem, size = 0x12000, scoped, tag = 'internal scratch']
  %s0 = inlined_call_operand.vmem [shape: bf16[128,64], index: 0, kind: input, shape index: {}]
  %s1 = inlined_call_operand.vmem [shape: bf16[64,16], index: 1, kind: input, shape index: {}]
  %s2 = inlined_call_operand.vmem [shape: f32[2,16], index: 2, kind: input, shape index: {}]
  %s3 = inlined_call_operand.vmem [shape: bf16[128,16], index: 3, kind: output, shape index: {}]
  %s4 = sld [smem:[#allocation0]]
  $region22: #{run_pallas.11} parent=0
    _
  %s6 = ssub.s32 1, %s4
  %s7 = scalar_select 0, %s6, %s4
  // Predicated region
  $region2: #{run_pallas.11} parent=0 // pred_check
    _
  $region3: #{run_pallas.11} parent=0 // pred_check_branch
    %9 = sbr.rel (0) target = $region5
  $region4: #{run_pallas.11} parent=0 // pred_region
    _
  $region5: #{run_pallas.11} parent=0 // pred_fallthru
    _
  // Predicated region
  $region6: #{run_pallas.11} parent=0 // pred_check
    _
  $region7: #{run_pallas.11} parent=0 // pred_check_branch
    %11 = sbr.rel (0) target = $region9
  $region8: #{run_pallas.11} parent=0 // pred_region
    _
  $region9: #{run_pallas.11} parent=0 // pred_fallthru
    _
  // Predicated region
  $region10: #{run_pallas.11} parent=0 // pred_check
    _
  $region11: #{run_pallas.11} parent=0 // pred_check_branch
    %13 = sbr.rel (0) target = $region13
  $region12: #{run_pallas.11} parent=0 // pred_region
    _
  $region13: #{run_pallas.11} parent=0 // pred_fallthru
    _
  %v15 = vld [vmem:[%s0] sm:$0xf]
  %v16 = vld [vmem:[%s0 + $0x4] sm:$0xf]
  %v17 = vld [vmem:[%s0 + $0x8] sm:$0xf]
  %v18 = vld [vmem:[%s0 + $0xc] sm:$0xf]
  %v19 = vld [vmem:[%s0 + $0x10] sm:$0xf]
  %v20 = vld [vmem:[%s0 + $0x14] sm:$0xf]
  %v21 = vld [vmem:[%s0 + $0x18] sm:$0xf]
  %v22 = vld [vmem:[%s0 + $0x1c] sm:$0xf]
  %v23 = vld [vmem:[%s0 + $0x20] sm:$0xf]
  %v24 = vld [vmem:[%s0 + $0x24] sm:$0xf]
  %v25 = vld [vmem:[%s0 + $0x28] sm:$0xf]
  %v26 = vld [vmem:[%s0 + $0x2c] sm:$0xf]
  %v27 = vld [vmem:[%s0 + $0x30] sm:$0xf]
  %v28 = vld [vmem:[%s0 + $0x34] sm:$0xf]
  %v29 = vld [vmem:[%s0 + $0x38] sm:$0xf]
  %v30 = vld [vmem:[%s0 + $0x3c] sm:$0xf]
  %v31 = vld [vmem:[%s1] sm:$0xf]
  %v32 = vld [vmem:[%s1 + $0x4] sm:$0xf]
  %v33 = vld [vmem:[%s1 + $0x8] sm:$0xf]
  %v34 = vld [vmem:[%s1 + $0xc] sm:$0xf]
  %v35 = vld [vmem:[%s1 + $0x10] sm:$0xf]
  %v36 = vld [vmem:[%s1 + $0x14] sm:$0xf]
  %v37 = vld [vmem:[%s1 + $0x18] sm:$0xf]
  %v38 = vld [vmem:[%s1 + $0x1c] sm:$0xf]
  %v55 = vunpack.c.l.b16 %v15
  %v56 = vunpack.c.l.b16 %v16
  %v57 = vunpack.c.l.b16 %v17
  %v58 = vunpack.c.l.b16 %v18
  %v59 = vunpack.c.l.b16 %v19
  %v60 = vunpack.c.l.b16 %v20
  %v61 = vunpack.c.l.b16 %v21
  %v62 = vunpack.c.l.b16 %v22
  %v63 = vunpack.c.l.b16 %v23
  %v64 = vunpack.c.l.b16 %v24
  %v65 = vunpack.c.l.b16 %v25
  %v66 = vunpack.c.l.b16 %v26
  %v67 = vunpack.c.l.b16 %v27
  %v68 = vunpack.c.l.b16 %v28
  %v69 = vunpack.c.l.b16 %v29
  %v70 = vunpack.c.l.b16 %v30
  %v71 = vpack.c.b16 %v56, %v55
  %v72 = vpack.c.b16 %v58, %v57
  %v73 = vpack.c.b16 %v60, %v59
  %v74 = vpack.c.b16 %v62, %v61
  %v75 = vpack.c.b16 %v64, %v63
  %v76 = vpack.c.b16 %v66, %v65
  %v77 = vpack.c.b16 %v68, %v67
  %v78 = vpack.c.b16 %v70, %v69
  %v87 = vunpack.c.l.b16 %v31
  %v88 = vunpack.c.l.b16 %v32
  %v89 = vunpack.c.l.b16 %v33
  %v90 = vunpack.c.l.b16 %v34
  %v91 = vunpack.c.l.b16 %v35
  %v92 = vunpack.c.l.b16 %v36
  %v93 = vunpack.c.l.b16 %v37
  %v94 = vunpack.c.l.b16 %v38
  %v95 = vpack.c.b16 %v88, %v87
  %v96 = vpack.c.b16 %v90, %v89
  %v97 = vpack.c.b16 %v92, %v91
  %v98 = vpack.c.b16 %v94, %v93
  %vm103 = vcmask 523264
  %v105 = vsel %vm103, %v71, 0
  %v108 = vsel %vm103, %v72, 0
  %v111 = vsel %vm103, %v73, 0
  %v114 = vsel %vm103, %v74, 0
  %v117 = vsel %vm103, %v75, 0
  %v120 = vsel %vm103, %v76, 0
  %v123 = vsel %vm103, %v77, 0
  %v126 = vsel %vm103, %v78, 0
  %128 = vmatprep.subr.bf16.mxu0 0
  %129 = vmatpush1.bf16.msra.mxu0 %v95
  %130 = vmatprep.subr.bf16.mxu0 0
  %131 = vmatpush1.bf16.msra.mxu0 %v96
  %132 = vmatprep.subr.bf16.mxu0 0
  %133 = vmatpush1.bf16.msra.mxu0 %v97
  %134 = vmatprep.subr.bf16.mxu0 0
  %135 = vmatpush1.bf16.msra.mxu0 %v98
  %136 = vmatprep.subr.bf16.mxu0 0
  %137 = vmatpush1.bf16.msra.mxu0 0
  %138 = vmatprep.subr.bf16.mxu0 0
  %139 = vmatpush1.bf16.msra.mxu0 0
  %140 = vmatprep.subr.bf16.mxu0 0
  %141 = vmatpush1.bf16.msra.mxu0 0
  %142 = vmatprep.subr.bf16.mxu0 0
  %143 = vmatpush1.bf16.msra.mxu0 0
  %144 = vmatprep.subr.bf16.mxu0 0
  %145 = vmatpush1.bf16.msra.mxu0 0
  %146 = vmatprep.subr.bf16.mxu0 0
  %147 = vmatpush1.bf16.msra.mxu0 0
  %148 = vmatprep.subr.bf16.mxu0 0
  %149 = vmatpush1.bf16.msra.mxu0 0
  %150 = vmatprep.subr.bf16.mxu0 0
  %151 = vmatpush1.bf16.msra.mxu0 0
  %152 = vmatprep.subr.bf16.mxu0 0
  %153 = vmatpush1.bf16.msra.mxu0 0
  %154 = vmatprep.subr.bf16.mxu0 0
  %155 = vmatpush1.bf16.msra.mxu0 0
  %156 = vmatprep.subr.bf16.mxu0 0
  %157 = vmatpush1.bf16.msra.mxu0 0
  %158 = vmatprep.subr.bf16.mxu0 0
  %159 = vmatpush1.bf16.msra.mxu0 0
  %160 = vmatprep.mubr.bf16.mxu0 0
  %161 = vmatmul.mubr.bf16.gmra.mrb[0].mxu0 %v105
  %v162 = vpop.f32.mrb[0].mxu0
  %v163 = vadd.f32 0.0, %v162
  %v164 = vpop.f32.mrb[0].mxu0
  %v165 = vpop.f32.mrb[0].mxu0
  %v166 = vadd.f32 0.0, %v165
  %v167 = vpop.f32.mrb[0].mxu0
  %168 = vmatprep.mubr.bf16.mxu0 0
  %169 = vmatmul.mubr.bf16.gmra.mrb[0].mxu0 %v108
  %v170 = vpop.f32.mrb[0].mxu0
  %v171 = vadd.f32 0.0, %v170
  %v172 = vpop.f32.mrb[0].mxu0
  %v173 = vpop.f32.mrb[0].mxu0
  %v174 = vadd.f32 0.0, %v173
  %v175 = vpop.f32.mrb[0].mxu0
  %176 = vmatprep.mubr.bf16.mxu0 0
  %177 = vmatmul.mubr.bf16.gmra.mrb[0].mxu0 %v111
  %v178 = vpop.f32.mrb[0].mxu0
  %v179 = vadd.f32 0.0, %v178
  %v180 = vpop.f32.mrb[0].mxu0
  %v181 = vpop.f32.mrb[0].mxu0
  %v182 = vadd.f32 0.0, %v181
  %v183 = vpop.f32.mrb[0].mxu0
  %184 = vmatprep.mubr.bf16.mxu0 0
  %185 = vmatmul.mubr.bf16.gmra.mrb[0].mxu0 %v114
  %v186 = vpop.f32.mrb[0].mxu0
  %v187 = vadd.f32 0.0, %v186
  %v188 = vpop.f32.mrb[0].mxu0
  %v189 = vpop.f32.mrb[0].mxu0
  %v190 = vadd.f32 0.0, %v189
  %v191 = vpop.f32.mrb[0].mxu0
  %192 = vmatprep.mubr.bf16.mxu0 0
  %193 = vmatmul.mubr.bf16.gmra.mrb[0].mxu0 %v117
  %v194 = vpop.f32.mrb[0].mxu0
  %v195 = vadd.f32 0.0, %v194
  %v196 = vpop.f32.mrb[0].mxu0
  %v197 = vpop.f32.mrb[0].mxu0
  %v198 = vadd.f32 0.0, %v197
  %v199 = vpop.f32.mrb[0].mxu0
  %200 = vmatprep.mubr.bf16.mxu0 0
  %201 = vmatmul.mubr.bf16.gmra.mrb[0].mxu0 %v120
  %v202 = vpop.f32.mrb[0].mxu0
  %v203 = vadd.f32 0.0, %v202
  %v204 = vpop.f32.mrb[0].mxu0
  %v205 = vpop.f32.mrb[0].mxu0
  %v206 = vadd.f32 0.0, %v205
  %v207 = vpop.f32.mrb[0].mxu0
  %208 = vmatprep.mubr.bf16.mxu0 0
  %209 = vmatmul.mubr.bf16.gmra.mrb[0].mxu0 %v123
  %v210 = vpop.f32.mrb[0].mxu0
  %v211 = vadd.f32 0.0, %v210
  %v212 = vpop.f32.mrb[0].mxu0
  %v213 = vpop.f32.mrb[0].mxu0
  %v214 = vadd.f32 0.0, %v213
  %v215 = vpop.f32.mrb[0].mxu0
  %216 = vmatprep.mubr.bf16.mxu0 0
  %217 = vmatmul.mubr.bf16.gmra.mrb[0].mxu0 %v126
  %v218 = vpop.f32.mrb[0].mxu0
  %v219 = vadd.f32 0.0, %v218
  %v220 = vpop.f32.mrb[0].mxu0
  %v221 = vpop.f32.mrb[0].mxu0
  %v222 = vadd.f32 0.0, %v221
  %v223 = vpop.f32.mrb[0].mxu0
  %224 = vdwg.mxu0
  %v225 = vld [vmem:[%s2] sm:$0x1]
  %v226 = vlaneseq
  %v227 = vshrl.u32 %v226, 7
  %v228 = vsub.s32 0, %v227
  %v229 = vrot.slane %v225, %v228
  %v230 = vmul.f32 %v163, %v229
  %v231 = vmul.f32 %v166, %v229
  %v232 = vmul.f32 %v171, %v229
  %v233 = vmul.f32 %v174, %v229
  %v234 = vmul.f32 %v179, %v229
  %v235 = vmul.f32 %v182, %v229
  %v236 = vmul.f32 %v187, %v229
  %v237 = vmul.f32 %v190, %v229
  %v238 = vmul.f32 %v195, %v229
  %v239 = vmul.f32 %v198, %v229
  %v240 = vmul.f32 %v203, %v229
  %v241 = vmul.f32 %v206, %v229
  %v242 = vmul.f32 %v211, %v229
  %v243 = vmul.f32 %v214, %v229
  %v244 = vmul.f32 %v219, %v229
  %v245 = vmul.f32 %v222, %v229
  %v246 = vld [vmem:[%s2 + $0x1] sm:$0x1]
  %v247 = vlaneseq
  %v248 = vshrl.u32 %v247, 7
  %v249 = vsub.s32 0, %v248
  %v250 = vrot.slane %v246, %v249
  %v251 = vadd.f32 %v230, %v250
  %v252 = vadd.f32 %v231, %v250
  %v253 = vadd.f32 %v232, %v250
  %v254 = vadd.f32 %v233, %v250
  %v255 = vadd.f32 %v234, %v250
  %v256 = vadd.f32 %v235, %v250
  %v257 = vadd.f32 %v236, %v250
  %v258 = vadd.f32 %v237, %v250
  %v259 = vadd.f32 %v238, %v250
  %v260 = vadd.f32 %v239, %v250
  %v261 = vadd.f32 %v240, %v250
  %v262 = vadd.f32 %v241, %v250
  %v263 = vadd.f32 %v242, %v250
  %v264 = vadd.f32 %v243, %v250
  %v265 = vadd.f32 %v244, %v250
  %v266 = vadd.f32 %v245, %v250
  %v267 = vmax.f32 %v251, 0.0
  %v268 = vmax.f32 %v252, 0.0
  %v269 = vmax.f32 %v253, 0.0
  %v270 = vmax.f32 %v254, 0.0
  %v271 = vmax.f32 %v255, 0.0
  %v272 = vmax.f32 %v256, 0.0
  %v273 = vmax.f32 %v257, 0.0
  %v274 = vmax.f32 %v258, 0.0
  %v275 = vmax.f32 %v259, 0.0
  %v276 = vmax.f32 %v260, 0.0
  %v277 = vmax.f32 %v261, 0.0
  %v278 = vmax.f32 %v262, 0.0
  %v279 = vmax.f32 %v263, 0.0
  %v280 = vmax.f32 %v264, 0.0
  %v281 = vmax.f32 %v265, 0.0
  %v282 = vmax.f32 %v266, 0.0
  %v283 = vpack.c.bf16 %v268, %v267
  %v284 = vpack.c.bf16 %v270, %v269
  %v285 = vpack.c.bf16 %v272, %v271
  %v286 = vpack.c.bf16 %v274, %v273
  %v287 = vpack.c.bf16 %v276, %v275
  %v288 = vpack.c.bf16 %v278, %v277
  %v289 = vpack.c.bf16 %v280, %v279
  %v290 = vpack.c.bf16 %v282, %v281
  %v299 = vunpack.c.l.b16 %v283
  %v300 = vunpack.c.h.b16 %v283
  %v301 = vunpack.c.l.b16 %v284
  %v302 = vunpack.c.h.b16 %v284
  %v303 = vunpack.c.l.b16 %v285
  %v304 = vunpack.c.h.b16 %v285
  %v305 = vunpack.c.l.b16 %v286
  %v306 = vunpack.c.h.b16 %v286
  %v307 = vunpack.c.l.b16 %v287
  %v308 = vunpack.c.h.b16 %v287
  %v309 = vunpack.c.l.b16 %v288
  %v310 = vunpack.c.h.b16 %v288
  %v311 = vunpack.c.l.b16 %v289
  %v312 = vunpack.c.h.b16 %v289
  %v313 = vunpack.c.l.b16 %v290
  %v314 = vunpack.c.h.b16 %v290
  %v315 = vpack.c.b16 %v299, %v299
  %v316 = vpack.c.b16 %v300, %v300
  %v317 = vpack.c.b16 %v301, %v301
  %v318 = vpack.c.b16 %v302, %v302
  %v319 = vpack.c.b16 %v303, %v303
  %v320 = vpack.c.b16 %v304, %v304
  %v321 = vpack.c.b16 %v305, %v305
  %v322 = vpack.c.b16 %v306, %v306
  %v323 = vpack.c.b16 %v307, %v307
  %v324 = vpack.c.b16 %v308, %v308
  %v325 = vpack.c.b16 %v309, %v309
  %v326 = vpack.c.b16 %v310, %v310
  %v327 = vpack.c.b16 %v311, %v311
  %v328 = vpack.c.b16 %v312, %v312
  %v329 = vpack.c.b16 %v313, %v313
  %v330 = vpack.c.b16 %v314, %v314
  %vm347 = vcmask 125952
  %348 = vst.msk [vmem:[%s3] sm:$0xf] %vm347, %v315
  %349 = vst.msk [vmem:[%s3 + $0x4] sm:$0xf] %vm347, %v316
  %350 = vst.msk [vmem:[%s3 + $0x8] sm:$0xf] %vm347, %v317
  %351 = vst.msk [vmem:[%s3 + $0xc] sm:$0xf] %vm347, %v318
  %352 = vst.msk [vmem:[%s3 + $0x10] sm:$0xf] %vm347, %v319
  %353 = vst.msk [vmem:[%s3 + $0x14] sm:$0xf] %vm347, %v320
  %354 = vst.msk [vmem:[%s3 + $0x18] sm:$0xf] %vm347, %v321
  %355 = vst.msk [vmem:[%s3 + $0x1c] sm:$0xf] %vm347, %v322
  %356 = vst.msk [vmem:[%s3 + $0x20] sm:$0xf] %vm347, %v323
  %357 = vst.msk [vmem:[%s3 + $0x24] sm:$0xf] %vm347, %v324
  %358 = vst.msk [vmem:[%s3 + $0x28] sm:$0xf] %vm347, %v325
  %359 = vst.msk [vmem:[%s3 + $0x2c] sm:$0xf] %vm347, %v326
  %360 = vst.msk [vmem:[%s3 + $0x30] sm:$0xf] %vm347, %v327
  %361 = vst.msk [vmem:[%s3 + $0x34] sm:$0xf] %vm347, %v328
  %362 = vst.msk [vmem:[%s3 + $0x38] sm:$0xf] %vm347, %v329
  %363 = vst.msk [vmem:[%s3 + $0x3c] sm:$0xf] %vm347, %v330
  // Predicated region
  $region14: #{run_pallas.11} parent=0 // pred_check
    _
  $region15: #{run_pallas.11} parent=0 // pred_check_branch
    %365 = sbr.rel (0) target = $region17
  $region16: #{run_pallas.11} parent=0 // pred_region
    _
  $region17: #{run_pallas.11} parent=0 // pred_fallthru
    _
  // Predicated region
  $region18: #{run_pallas.11} parent=0 // pred_check
    _
  $region19: #{run_pallas.11} parent=0 // pred_check_branch
    %367 = sbr.rel (0) target = $region21
  $region20: #{run_pallas.11} parent=0 // pred_region
    _
  $region21: #{run_pallas.11} parent=0 // pred_fallthru
    _

// kernel: run_pallas.12
$region0: #{run_pallas.12}
  #allocation0 [shape = 'u32[]', space=smem, size = 0x4, offset = 0x4, fixed_abs, tag = 'smem constant byte address 0x4 - core index']
  #allocation1 [shape = 'u32[144,128]{1,0:T(1,128)}', space=vmem, size = 0x12000, scoped, tag = 'internal scratch']
  %s0 = inlined_call_operand.vmem [shape: bf16[2,10,10,16], index: 0, kind: input, shape index: {}]
  %s1 = inlined_call_operand.vmem [shape: bf16[9,16,16], index: 1, kind: input, shape index: {}]
  %s2 = inlined_call_operand.vmem [shape: f32[2,16], index: 2, kind: input, shape index: {}]
  %s3 = inlined_call_operand.vmem [shape: bf16[2,8,8,16], index: 3, kind: output, shape index: {}]
  %s4 = sld [smem:[#allocation0]]
  $region45: #{run_pallas.12} parent=0
    _
  %s6 = ssub.s32 1, %s4
  %s7 = scalar_select 0, %s6, %s4
  loop: start=0, step=1, limit=4
  $region2: #{run_pallas.12} parent=0 // loop_pre_header
    _
  $region3: #{run_pallas.12} parent=0 // loop_header
    %s9 = sphi 0, %s13
    %p10 = scmp.ge.s32.totalorder %s9, 4
    %s16 = sphi 0, %s28
    %s17 = sphi 0, %s24
    %s18 = sphi 0, %s16
    %s19 = sphi 0, %s17
    %s20 = sphi 0, %s18
    %s21 = sphi 0, %s19
    %s31 = sphi 0, %s33
    %s34 = sphi 0, %s31
    %s35 = sphi 0, %s34
    %s51 = sphi 0, %s35
    %s57 = sphi 0, %s59
    %s60 = sphi 0, %s57
    %s61 = sphi 0, %s60
    %s77 = sphi 0, %s61
    %s83 = sphi 0, %s85
    %s86 = sphi 0, %s83
    %s87 = sphi 0, %s86
    %s103 = sphi 0, %s87
    %s111 = sphi 0, %s113
    %s114 = sphi 0, %s111
    %s115 = sphi 0, %s114
    %s131 = sphi 0, %s115
  $region4: #{run_pallas.12} parent=0 // loop_header_branch
    %12 = sbr.rel (%p10) target = $region8
  $region5: #{run_pallas.12} parent=0 // loop_body
    %s14 = ssub.s32 %s9, 1
    %s15 = ssub.s32 %s9, 2
    %s22 = sadd.s32 1, %s17
    %p23 = scmp.ge.s32.totalorder %s22, 1
    %s24 = scalar_select %p23, 0, %s22
    %s25 = sadd.s32 1, %s16
    %s26 = scalar_select %p23, %s25, %s16
    %p27 = scmp.ge.s32.totalorder %s26, 2
    %s28 = scalar_select %p27, 0, %s26
    %s29 = ssub.s32 %s16, %s28
    %p30 = scmp.eq.s32.totalorder %s29, 0
    %s32 = sadd.s32 %s31, 1
    %s33 = scalar_select %p30, %s31, %s32
    %p36 = pneg %p30
    %p37 = scmp.eq.s32.totalorder %s9, 1
    %p38 = por %p36, %p37
    %p39 = scmp.ne.s32.totalorder %s31, %s34
    %p40 = scmp.eq.s32.totalorder %s9, 0
    %p41 = por %p39, %p40
    %p42 = scmp.ne.s32.totalorder %s31, %s34
    %p43 = scmp.eq.s32.totalorder %s14, 1
    %p44 = por %p42, %p43
    %p45 = scmp.ne.s32.totalorder %s34, %s35
    %p46 = scmp.eq.s32.totalorder %s14, 0
    %p47 = por %p45, %p46
    %p48 = scmp.ne.s32.totalorder %s34, %s35
    %p49 = scmp.eq.s32.totalorder %s15, 1
    %p50 = por %p48, %p49
    %p52 = scmp.ne.s32.totalorder %s35, %s51
    %p53 = scmp.eq.s32.totalorder %s15, 0
    %p54 = por %p52, %p53
    %s55 = ssub.s32 %s17, %s24
    %p56 = scmp.eq.s32.totalorder %s55, 0
    %s58 = sadd.s32 %s57, 1
    %s59 = scalar_select %p56, %s57, %s58
    %p62 = pneg %p56
    %p63 = scmp.eq.s32.totalorder %s9, 1
    %p64 = por %p62, %p63
    %p65 = scmp.ne.s32.totalorder %s57, %s60
    %p66 = scmp.eq.s32.totalorder %s9, 0
    %p67 = por %p65, %p66
    %p68 = scmp.ne.s32.totalorder %s57, %s60
    %p69 = scmp.eq.s32.totalorder %s14, 1
    %p70 = por %p68, %p69
    %p71 = scmp.ne.s32.totalorder %s60, %s61
    %p72 = scmp.eq.s32.totalorder %s14, 0
    %p73 = por %p71, %p72
    %p74 = scmp.ne.s32.totalorder %s60, %s61
    %p75 = scmp.eq.s32.totalorder %s15, 1
    %p76 = por %p74, %p75
    %p78 = scmp.ne.s32.totalorder %s61, %s77
    %p79 = scmp.eq.s32.totalorder %s15, 0
    %p80 = por %p78, %p79
    %s81 = ssub.s32 %s17, %s24
    %p82 = scmp.eq.s32.totalorder %s81, 0
    %s84 = sadd.s32 %s83, 1
    %s85 = scalar_select %p82, %s83, %s84
    %p88 = pneg %p82
    %p89 = scmp.eq.s32.totalorder %s9, 1
    %p90 = por %p88, %p89
    %p91 = scmp.ne.s32.totalorder %s83, %s86
    %p92 = scmp.eq.s32.totalorder %s9, 0
    %p93 = por %p91, %p92
    %p94 = scmp.ne.s32.totalorder %s83, %s86
    %p95 = scmp.eq.s32.totalorder %s14, 1
    %p96 = por %p94, %p95
    %p97 = scmp.ne.s32.totalorder %s86, %s87
    %p98 = scmp.eq.s32.totalorder %s14, 0
    %p99 = por %p97, %p98
    %p100 = scmp.ne.s32.totalorder %s86, %s87
    %p101 = scmp.eq.s32.totalorder %s15, 1
    %p102 = por %p100, %p101
    %p104 = scmp.ne.s32.totalorder %s87, %s103
    %p105 = scmp.eq.s32.totalorder %s15, 0
    %p106 = por %p104, %p105
    %s107 = ssub.s32 %s16, %s28
    %s108 = ssub.s32 %s17, %s24
    %s109 = sor.u32 %s107, %s108
    %p110 = scmp.eq.s32.totalorder %s109, 0
    %s112 = sadd.s32 %s111, 1
    %s113 = scalar_select %p110, %s111, %s112
    %p116 = pneg %p110
    %p117 = scmp.eq.s32.totalorder %s9, 1
    %p118 = por %p116, %p117
    %p119 = scmp.ne.s32.totalorder %s111, %s114
    %p120 = scmp.eq.s32.totalorder %s9, 0
    %p121 = por %p119, %p120
    %p122 = scmp.ne.s32.totalorder %s111, %s114
    %p123 = scmp.eq.s32.totalorder %s14, 1
    %p124 = por %p122, %p123
    %p125 = scmp.ne.s32.totalorder %s114, %s115
    %p126 = scmp.eq.s32.totalorder %s14, 0
    %p127 = por %p125, %p126
    %p128 = scmp.ne.s32.totalorder %s114, %s115
    %p129 = scmp.eq.s32.totalorder %s15, 1
    %p130 = por %p128, %p129
    %p132 = scmp.ne.s32.totalorder %s115, %s131
    %p133 = scmp.eq.s32.totalorder %s15, 0
    %p134 = por %p132, %p133
    %p135 = scmp.le.s32.totalorder 1, %s9
    %p136 = scmp.lt.s32.totalorder %s9, 3
    %p137 = pnand %p135, %p136
    %p138 = pneg %p137
    // Predicated region
    $region9: #{run_pallas.12} parent=5 // pred_check
      _
    $region10: #{run_pallas.12} parent=5 // pred_check_branch
      %140 = sbr.rel (%p137) target = $region12
    $region11: #{run_pallas.12} parent=5 // pred_region
      %s141 = ssub.s32 %s9, 1
      // Predicated region
      $region13: #{run_pallas.12} parent=11 // pred_check
        %p142 = pneg %p73
      $region14: #{run_pallas.12} parent=11 // pred_check_branch
        %144 = sbr.rel (%p142) target = $region16
      $region15: #{run_pallas.12} parent=11 // pred_region
        %p145 = scmp.lt.s32.totalorder %s19, 0
        %s146 = scalar_select %p145, %s19, 0
        %s147 = smul.addr %s146, 4
        %s148 = scalar_lea.vmem %s1, %s147
      $region16: #{run_pallas.12} parent=11 // pred_fallthru
        _
      // Predicated region
      $region17: #{run_pallas.12} parent=11 // pred_check
        %p149 = pneg %p99
      $region18: #{run_pallas.12} parent=11 // pred_check_branch
        %151 = sbr.rel (%p149) target = $region20
      $region19: #{run_pallas.12} parent=11 // pred_region
        %p152 = scmp.lt.s32.totalorder %s19, 0
        %s153 = scalar_select %p152, %s19, 0
        %s154 = smul.addr %s153, 2
        %s155 = scalar_lea.vmem %s2, %s154
      $region20: #{run_pallas.12} parent=11 // pred_fallthru
        _
    $region12: #{run_pallas.12} parent=5 // pred_fallthru
      _
    %p156 = scmp.lt.s32.totalorder %s9, 2
    // Predicated region
    $region21: #{run_pallas.12} parent=5 // pred_check
      %p157 = pneg %p156
    $region22: #{run_pallas.12} parent=5 // pred_check_branch
      %159 = sbr.rel (%p157) target = $region24
    $region23: #{run_pallas.12} parent=5 // pred_region
      // Predicated region
      $region25: #{run_pallas.12} parent=23 // pred_check
        %p160 = pneg %p41
      $region26: #{run_pallas.12} parent=23 // pred_check_branch
        %162 = sbr.rel (%p160) target = $region28
      $region27: #{run_pallas.12} parent=23 // pred_region
        %p163 = scmp.lt.s32.totalorder %s16, 1
        %s164 = scalar_select %p163, %s16, 1
        %s165 = smul.addr %s164, 20
        %s166 = smul.addr %s165, 4
        %s167 = scalar_lea.vmem %s0, %s166
      $region28: #{run_pallas.12} parent=23 // pred_fallthru
        _
    $region24: #{run_pallas.12} parent=5 // pred_fallthru
      _
    %p168 = scmp.le.s32.totalorder 1, %s9
    %p169 = scmp.lt.s32.totalorder %s9, 3
    %p170 = pnand %p168, %p169
    %p171 = pneg %p170
    // Predicated region
    $region29: #{run_pallas.12} parent=5 // pred_check
      _
    $region30: #{run_pallas.12} parent=5 // pred_check_branch
      %173 = sbr.rel (%p170) target = $region32
    $region31: #{run_pallas.12} parent=5 // pred_region
      %s174 = ssub.s32 %s9, 1
      %p175 = scmp.lt.s32.totalorder %s18, 1
      %s176 = scalar_select %p175, %s18, 1
      %s177 = smul.addr %s176, 20
      %s178 = smul.addr %s177, 4
      %s179 = scalar_lea.vmem %s0, %s178
      %p180 = pneg %p47
      %p181 = pneg %p44
      %p182 = scmp.lt.s32.totalorder %s19, 0
      %s183 = scalar_select %p182, %s19, 0
      %s184 = smul.addr %s183, 4
      %s185 = scalar_lea.vmem %s1, %s184
      %p186 = pneg %p73
      %p187 = pneg %p70
      %p188 = scmp.lt.s32.totalorder %s19, 0
      %s189 = scalar_select %p188, %s19, 0
      %s190 = smul.addr %s189, 2
      %s191 = scalar_lea.vmem %s2, %s190
      %p192 = pneg %p99
      %p193 = pneg %p96
      %p194 = pneg %p127
      %p195 = pneg %p124
      %p196 = scmp.lt.s32.totalorder %s18, 1
      %s197 = scalar_select %p196, %s18, 1
      %p198 = scmp.lt.s32.totalorder %s19, 0
      %s199 = scalar_select %p198, %s19, 0
      %s200 = smul.addr %s197, 8
      %s201 = sadd.s32 %s199, %s200
      %s202 = smul.addr %s201, 4
      %s203 = scalar_lea.vmem %s3, %s202
      %p204 = scmp.lt.s32.totalorder %s18, 1
      %s205 = scalar_select %p204, %s18, 1
      %s206 = smul.addr %s205, 20
      %s207 = smul.addr %s206, 4
      %s208 = scalar_lea.vmem %s0, %s207
      %p209 = scmp.lt.s32.totalorder %s19, 0
      %s210 = scalar_select %p209, %s19, 0
      %s211 = smul.addr %s210, 4
      %s212 = scalar_lea.vmem %s1, %s211
      %p213 = scmp.lt.s32.totalorder %s19, 0
      %s214 = scalar_select %p213, %s19, 0
      %s215 = smul.addr %s214, 2
      %s216 = scalar_lea.vmem %s2, %s215
      %p217 = scmp.lt.s32.totalorder %s18, 1
      %s218 = scalar_select %p217, %s18, 1
      %p219 = scmp.lt.s32.totalorder %s19, 0
      %s220 = scalar_select %p219, %s19, 0
      %s221 = smul.addr %s218, 8
      %s222 = sadd.s32 %s220, %s221
      %s223 = smul.addr %s222, 4
      %s224 = scalar_lea.vmem %s3, %s223
      %v226 = vld [vmem:[%s208] sm:$0xf]
      %v227 = vld [vmem:[%s208 + $0x8] sm:$0xf]
      %v228 = vld [vmem:[%s208 + $0x10] sm:$0xf]
      %v229 = vld [vmem:[%s208 + $0x18] sm:$0xf]
      %v230 = vld [vmem:[%s208 + $0x20] sm:$0xf]
      %v231 = vld [vmem:[%s208 + $0x28] sm:$0xf]
      %v232 = vld [vmem:[%s208 + $0x30] sm:$0xf]
      %v233 = vld [vmem:[%s208 + $0x38] sm:$0xf]
      %v234 = vld [vmem:[%s212] sm:$0xf]
      %v235 = vld [vmem:[%s212 + $0x4] sm:$0xf]
      %v236 = vld [vmem:[%s208 + $0x4] sm:$0x1]
      %v237 = vld [vmem:[%s208 + $0xc] sm:$0x1]
      %v238 = vld [vmem:[%s208 + $0x14] sm:$0x1]
      %v239 = vld [vmem:[%s208 + $0x1c] sm:$0x1]
      %v240 = vld [vmem:[%s208 + $0x24] sm:$0x1]
      %v241 = vld [vmem:[%s208 + $0x2c] sm:$0x1]
      %v242 = vld [vmem:[%s208 + $0x34] sm:$0x1]
      %v243 = vld [vmem:[%s208 + $0x3c] sm:$0x1]
      %vm244 = vsmask.f32 3328
      %vm245 = vsmask.f32 7440
      %vm246 = vmor %vm244, %vm245
      %v248 = vshrl.u32 %v226, 16
      %v250 = vrot.slane %v248, 4
      %v251 = vshll.u32 %v226, 16
      %v253 = vrot.slane %v251, 5
      %v254 = vor.u32 %v250, %v253
      %v255 = vrot.slane %v254, 4
      %v257 = vshll.u32 %v236, 16
      %v259 = vrot.slane %v257, 5
      %v260 = vsel %vm246, %v255, %v259
      %v262 = vshrl.u32 %v227, 16
      %v264 = vrot.slane %v262, 4
      %v265 = vshll.u32 %v227, 16
      %v267 = vrot.slane %v265, 5
      %v268 = vor.u32 %v264, %v267
      %v269 = vrot.slane %v268, 4
      %v271 = vshll.u32 %v237, 16
      %v273 = vrot.slane %v271, 5
      %v274 = vsel %vm246, %v269, %v273
      %v276 = vshrl.u32 %v228, 16
      %v278 = vrot.slane %v276, 4
      %v279 = vshll.u32 %v228, 16
      %v281 = vrot.slane %v279, 5
      %v282 = vor.u32 %v278, %v281
      %v283 = vrot.slane %v282, 4
      %v285 = vshll.u32 %v238, 16
      %v287 = vrot.slane %v285, 5
      %v288 = vsel %vm246, %v283, %v287
      %v290 = vshrl.u32 %v229, 16
      %v292 = vrot.slane %v290, 4
      %v293 = vshll.u32 %v229, 16
      %v295 = vrot.slane %v293, 5
      %v296 = vor.u32 %v292, %v295
      %v297 = vrot.slane %v296, 4
      %v299 = vshll.u32 %v239, 16
      %v301 = vrot.slane %v299, 5
      %v302 = vsel %vm246, %v297, %v301
      %v304 = vshrl.u32 %v230, 16
      %v306 = vrot.slane %v304, 4
      %v307 = vshll.u32 %v230, 16
      %v309 = vrot.slane %v307, 5
      %v310 = vor.u32 %v306, %v309
      %v311 = vrot.slane %v310, 4
      %v313 = vshll.u32 %v240, 16
      %v315 = vrot.slane %v313, 5
      %v316 = vsel %vm246, %v311, %v315
      %v318 = vshrl.u32 %v231, 16
      %v320 = vrot.slane %v318, 4
      %v321 = vshll.u32 %v231, 16
      %v323 = vrot.slane %v321, 5
      %v324 = vor.u32 %v320, %v323
      %v325 = vrot.slane %v324, 4
      %v327 = vshll.u32 %v241, 16
      %v329 = vrot.slane %v327, 5
      %v330 = vsel %vm246, %v325, %v329
      %v332 = vshrl.u32 %v232, 16
      %v334 = vrot.slane %v332, 4
      %v335 = vshll.u32 %v232, 16
      %v337 = vrot.slane %v335, 5
      %v338 = vor.u32 %v334, %v337
      %v339 = vrot.slane %v338, 4
      %v341 = vshll.u32 %v242, 16
      %v343 = vrot.slane %v341, 5
      %v344 = vsel %vm246, %v339, %v343
      %v346 = vshrl.u32 %v233, 16
      %v348 = vrot.slane %v346, 4
      %v349 = vshll.u32 %v233, 16
      %v351 = vrot.slane %v349, 5
      %v352 = vor.u32 %v348, %v351
      %v353 = vrot.slane %v352, 4
      %v355 = vshll.u32 %v243, 16
      %v357 = vrot.slane %v355, 5
      %v358 = vsel %vm246, %v353, %v357
      %s359 = scalar_lea.vmem %s212, 8
      %v360 = vld [vmem:[%s359] sm:$0xf]
      %v361 = vld [vmem:[%s359 + $0x4] sm:$0xf]
      %v362 = vunpack.c.l.b16 %v260
      %v363 = vunpack.c.l.b16 %v274
      %v364 = vunpack.c.l.b16 %v288
      %v365 = vunpack.c.l.b16 %v302
      %v366 = vunpack.c.l.b16 %v316
      %v367 = vunpack.c.l.b16 %v330
      %v368 = vunpack.c.l.b16 %v344
      %v369 = vunpack.c.l.b16 %v358
      %v370 = vpack.c.b16 %v363, %v362
      %v371 = vpack.c.b16 %v365, %v364
      %v372 = vpack.c.b16 %v367, %v366
      %v373 = vpack.c.b16 %v369, %v368
      %v376 = vunpack.c.l.b16 %v360
      %v377 = vunpack.c.l.b16 %v361
      %v378 = vpack.c.b16 %v377, %v376
      %vm380 = vcmask 130048
      %v382 = vsel %vm380, %v370, 0
      %v385 = vsel %vm380, %v371, 0
      %v388 = vsel %vm380, %v372, 0
      %v391 = vsel %vm380, %v373, 0
      %393 = vmatprep.subr.bf16.mxu0 0
      %394 = vmatpush1.bf16.msra.mxu0 %v378
      %395 = vmatprep.subr.bf16.mxu0 0
      %396 = vmatpush1.bf16.msra.mxu0 0
      %397 = vmatprep.subr.bf16.mxu0 0
      %398 = vmatpush1.bf16.msra.mxu0 0
      %399 = vmatprep.subr.bf16.mxu0 0
      %400 = vmatpush1.bf16.msra.mxu0 0
      %401 = vmatprep.subr.bf16.mxu0 0
      %402 = vmatpush1.bf16.msra.mxu0 0
      %403 = vmatprep.subr.bf16.mxu0 0
      %404 = vmatpush1.bf16.msra.mxu0 0
      %405 = vmatprep.subr.bf16.mxu0 0
      %406 = vmatpush1.bf16.msra.mxu0 0
      %407 = vmatprep.subr.bf16.mxu0 0
      %408 = vmatpush1.bf16.msra.mxu0 0
      %409 = vmatprep.subr.bf16.mxu0 0
      %410 = vmatpush1.bf16.msra.mxu0 0
      %411 = vmatprep.subr.bf16.mxu0 0
      %412 = vmatpush1.bf16.msra.mxu0 0
      %413 = vmatprep.subr.bf16.mxu0 0
      %414 = vmatpush1.bf16.msra.mxu0 0
      %415 = vmatprep.subr.bf16.mxu0 0
      %416 = vmatpush1.bf16.msra.mxu0 0
      %417 = vmatprep.subr.bf16.mxu0 0
      %418 = vmatpush1.bf16.msra.mxu0 0
      %419 = vmatprep.subr.bf16.mxu0 0
      %420 = vmatpush1.bf16.msra.mxu0 0
      %421 = vmatprep.subr.bf16.mxu0 0
      %422 = vmatpush1.bf16.msra.mxu0 0
      %423 = vmatprep.subr.bf16.mxu0 0
      %424 = vmatpush1.bf16.msra.mxu0 0
      %425 = vmatprep.mubr.bf16.mxu0 0
      %426 = vmatmul.mubr.bf16.gmra.mrb[0].mxu0 %v382
      %v427 = vpop.f32.mrb[0].mxu0
      %v428 = vadd.f32 0.0, %v427
      %v429 = vpop.f32.mrb[0].mxu0
      %v430 = vpop.f32.mrb[0].mxu0
      %v431 = vadd.f32 0.0, %v430
      %v432 = vpop.f32.mrb[0].mxu0
      %433 = vmatprep.mubr.bf16.mxu0 0
      %434 = vmatmul.mubr.bf16.gmra.mrb[0].mxu0 %v385
      %v435 = vpop.f32.mrb[0].mxu0
      %v436 = vadd.f32 0.0, %v435
      %v437 = vpop.f32.mrb[0].mxu0
      %v438 = vpop.f32.mrb[0].mxu0
      %v439 = vadd.f32 0.0, %v438
      %v440 = vpop.f32.mrb[0].mxu0
      %441 = vmatprep.mubr.bf16.mxu0 0
      %442 = vmatmul.mubr.bf16.gmra.mrb[0].mxu0 %v388
      %v443 = vpop.f32.mrb[0].mxu0
      %v444 = vadd.f32 0.0, %v443
      %v445 = vpop.f32.mrb[0].mxu0
      %v446 = vpop.f32.mrb[0].mxu0
      %v447 = vadd.f32 0.0, %v446
      %v448 = vpop.f32.mrb[0].mxu0
      %449 = vmatprep.mubr.bf16.mxu0 0
      %450 = vmatmul.mubr.bf16.gmra.mrb[0].mxu0 %v391
      %v451 = vpop.f32.mrb[0].mxu0
      %v452 = vadd.f32 0.0, %v451
      %v453 = vpop.f32.mrb[0].mxu0
      %v454 = vpop.f32.mrb[0].mxu0
      %v455 = vadd.f32 0.0, %v454
      %v456 = vpop.f32.mrb[0].mxu0
      %457 = vdwg.mxu0
      %v466 = vunpack.c.l.b16 %v226
      %v467 = vunpack.c.l.b16 %v227
      %v468 = vunpack.c.l.b16 %v228
      %v469 = vunpack.c.l.b16 %v229
      %v470 = vunpack.c.l.b16 %v230
      %v471 = vunpack.c.l.b16 %v231
      %v472 = vunpack.c.l.b16 %v232
      %v473 = vunpack.c.l.b16 %v233
      %v474 = vpack.c.b16 %v467, %v466
      %v475 = vpack.c.b16 %v469, %v468
      %v476 = vpack.c.b16 %v471, %v470
      %v477 = vpack.c.b16 %v473, %v472
      %v480 = vunpack.c.l.b16 %v234
      %v481 = vunpack.c.l.b16 %v235
      %v482 = vpack.c.b16 %v481, %v480
      %v485 = vsel %vm380, %v474, 0
      %v488 = vsel %vm380, %v475, 0
      %v491 = vsel %vm380, %v476, 0
      %v494 = vsel %vm380, %v477, 0
      %496 = vmatprep.subr.bf16.mxu0 0
      %497 = vmatpush1.bf16.msra.mxu0 %v482
      %498 = vmatprep.subr.bf16.mxu0 0
      %499 = vmatpush1.bf16.msra.mxu0 0
      %500 = vmatprep.subr.bf16.mxu0 0
      %501 = vmatpush1.bf16.msra.mxu0 0
      %502 = vmatprep.subr.bf16.mxu0 0
      %503 = vmatpush1.bf16.msra.mxu0 0
      %504 = vmatprep.subr.bf16.mxu0 0
      %505 = vmatpush1.bf16.msra.mxu0 0
      %506 = vmatprep.subr.bf16.mxu0 0
      %507 = vmatpush1.bf16.msra.mxu0 0
      %508 = vmatprep.subr.bf16.mxu0 0
      %509 = vmatpush1.bf16.msra.mxu0 0
      %510 = vmatprep.subr.bf16.mxu0 0
      %511 = vmatpush1.bf16.msra.mxu0 0
      %512 = vmatprep.subr.bf16.mxu0 0
      %513 = vmatpush1.bf16.msra.mxu0 0
      %514 = vmatprep.subr.bf16.mxu0 0
      %515 = vmatpush1.bf16.msra.mxu0 0
      %516 = vmatprep.subr.bf16.mxu0 0
      %517 = vmatpush1.bf16.msra.mxu0 0
      %518 = vmatprep.subr.bf16.mxu0 0
      %519 = vmatpush1.bf16.msra.mxu0 0
      %520 = vmatprep.subr.bf16.mxu0 0
      %521 = vmatpush1.bf16.msra.mxu0 0
      %522 = vmatprep.subr.bf16.mxu0 0
      %523 = vmatpush1.bf16.msra.mxu0 0
      %524 = vmatprep.subr.bf16.mxu0 0
      %525 = vmatpush1.bf16.msra.mxu0 0
      %526 = vmatprep.subr.bf16.mxu0 0
      %527 = vmatpush1.bf16.msra.mxu0 0
      %528 = vmatprep.mubr.bf16.mxu0 0
      %529 = vmatmul.mubr.bf16.gmra.mrb[0].mxu0 %v485
      %v530 = vpop.f32.mrb[0].mxu0
      %v531 = vadd.f32 %v428, %v530
      %v532 = vpop.f32.mrb[0].mxu0
      %v533 = vpop.f32.mrb[0].mxu0
      %v534 = vadd.f32 %v431, %v533
      %v535 = vpop.f32.mrb[0].mxu0
      %536 = vmatprep.mubr.bf16.mxu0 0
      %537 = vmatmul.mubr.bf16.gmra.mrb[0].mxu0 %v488
      %v538 = vpop.f32.mrb[0].mxu0
      %v539 = vadd.f32 %v436, %v538
      %v540 = vpop.f32.mrb[0].mxu0
      %v541 = vpop.f32.mrb[0].mxu0
      %v542 = vadd.f32 %v439, %v541
      %v543 = vpop.f32.mrb[0].mxu0
      %544 = vmatprep.mubr.bf16.mxu0 0
      %545 = vmatmul.mubr.bf16.gmra.mrb[0].mxu0 %v491
      %v546 = vpop.f32.mrb[0].mxu0
      %v547 = vadd.f32 %v444, %v546
      %v548 = vpop.f32.mrb[0].mxu0
      %v549 = vpop.f32.mrb[0].mxu0
      %v550 = vadd.f32 %v447, %v549
      %v551 = vpop.f32.mrb[0].mxu0
      %552 = vmatprep.mubr.bf16.mxu0 0
      %553 = vmatmul.mubr.bf16.gmra.mrb[0].mxu0 %v494
      %v554 = vpop.f32.mrb[0].mxu0
      %v555 = vadd.f32 %v452, %v554
      %v556 = vpop.f32.mrb[0].mxu0
      %v557 = vpop.f32.mrb[0].mxu0
      %v558 = vadd.f32 %v455, %v557
      %v559 = vpop.f32.mrb[0].mxu0
      %560 = vdwg.mxu0
      %v561 = vld [vmem:[%s208] sm:$0xe]
      %v562 = vld [vmem:[%s208 + $0x8] sm:$0xe]
      %v563 = vld [vmem:[%s208 + $0x10] sm:$0xe]
      %v564 = vld [vmem:[%s208 + $0x18] sm:$0xe]
      %v565 = vld [vmem:[%s208 + $0x20] sm:$0xe]
      %v566 = vld [vmem:[%s208 + $0x28] sm:$0xe]
      %v567 = vld [vmem:[%s208 + $0x30] sm:$0xe]
      %v568 = vld [vmem:[%s208 + $0x38] sm:$0xe]
      %vm585 = vcmask 1042432
      %vm586 = vcmask 1046532
      %vm587 = vmor %vm585, %vm586
      %v588 = vrot.slane %v561, 5
      %v589 = vrot.slane %v588, 4
      %v590 = vrot.slane %v236, 5
      %v591 = vsel %vm587, %v589, %v590
      %v592 = vrot.slane %v562, 5
      %v593 = vrot.slane %v592, 4
      %v594 = vrot.slane %v237, 5
      %v595 = vsel %vm587, %v593, %v594
      %v596 = vrot.slane %v563, 5
      %v597 = vrot.slane %v596, 4
      %v598 = vrot.slane %v238, 5
      %v599 = vsel %vm587, %v597, %v598
      %v600 = vrot.slane %v564, 5
      %v601 = vrot.slane %v600, 4
      %v602 = vrot.slane %v239, 5
      %v603 = vsel %vm587, %v601, %v602
      %v604 = vrot.slane %v565, 5
      %v605 = vrot.slane %v604, 4
      %v606 = vrot.slane %v240, 5
      %v607 = vsel %vm587, %v605, %v606
      %v608 = vrot.slane %v566, 5
      %v609 = vrot.slane %v608, 4
      %v610 = vrot.slane %v241, 5
      %v611 = vsel %vm587, %v609, %v610
      %v612 = vrot.slane %v567, 5
      %v613 = vrot.slane %v612, 4
      %v614 = vrot.slane %v242, 5
      %v615 = vsel %vm587, %v613, %v614
      %v616 = vrot.slane %v568, 5
      %v617 = vrot.slane %v616, 4
      %v618 = vrot.slane %v243, 5
      %v619 = vsel %vm587, %v617, %v618
      %s620 = scalar_lea.vmem %s212, 16
      %v621 = vld [vmem:[%s620] sm:$0xf]
      %v622 = vld [vmem:[%s620 + $0x4] sm:$0xf]
      %v623 = vunpack.c.l.b16 %v591
      %v624 = vunpack.c.l.b16 %v595
      %v625 = vunpack.c.l.b16 %v599
      %v626 = vunpack.c.l.b16 %v603
      %v627 = vunpack.c.l.b16 %v607
      %v628 = vunpack.c.l.b16 %v611
      %v629 = vunpack.c.l.b16 %v615
      %v630 = vunpack.c.l.b16 %v619
      %v631 = vpack.c.b16 %v624, %v623
      %v632 = vpack.c.b16 %v626, %v625
      %v633 = vpack.c.b16 %v628, %v627
      %v634 = vpack.c.b16 %v630, %v629
      %v637 = vunpack.c.l.b16 %v621
      %v638 = vunpack.c.l.b16 %v622
      %v639 = vpack.c.b16 %v638, %v637
      %v642 = vsel %vm380, %v631, 0
      %v645 = vsel %vm380, %v632, 0
      %v648 = vsel %vm380, %v633, 0
      %v651 = vsel %vm380, %v634, 0
      %653 = vmatprep.subr.bf16.mxu0 0
      %654 = vmatpush1.bf16.msra.mxu0 %v639
      %655 = vmatprep.subr.bf16.mxu0 0
      %656 = vmatpush1.bf16.msra.mxu0 0
      %657 = vmatprep.subr.bf16.mxu0 0
      %658 = vmatpush1.bf16.msra.mxu0 0
      %659 = vmatprep.subr.bf16.mxu0 0
      %660 = vmatpush1.bf16.msra.mxu0 0
      %661 = vmatprep.subr.bf16.mxu0 0
      %662 = vmatpush1.bf16.msra.mxu0 0
      %663 = vmatprep.subr.bf16.mxu0 0
      %664 = vmatpush1.bf16.msra.mxu0 0
      %665 = vmatprep.subr.bf16.mxu0 0
      %666 = vmatpush1.bf16.msra.mxu0 0
      %667 = vmatprep.subr.bf16.mxu0 0
      %668 = vmatpush1.bf16.msra.mxu0 0
      %669 = vmatprep.subr.bf16.mxu0 0
      %670 = vmatpush1.bf16.msra.mxu0 0
      %671 = vmatprep.subr.bf16.mxu0 0
      %672 = vmatpush1.bf16.msra.mxu0 0
      %673 = vmatprep.subr.bf16.mxu0 0
      %674 = vmatpush1.bf16.msra.mxu0 0
      %675 = vmatprep.subr.bf16.mxu0 0
      %676 = vmatpush1.bf16.msra.mxu0 0
      %677 = vmatprep.subr.bf16.mxu0 0
      %678 = vmatpush1.bf16.msra.mxu0 0
      %679 = vmatprep.subr.bf16.mxu0 0
      %680 = vmatpush1.bf16.msra.mxu0 0
      %681 = vmatprep.subr.bf16.mxu0 0
      %682 = vmatpush1.bf16.msra.mxu0 0
      %683 = vmatprep.subr.bf16.mxu0 0
      %684 = vmatpush1.bf16.msra.mxu0 0
      %685 = vmatprep.mubr.bf16.mxu0 0
      %686 = vmatmul.mubr.bf16.gmra.mrb[0].mxu0 %v642
      %v687 = vpop.f32.mrb[0].mxu0
      %v688 = vadd.f32 0.0, %v687
      %v689 = vpop.f32.mrb[0].mxu0
      %v690 = vpop.f32.mrb[0].mxu0
      %v691 = vadd.f32 0.0, %v690
      %v692 = vpop.f32.mrb[0].mxu0
      %693 = vmatprep.mubr.bf16.mxu0 0
      %694 = vmatmul.mubr.bf16.gmra.mrb[0].mxu0 %v645
      %v695 = vpop.f32.mrb[0].mxu0
      %v696 = vadd.f32 0.0, %v695
      %v697 = vpop.f32.mrb[0].mxu0
      %v698 = vpop.f32.mrb[0].mxu0
      %v699 = vadd.f32 0.0, %v698
      %v700 = vpop.f32.mrb[0].mxu0
      %701 = vmatprep.mubr.bf16.mxu0 0
      %702 = vmatmul.mubr.bf16.gmra.mrb[0].mxu0 %v648
      %v703 = vpop.f32.mrb[0].mxu0
      %v704 = vadd.f32 0.0, %v703
      %v705 = vpop.f32.mrb[0].mxu0
      %v706 = vpop.f32.mrb[0].mxu0
      %v707 = vadd.f32 0.0, %v706
      %v708 = vpop.f32.mrb[0].mxu0
      %709 = vmatprep.mubr.bf16.mxu0 0
      %710 = vmatmul.mubr.bf16.gmra.mrb[0].mxu0 %v651
      %v711 = vpop.f32.mrb[0].mxu0
      %v712 = vadd.f32 0.0, %v711
      %v713 = vpop.f32.mrb[0].mxu0
      %v714 = vpop.f32.mrb[0].mxu0
      %v715 = vadd.f32 0.0, %v714
      %v716 = vpop.f32.mrb[0].mxu0
      %717 = vdwg.mxu0
      %v718 = vadd.f32 %v531, %v688
      %v719 = vadd.f32 %v534, %v691
      %v720 = vadd.f32 %v539, %v696
      %v721 = vadd.f32 %v542, %v699
      %v722 = vadd.f32 %v547, %v704
      %v723 = vadd.f32 %v550, %v707
      %v724 = vadd.f32 %v555, %v712
      %v725 = vadd.f32 %v558, %v715
      %s726 = scalar_lea.vmem %s208, 8
      %v727 = vld [vmem:[%s726] sm:$0xf]
      %v728 = vld [vmem:[%s726 + $0x8] sm:$0xf]
      %v729 = vld [vmem:[%s726 + $0x10] sm:$0xf]
      %v730 = vld [vmem:[%s726 + $0x18] sm:$0xf]
      %v731 = vld [vmem:[%s726 + $0x20] sm:$0xf]
      %v732 = vld [vmem:[%s726 + $0x28] sm:$0xf]
      %v733 = vld [vmem:[%s726 + $0x30] sm:$0xf]
      %v734 = vld [vmem:[%s726 + $0x38] sm:$0xf]
      %s735 = scalar_lea.vmem %s212, 24
      %v736 = vld [vmem:[%s735] sm:$0xf]
      %v737 = vld [vmem:[%s735 + $0x4] sm:$0xf]
      %v746 = vunpack.c.l.b16 %v727
      %v747 = vunpack.c.l.b16 %v728
      %v748 = vunpack.c.l.b16 %v729
      %v749 = vunpack.c.l.b16 %v730
      %v750 = vunpack.c.l.b16 %v731
      %v751 = vunpack.c.l.b16 %v732
      %v752 = vunpack.c.l.b16 %v733
      %v753 = vunpack.c.l.b16 %v734
      %v754 = vpack.c.b16 %v747, %v746
      %v755 = vpack.c.b16 %v749, %v748
      %v756 = vpack.c.b16 %v751, %v750
      %v757 = vpack.c.b16 %v753, %v752
      %v760 = vunpack.c.l.b16 %v736
      %v761 = vunpack.c.l.b16 %v737
      %v762 = vpack.c.b16 %v761, %v760
      %v765 = vsel %vm380, %v754, 0
      %v768 = vsel %vm380, %v755, 0
      %v771 = vsel %vm380, %v756, 0
      %v774 = vsel %vm380, %v757, 0
      %776 = vmatprep.subr.bf16.mxu0 0
      %777 = vmatpush1.bf16.msra.mxu0 %v762
      %778 = vmatprep.subr.bf16.mxu0 0
      %779 = vmatpush1.bf16.msra.mxu0 0
      %780 = vmatprep.subr.bf16.mxu0 0
      %781 = vmatpush1.bf16.msra.mxu0 0
      %782 = vmatprep.subr.bf16.mxu0 0
      %783 = vmatpush1.bf16.msra.mxu0 0
      %784 = vmatprep.subr.bf16.mxu0 0
      %785 = vmatpush1.bf16.msra.mxu0 0
      %786 = vmatprep.subr.bf16.mxu0 0
      %787 = vmatpush1.bf16.msra.mxu0 0
      %788 = vmatprep.subr.bf16.mxu0 0
      %789 = vmatpush1.bf16.msra.mxu0 0
      %790 = vmatprep.subr.bf16.mxu0 0
      %791 = vmatpush1.bf16.msra.mxu0 0
      %792 = vmatprep.subr.bf16.mxu0 0
      %793 = vmatpush1.bf16.msra.mxu0 0
      %794 = vmatprep.subr.bf16.mxu0 0
      %795 = vmatpush1.bf16.msra.mxu0 0
      %796 = vmatprep.subr.bf16.mxu0 0
      %797 = vmatpush1.bf16.msra.mxu0 0
      %798 = vmatprep.subr.bf16.mxu0 0
      %799 = vmatpush1.bf16.msra.mxu0 0
      %800 = vmatprep.subr.bf16.mxu0 0
      %801 = vmatpush1.bf16.msra.mxu0 0
      %802 = vmatprep.subr.bf16.mxu0 0
      %803 = vmatpush1.bf16.msra.mxu0 0
      %804 = vmatprep.subr.bf16.mxu0 0
      %805 = vmatpush1.bf16.msra.mxu0 0
      %806 = vmatprep.subr.bf16.mxu0 0
      %807 = vmatpush1.bf16.msra.mxu0 0
      %808 = vmatprep.mubr.bf16.mxu0 0
      %809 = vmatmul.mubr.bf16.gmra.mrb[0].mxu0 %v765
      %v810 = vpop.f32.mrb[0].mxu0
      %v811 = vadd.f32 0.0, %v810
      %v812 = vpop.f32.mrb[0].mxu0
      %v813 = vpop.f32.mrb[0].mxu0
      %v814 = vadd.f32 0.0, %v813
      %v815 = vpop.f32.mrb[0].mxu0
      %816 = vmatprep.mubr.bf16.mxu0 0
      %817 = vmatmul.mubr.bf16.gmra.mrb[0].mxu0 %v768
      %v818 = vpop.f32.mrb[0].mxu0
      %v819 = vadd.f32 0.0, %v818
      %v820 = vpop.f32.mrb[0].mxu0
      %v821 = vpop.f32.mrb[0].mxu0
      %v822 = vadd.f32 0.0, %v821
      %v823 = vpop.f32.mrb[0].mxu0
      %824 = vmatprep.mubr.bf16.mxu0 0
      %825 = vmatmul.mubr.bf16.gmra.mrb[0].mxu0 %v771
      %v826 = vpop.f32.mrb[0].mxu0
      %v827 = vadd.f32 0.0, %v826
      %v828 = vpop.f32.mrb[0].mxu0
      %v829 = vpop.f32.mrb[0].mxu0
      %v830 = vadd.f32 0.0, %v829
      %v831 = vpop.f32.mrb[0].mxu0
      %832 = vmatprep.mubr.bf16.mxu0 0
      %833 = vmatmul.mubr.bf16.gmra.mrb[0].mxu0 %v774
      %v834 = vpop.f32.mrb[0].mxu0
      %v835 = vadd.f32 0.0, %v834
      %v836 = vpop.f32.mrb[0].mxu0
      %v837 = vpop.f32.mrb[0].mxu0
      %v838 = vadd.f32 0.0, %v837
      %v839 = vpop.f32.mrb[0].mxu0
      %840 = vdwg.mxu0
      %v841 = vadd.f32 %v718, %v811
      %v842 = vadd.f32 %v719, %v814
      %v843 = vadd.f32 %v720, %v819
      %v844 = vadd.f32 %v721, %v822
      %v845 = vadd.f32 %v722, %v827
      %v846 = vadd.f32 %v723, %v830
      %v847 = vadd.f32 %v724, %v835
      %v848 = vadd.f32 %v725, %v838
      %v849 = vld [vmem:[%s726] sm:$0xf]
      %v850 = vld [vmem:[%s726 + $0x4] sm:$0x1]
      %v851 = vld [vmem:[%s726 + $0x8] sm:$0xf]
      %v852 = vld [vmem:[%s726 + $0xc] sm:$0x1]
      %v853 = vld [vmem:[%s726 + $0x10] sm:$0xf]
      %v854 = vld [vmem:[%s726 + $0x14] sm:$0x1]
      %v855 = vld [vmem:[%s726 + $0x18] sm:$0xf]
      %v856 = vld [vmem:[%s726 + $0x1c] sm:$0x1]
      %v857 = vld [vmem:[%s726 + $0x20] sm:$0xf]
      %v858 = vld [vmem:[%s726 + $0x24] sm:$0x1]
      %v859 = vld [vmem:[%s726 + $0x28] sm:$0xf]
      %v860 = vld [vmem:[%s726 + $0x2c] sm:$0x1]
      %v861 = vld [vmem:[%s726 + $0x30] sm:$0xf]
      %v862 = vld [vmem:[%s726 + $0x34] sm:$0x1]
      %v863 = vld [vmem:[%s726 + $0x38] sm:$0xf]
      %v864 = vld [vmem:[%s726 + $0x3c] sm:$0x1]
      %v866 = vshrl.u32 %v849, 16
      %v868 = vrot.slane %v866, 4
      %v869 = vshll.u32 %v849, 16
      %v871 = vrot.slane %v869, 5
      %v872 = vor.u32 %v868, %v871
      %v873 = vrot.slane %v872, 4
      %v875 = vshll.u32 %v850, 16
      %v877 = vrot.slane %v875, 5
      %v878 = vsel %vm246, %v873, %v877
      %v880 = vshrl.u32 %v851, 16
      %v882 = vrot.slane %v880, 4
      %v883 = vshll.u32 %v851, 16
      %v885 = vrot.slane %v883, 5
      %v886 = vor.u32 %v882, %v885
      %v887 = vrot.slane %v886, 4
      %v889 = vshll.u32 %v852, 16
      %v891 = vrot.slane %v889, 5
      %v892 = vsel %vm246, %v887, %v891
      %v894 = vshrl.u32 %v853, 16
      %v896 = vrot.slane %v894, 4
      %v897 = vshll.u32 %v853, 16
      %v899 = vrot.slane %v897, 5
      %v900 = vor.u32 %v896, %v899
      %v901 = vrot.slane %v900, 4
      %v903 = vshll.u32 %v854, 16
      %v905 = vrot.slane %v903, 5
      %v906 = vsel %vm246, %v901, %v905
      %v908 = vshrl.u32 %v855, 16
      %v910 = vrot.slane %v908, 4
      %v911 = vshll.u32 %v855, 16
      %v913 = vrot.slane %v911, 5
      %v914 = vor.u32 %v910, %v913
      %v915 = vrot.slane %v914, 4
      %v917 = vshll.u32 %v856, 16
      %v919 = vrot.slane %v917, 5
      %v920 = vsel %vm246, %v915, %v919
      %v922 = vshrl.u32 %v857, 16
      %v924 = vrot.slane %v922, 4
      %v925 = vshll.u32 %v857, 16
      %v927 = vrot.slane %v925, 5
      %v928 = vor.u32 %v924, %v927
      %v929 = vrot.slane %v928, 4
      %v931 = vshll.u32 %v858, 16
      %v933 = vrot.slane %v931, 5
      %v934 = vsel %vm246, %v929, %v933
      %v936 = vshrl.u32 %v859, 16
      %v938 = vrot.slane %v936, 4
      %v939 = vshll.u32 %v859, 16
      %v941 = vrot.slane %v939, 5
      %v942 = vor.u32 %v938, %v941
      %v943 = vrot.slane %v942, 4
      %v945 = vshll.u32 %v860, 16
      %v947 = vrot.slane %v945, 5
      %v948 = vsel %vm246, %v943, %v947
      %v950 = vshrl.u32 %v861, 16
      %v952 = vrot.slane %v950, 4
      %v953 = vshll.u32 %v861, 16
      %v955 = vrot.slane %v953, 5
      %v956 = vor.u32 %v952, %v955
      %v957 = vrot.slane %v956, 4
      %v959 = vshll.u32 %v862, 16
      %v961 = vrot.slane %v959, 5
      %v962 = vsel %vm246, %v957, %v961
      %v964 = vshrl.u32 %v863, 16
      %v966 = vrot.slane %v964, 4
      %v967 = vshll.u32 %v863, 16
      %v969 = vrot.slane %v967, 5
      %v970 = vor.u32 %v966, %v969
      %v971 = vrot.slane %v970, 4
      %v973 = vshll.u32 %v864, 16
      %v975 = vrot.slane %v973, 5
      %v976 = vsel %vm246, %v971, %v975
      %s977 = scalar_lea.vmem %s212, 32
      %v978 = vld [vmem:[%s977] sm:$0xf]
      %v979 = vld [vmem:[%s977 + $0x4] sm:$0xf]
      %v980 = vunpack.c.l.b16 %v878
      %v981 = vunpack.c.l.b16 %v892
      %v982 = vunpack.c.l.b16 %v906
      %v983 = vunpack.c.l.b16 %v920
      %v984 = vunpack.c.l.b16 %v934
      %v985 = vunpack.c.l.b16 %v948
      %v986 = vunpack.c.l.b16 %v962
      %v987 = vunpack.c.l.b16 %v976
      %v988 = vpack.c.b16 %v981, %v980
      %v989 = vpack.c.b16 %v983, %v982
      %v990 = vpack.c.b16 %v985, %v984
      %v991 = vpack.c.b16 %v987, %v986
      %v994 = vunpack.c.l.b16 %v978
      %v995 = vunpack.c.l.b16 %v979
      %v996 = vpack.c.b16 %v995, %v994
      %v999 = vsel %vm380, %v988, 0
      %v1002 = vsel %vm380, %v989, 0
      %v1005 = vsel %vm380, %v990, 0
      %v1008 = vsel %vm380, %v991, 0
      %1010 = vmatprep.subr.bf16.mxu0 0
      %1011 = vmatpush1.bf16.msra.mxu0 %v996
      %1012 = vmatprep.subr.bf16.mxu0 0
      %1013 = vmatpush1.bf16.msra.mxu0 0
      %1014 = vmatprep.subr.bf16.mxu0 0
      %1015 = vmatpush1.bf16.msra.mxu0 0
      %1016 = vmatprep.subr.bf16.mxu0 0
      %1017 = vmatpush1.bf16.msra.mxu0 0
      %1018 = vmatprep.subr.bf16.mxu0 0
      %1019 = vmatpush1.bf16.msra.mxu0 0
      %1020 = vmatprep.subr.bf16.mxu0 0
      %1021 = vmatpush1.bf16.msra.mxu0 0
      %1022 = vmatprep.subr.bf16.mxu0 0
      %1023 = vmatpush1.bf16.msra.mxu0 0
      %1024 = vmatprep.subr.bf16.mxu0 0
      %1025 = vmatpush1.bf16.msra.mxu0 0
      %1026 = vmatprep.subr.bf16.mxu0 0
      %1027 = vmatpush1.bf16.msra.mxu0 0
      %1028 = vmatprep.subr.bf16.mxu0 0
      %1029 = vmatpush1.bf16.msra.mxu0 0
      %1030 = vmatprep.subr.bf16.mxu0 0
      %1031 = vmatpush1.bf16.msra.mxu0 0
      %1032 = vmatprep.subr.bf16.mxu0 0
      %1033 = vmatpush1.bf16.msra.mxu0 0
      %1034 = vmatprep.subr.bf16.mxu0 0
      %1035 = vmatpush1.bf16.msra.mxu0 0
      %1036 = vmatprep.subr.bf16.mxu0 0
      %1037 = vmatpush1.bf16.msra.mxu0 0
      %1038 = vmatprep.subr.bf16.mxu0 0
      %1039 = vmatpush1.bf16.msra.mxu0 0
      %1040 = vmatprep.subr.bf16.mxu0 0
      %1041 = vmatpush1.bf16.msra.mxu0 0
      %1042 = vmatprep.mubr.bf16.mxu0 0
      %1043 = vmatmul.mubr.bf16.gmra.mrb[0].mxu0 %v999
      %v1044 = vpop.f32.mrb[0].mxu0
      %v1045 = vadd.f32 0.0, %v1044
      %v1046 = vpop.f32.mrb[0].mxu0
      %v1047 = vpop.f32.mrb[0].mxu0
      %v1048 = vadd.f32 0.0, %v1047
      %v1049 = vpop.f32.mrb[0].mxu0
      %1050 = vmatprep.mubr.bf16.mxu0 0
      %1051 = vmatmul.mubr.bf16.gmra.mrb[0].mxu0 %v1002
      %v1052 = vpop.f32.mrb[0].mxu0
      %v1053 = vadd.f32 0.0, %v1052
      %v1054 = vpop.f32.mrb[0].mxu0
      %v1055 = vpop.f32.mrb[0].mxu0
      %v1056 = vadd.f32 0.0, %v1055
      %v1057 = vpop.f32.mrb[0].mxu0
      %1058 = vmatprep.mubr.bf16.mxu0 0
      %1059 = vmatmul.mubr.bf16.gmra.mrb[0].mxu0 %v1005
      %v1060 = vpop.f32.mrb[0].mxu0
      %v1061 = vadd.f32 0.0, %v1060
      %v1062 = vpop.f32.mrb[0].mxu0
      %v1063 = vpop.f32.mrb[0].mxu0
      %v1064 = vadd.f32 0.0, %v1063
      %v1065 = vpop.f32.mrb[0].mxu0
      %1066 = vmatprep.mubr.bf16.mxu0 0
      %1067 = vmatmul.mubr.bf16.gmra.mrb[0].mxu0 %v1008
      %v1068 = vpop.f32.mrb[0].mxu0
      %v1069 = vadd.f32 0.0, %v1068
      %v1070 = vpop.f32.mrb[0].mxu0
      %v1071 = vpop.f32.mrb[0].mxu0
      %v1072 = vadd.f32 0.0, %v1071
      %v1073 = vpop.f32.mrb[0].mxu0
      %1074 = vdwg.mxu0
      %v1075 = vadd.f32 %v841, %v1045
      %v1076 = vadd.f32 %v842, %v1048
      %v1077 = vadd.f32 %v843, %v1053
      %v1078 = vadd.f32 %v844, %v1056
      %v1079 = vadd.f32 %v845, %v1061
      %v1080 = vadd.f32 %v846, %v1064
      %v1081 = vadd.f32 %v847, %v1069
      %v1082 = vadd.f32 %v848, %v1072
      %v1083 = vld [vmem:[%s726] sm:$0xe]
      %v1084 = vld [vmem:[%s726 + $0x8] sm:$0xe]
      %v1085 = vld [vmem:[%s726 + $0x10] sm:$0xe]
      %v1086 = vld [vmem:[%s726 + $0x18] sm:$0xe]
      %v1087 = vld [vmem:[%s726 + $0x20] sm:$0xe]
      %v1088 = vld [vmem:[%s726 + $0x28] sm:$0xe]
      %v1089 = vld [vmem:[%s726 + $0x30] sm:$0xe]
      %v1090 = vld [vmem:[%s726 + $0x38] sm:$0xe]
      %v1107 = vrot.slane %v1083, 5
      %v1108 = vrot.slane %v1107, 4
      %v1109 = vrot.slane %v850, 5
      %v1110 = vsel %vm587, %v1108, %v1109
      %v1111 = vrot.slane %v1084, 5
      %v1112 = vrot.slane %v1111, 4
      %v1113 = vrot.slane %v852, 5
      %v1114 = vsel %vm587, %v1112, %v1113
      %v1115 = vrot.slane %v1085, 5
      %v1116 = vrot.slane %v1115, 4
      %v1117 = vrot.slane %v854, 5
      %v1118 = vsel %vm587, %v1116, %v1117
      %v1119 = vrot.slane %v1086, 5
      %v1120 = vrot.slane %v1119, 4
      %v1121 = vrot.slane %v856, 5
      %v1122 = vsel %vm587, %v1120, %v1121
      %v1123 = vrot.slane %v1087, 5
      %v1124 = vrot.slane %v1123, 4
      %v1125 = vrot.slane %v858, 5
      %v1126 = vsel %vm587, %v1124, %v1125
      %v1127 = vrot.slane %v1088, 5
      %v1128 = vrot.slane %v1127, 4
      %v1129 = vrot.slane %v860, 5
      %v1130 = vsel %vm587, %v1128, %v1129
      %v1131 = vrot.slane %v1089, 5
      %v1132 = vrot.slane %v1131, 4
      %v1133 = vrot.slane %v862, 5
      %v1134 = vsel %vm587, %v1132, %v1133
      %v1135 = vrot.slane %v1090, 5
      %v1136 = vrot.slane %v1135, 4
      %v1137 = vrot.slane %v864, 5
      %v1138 = vsel %vm587, %v1136, %v1137
      %s1139 = scalar_lea.vmem %s212, 40
      %v1140 = vld [vmem:[%s1139] sm:$0xf]
      %v1141 = vld [vmem:[%s1139 + $0x4] sm:$0xf]
      %v1142 = vunpack.c.l.b16 %v1110
      %v1143 = vunpack.c.l.b16 %v1114
      %v1144 = vunpack.c.l.b16 %v1118
      %v1145 = vunpack.c.l.b16 %v1122
      %v1146 = vunpack.c.l.b16 %v1126
      %v1147 = vunpack.c.l.b16 %v1130
      %v1148 = vunpack.c.l.b16 %v1134
      %v1149 = vunpack.c.l.b16 %v1138
      %v1150 = vpack.c.b16 %v1143, %v1142
      %v1151 = vpack.c.b16 %v1145, %v1144
      %v1152 = vpack.c.b16 %v1147, %v1146
      %v1153 = vpack.c.b16 %v1149, %v1148
      %v1156 = vunpack.c.l.b16 %v1140
      %v1157 = vunpack.c.l.b16 %v1141
      %v1158 = vpack.c.b16 %v1157, %v1156
      %v1161 = vsel %vm380, %v1150, 0
      %v1164 = vsel %vm380, %v1151, 0
      %v1167 = vsel %vm380, %v1152, 0
      %v1170 = vsel %vm380, %v1153, 0
      %1172 = vmatprep.subr.bf16.mxu0 0
      %1173 = vmatpush1.bf16.msra.mxu0 %v1158
      %1174 = vmatprep.subr.bf16.mxu0 0
      %1175 = vmatpush1.bf16.msra.mxu0 0
      %1176 = vmatprep.subr.bf16.mxu0 0
      %1177 = vmatpush1.bf16.msra.mxu0 0
      %1178 = vmatprep.subr.bf16.mxu0 0
      %1179 = vmatpush1.bf16.msra.mxu0 0
      %1180 = vmatprep.subr.bf16.mxu0 0
      %1181 = vmatpush1.bf16.msra.mxu0 0
      %1182 = vmatprep.subr.bf16.mxu0 0
      %1183 = vmatpush1.bf16.msra.mxu0 0
      %1184 = vmatprep.subr.bf16.mxu0 0
      %1185 = vmatpush1.bf16.msra.mxu0 0
      %1186 = vmatprep.subr.bf16.mxu0 0
      %1187 = vmatpush1.bf16.msra.mxu0 0
      %1188 = vmatprep.subr.bf16.mxu0 0
      %1189 = vmatpush1.bf16.msra.mxu0 0
      %1190 = vmatprep.subr.bf16.mxu0 0
      %1191 = vmatpush1.bf16.msra.mxu0 0
      %1192 = vmatprep.subr.bf16.mxu0 0
      %1193 = vmatpush1.bf16.msra.mxu0 0
      %1194 = vmatprep.subr.bf16.mxu0 0
      %1195 = vmatpush1.bf16.msra.mxu0 0
      %1196 = vmatprep.subr.bf16.mxu0 0
      %1197 = vmatpush1.bf16.msra.mxu0 0
      %1198 = vmatprep.subr.bf16.mxu0 0
      %1199 = vmatpush1.bf16.msra.mxu0 0
      %1200 = vmatprep.subr.bf16.mxu0 0
      %1201 = vmatpush1.bf16.msra.mxu0 0
      %1202 = vmatprep.subr.bf16.mxu0 0
      %1203 = vmatpush1.bf16.msra.mxu0 0
      %1204 = vmatprep.mubr.bf16.mxu0 0
      %1205 = vmatmul.mubr.bf16.gmra.mrb[0].mxu0 %v1161
      %v1206 = vpop.f32.mrb[0].mxu0
      %v1207 = vadd.f32 0.0, %v1206
      %v1208 = vpop.f32.mrb[0].mxu0
      %v1209 = vpop.f32.mrb[0].mxu0
      %v1210 = vadd.f32 0.0, %v1209
      %v1211 = vpop.f32.mrb[0].mxu0
      %1212 = vmatprep.mubr.bf16.mxu0 0
      %1213 = vmatmul.mubr.bf16.gmra.mrb[0].mxu0 %v1164
      %v1214 = vpop.f32.mrb[0].mxu0
      %v1215 = vadd.f32 0.0, %v1214
      %v1216 = vpop.f32.mrb[0].mxu0
      %v1217 = vpop.f32.mrb[0].mxu0
      %v1218 = vadd.f32 0.0, %v1217
      %v1219 = vpop.f32.mrb[0].mxu0
      %1220 = vmatprep.mubr.bf16.mxu0 0
      %1221 = vmatmul.mubr.bf16.gmra.mrb[0].mxu0 %v1167
      %v1222 = vpop.f32.mrb[0].mxu0
      %v1223 = vadd.f32 0.0, %v1222
      %v1224 = vpop.f32.mrb[0].mxu0
      %v1225 = vpop.f32.mrb[0].mxu0
      %v1226 = vadd.f32 0.0, %v1225
      %v1227 = vpop.f32.mrb[0].mxu0
      %1228 = vmatprep.mubr.bf16.mxu0 0
      %1229 = vmatmul.mubr.bf16.gmra.mrb[0].mxu0 %v1170
      %v1230 = vpop.f32.mrb[0].mxu0
      %v1231 = vadd.f32 0.0, %v1230
      %v1232 = vpop.f32.mrb[0].mxu0
      %v1233 = vpop.f32.mrb[0].mxu0
      %v1234 = vadd.f32 0.0, %v1233
      %v1235 = vpop.f32.mrb[0].mxu0
      %1236 = vdwg.mxu0
      %v1237 = vadd.f32 %v1075, %v1207
      %v1238 = vadd.f32 %v1076, %v1210
      %v1239 = vadd.f32 %v1077, %v1215
      %v1240 = vadd.f32 %v1078, %v1218
      %v1241 = vadd.f32 %v1079, %v1223
      %v1242 = vadd.f32 %v1080, %v1226
      %v1243 = vadd.f32 %v1081, %v1231
      %v1244 = vadd.f32 %v1082, %v1234
      %s1245 = scalar_lea.vmem %s208, 16
      %v1246 = vld [vmem:[%s1245] sm:$0xf]
      %v1247 = vld [vmem:[%s1245 + $0x8] sm:$0xf]
      %v1248 = vld [vmem:[%s1245 + $0x10] sm:$0xf]
      %v1249 = vld [vmem:[%s1245 + $0x18] sm:$0xf]
      %v1250 = vld [vmem:[%s1245 + $0x20] sm:$0xf]
      %v1251 = vld [vmem:[%s1245 + $0x28] sm:$0xf]
      %v1252 = vld [vmem:[%s1245 + $0x30] sm:$0xf]
      %v1253 = vld [vmem:[%s1245 + $0x38] sm:$0xf]
      %s1254 = scalar_lea.vmem %s212, 48
      %v1255 = vld [vmem:[%s1254] sm:$0xf]
      %v1256 = vld [vmem:[%s1254 + $0x4] sm:$0xf]
      %v1265 = vunpack.c.l.b16 %v1246
      %v1266 = vunpack.c.l.b16 %v1247
      %v1267 = vunpack.c.l.b16 %v1248
      %v1268 = vunpack.c.l.b16 %v1249
      %v1269 = vunpack.c.l.b16 %v1250
      %v1270 = vunpack.c.l.b16 %v1251
      %v1271 = vunpack.c.l.b16 %v1252
      %v1272 = vunpack.c.l.b16 %v1253
      %v1273 = vpack.c.b16 %v1266, %v1265
      %v1274 = vpack.c.b16 %v1268, %v1267
      %v1275 = vpack.c.b16 %v1270, %v1269
      %v1276 = vpack.c.b16 %v1272, %v1271
      %v1279 = vunpack.c.l.b16 %v1255
      %v1280 = vunpack.c.l.b16 %v1256
      %v1281 = vpack.c.b16 %v1280, %v1279
      %v1284 = vsel %vm380, %v1273, 0
      %v1287 = vsel %vm380, %v1274, 0
      %v1290 = vsel %vm380, %v1275, 0
      %v1293 = vsel %vm380, %v1276, 0
      %1295 = vmatprep.subr.bf16.mxu0 0
      %1296 = vmatpush1.bf16.msra.mxu0 %v1281
      %1297 = vmatprep.subr.bf16.mxu0 0
      %1298 = vmatpush1.bf16.msra.mxu0 0
      %1299 = vmatprep.subr.bf16.mxu0 0
      %1300 = vmatpush1.bf16.msra.mxu0 0
      %1301 = vmatprep.subr.bf16.mxu0 0
      %1302 = vmatpush1.bf16.msra.mxu0 0
      %1303 = vmatprep.subr.bf16.mxu0 0
      %1304 = vmatpush1.bf16.msra.mxu0 0
      %1305 = vmatprep.subr.bf16.mxu0 0
      %1306 = vmatpush1.bf16.msra.mxu0 0
      %1307 = vmatprep.subr.bf16.mxu0 0
      %1308 = vmatpush1.bf16.msra.mxu0 0
      %1309 = vmatprep.subr.bf16.mxu0 0
      %1310 = vmatpush1.bf16.msra.mxu0 0
      %1311 = vmatprep.subr.bf16.mxu0 0
      %1312 = vmatpush1.bf16.msra.mxu0 0
      %1313 = vmatprep.subr.bf16.mxu0 0
      %1314 = vmatpush1.bf16.msra.mxu0 0
      %1315 = vmatprep.subr.bf16.mxu0 0
      %1316 = vmatpush1.bf16.msra.mxu0 0
      %1317 = vmatprep.subr.bf16.mxu0 0
      %1318 = vmatpush1.bf16.msra.mxu0 0
      %1319 = vmatprep.subr.bf16.mxu0 0
      %1320 = vmatpush1.bf16.msra.mxu0 0
      %1321 = vmatprep.subr.bf16.mxu0 0
      %1322 = vmatpush1.bf16.msra.mxu0 0
      %1323 = vmatprep.subr.bf16.mxu0 0
      %1324 = vmatpush1.bf16.msra.mxu0 0
      %1325 = vmatprep.subr.bf16.mxu0 0
      %1326 = vmatpush1.bf16.msra.mxu0 0
      %1327 = vmatprep.mubr.bf16.mxu0 0
      %1328 = vmatmul.mubr.bf16.gmra.mrb[0].mxu0 %v1284
      %v1329 = vpop.f32.mrb[0].mxu0
      %v1330 = vadd.f32 0.0, %v1329
      %v1331 = vpop.f32.mrb[0].mxu0
      %v1332 = vpop.f32.mrb[0].mxu0
      %v1333 = vadd.f32 0.0, %v1332
      %v1334 = vpop.f32.mrb[0].mxu0
      %1335 = vmatprep.mubr.bf16.mxu0 0
      %1336 = vmatmul.mubr.bf16.gmra.mrb[0].mxu0 %v1287
      %v1337 = vpop.f32.mrb[0].mxu0
      %v1338 = vadd.f32 0.0, %v1337
      %v1339 = vpop.f32.mrb[0].mxu0
      %v1340 = vpop.f32.mrb[0].mxu0
      %v1341 = vadd.f32 0.0, %v1340
      %v1342 = vpop.f32.mrb[0].mxu0
      %1343 = vmatprep.mubr.bf16.mxu0 0
      %1344 = vmatmul.mubr.bf16.gmra.mrb[0].mxu0 %v1290
      %v1345 = vpop.f32.mrb[0].mxu0
      %v1346 = vadd.f32 0.0, %v1345
      %v1347 = vpop.f32.mrb[0].mxu0
      %v1348 = vpop.f32.mrb[0].mxu0
      %v1349 = vadd.f32 0.0, %v1348
      %v1350 = vpop.f32.mrb[0].mxu0
      %1351 = vmatprep.mubr.bf16.mxu0 0
      %1352 = vmatmul.mubr.bf16.gmra.mrb[0].mxu0 %v1293
      %v1353 = vpop.f32.mrb[0].mxu0
      %v1354 = vadd.f32 0.0, %v1353
      %v1355 = vpop.f32.mrb[0].mxu0
      %v1356 = vpop.f32.mrb[0].mxu0
      %v1357 = vadd.f32 0.0, %v1356
      %v1358 = vpop.f32.mrb[0].mxu0
      %1359 = vdwg.mxu0
      %v1360 = vadd.f32 %v1237, %v1330
      %v1361 = vadd.f32 %v1238, %v1333
      %v1362 = vadd.f32 %v1239, %v1338
      %v1363 = vadd.f32 %v1240, %v1341
      %v1364 = vadd.f32 %v1241, %v1346
      %v1365 = vadd.f32 %v1242, %v1349
      %v1366 = vadd.f32 %v1243, %v1354
      %v1367 = vadd.f32 %v1244, %v1357
      %v1368 = vld [vmem:[%s1245] sm:$0xf]
      %v1369 = vld [vmem:[%s1245 + $0x4] sm:$0x1]
      %v1370 = vld [vmem:[%s1245 + $0x8] sm:$0xf]
      %v1371 = vld [vmem:[%s1245 + $0xc] sm:$0x1]
      %v1372 = vld [vmem:[%s1245 + $0x10] sm:$0xf]
      %v1373 = vld [vmem:[%s1245 + $0x14] sm:$0x1]
      %v1374 = vld [vmem:[%s1245 + $0x18] sm:$0xf]
      %v1375 = vld [vmem:[%s1245 + $0x1c] sm:$0x1]
      %v1376 = vld [vmem:[%s1245 + $0x20] sm:$0xf]
      %v1377 = vld [vmem:[%s1245 + $0x24] sm:$0x1]
      %v1378 = vld [vmem:[%s1245 + $0x28] sm:$0xf]
      %v1379 = vld [vmem:[%s1245 + $0x2c] sm:$0x1]
      %v1380 = vld [vmem:[%s1245 + $0x30] sm:$0xf]
      %v1381 = vld [vmem:[%s1245 + $0x34] sm:$0x1]
      %v1382 = vld [vmem:[%s1245 + $0x38] sm:$0xf]
      %v1383 = vld [vmem:[%s1245 + $0x3c] sm:$0x1]
      %v1385 = vshrl.u32 %v1368, 16
      %v1387 = vrot.slane %v1385, 4
      %v1388 = vshll.u32 %v1368, 16
      %v1390 = vrot.slane %v1388, 5
      %v1391 = vor.u32 %v1387, %v1390
      %v1392 = vrot.slane %v1391, 4
      %v1394 = vshll.u32 %v1369, 16
      %v1396 = vrot.slane %v1394, 5
      %v1397 = vsel %vm246, %v1392, %v1396
      %v1399 = vshrl.u32 %v1370, 16
      %v1401 = vrot.slane %v1399, 4
      %v1402 = vshll.u32 %v1370, 16
      %v1404 = vrot.slane %v1402, 5
      %v1405 = vor.u32 %v1401, %v1404
      %v1406 = vrot.slane %v1405, 4
      %v1408 = vshll.u32 %v1371, 16
      %v1410 = vrot.slane %v1408, 5
      %v1411 = vsel %vm246, %v1406, %v1410
      %v1413 = vshrl.u32 %v1372, 16
      %v1415 = vrot.slane %v1413, 4
      %v1416 = vshll.u32 %v1372, 16
      %v1418 = vrot.slane %v1416, 5
      %v1419 = vor.u32 %v1415, %v1418
      %v1420 = vrot.slane %v1419, 4
      %v1422 = vshll.u32 %v1373, 16
      %v1424 = vrot.slane %v1422, 5
      %v1425 = vsel %vm246, %v1420, %v1424
      %v1427 = vshrl.u32 %v1374, 16
      %v1429 = vrot.slane %v1427, 4
      %v1430 = vshll.u32 %v1374, 16
      %v1432 = vrot.slane %v1430, 5
      %v1433 = vor.u32 %v1429, %v1432
      %v1434 = vrot.slane %v1433, 4
      %v1436 = vshll.u32 %v1375, 16
      %v1438 = vrot.slane %v1436, 5
      %v1439 = vsel %vm246, %v1434, %v1438
      %v1441 = vshrl.u32 %v1376, 16
      %v1443 = vrot.slane %v1441, 4
      %v1444 = vshll.u32 %v1376, 16
      %v1446 = vrot.slane %v1444, 5
      %v1447 = vor.u32 %v1443, %v1446
      %v1448 = vrot.slane %v1447, 4
      %v1450 = vshll.u32 %v1377, 16
      %v1452 = vrot.slane %v1450, 5
      %v1453 = vsel %vm246, %v1448, %v1452
      %v1455 = vshrl.u32 %v1378, 16
      %v1457 = vrot.slane %v1455, 4
      %v1458 = vshll.u32 %v1378, 16
      %v1460 = vrot.slane %v1458, 5
      %v1461 = vor.u32 %v1457, %v1460
      %v1462 = vrot.slane %v1461, 4
      %v1464 = vshll.u32 %v1379, 16
      %v1466 = vrot.slane %v1464, 5
      %v1467 = vsel %vm246, %v1462, %v1466
      %v1469 = vshrl.u32 %v1380, 16
      %v1471 = vrot.slane %v1469, 4
      %v1472 = vshll.u32 %v1380, 16
      %v1474 = vrot.slane %v1472, 5
      %v1475 = vor.u32 %v1471, %v1474
      %v1476 = vrot.slane %v1475, 4
      %v1478 = vshll.u32 %v1381, 16
      %v1480 = vrot.slane %v1478, 5
      %v1481 = vsel %vm246, %v1476, %v1480
      %v1483 = vshrl.u32 %v1382, 16
      %v1485 = vrot.slane %v1483, 4
      %v1486 = vshll.u32 %v1382, 16
      %v1488 = vrot.slane %v1486, 5
      %v1489 = vor.u32 %v1485, %v1488
      %v1490 = vrot.slane %v1489, 4
      %v1492 = vshll.u32 %v1383, 16
      %v1494 = vrot.slane %v1492, 5
      %v1495 = vsel %vm246, %v1490, %v1494
      %s1496 = scalar_lea.vmem %s212, 56
      %v1497 = vld [vmem:[%s1496] sm:$0xf]
      %v1498 = vld [vmem:[%s1496 + $0x4] sm:$0xf]
      %v1499 = vunpack.c.l.b16 %v1397
      %v1500 = vunpack.c.l.b16 %v1411
      %v1501 = vunpack.c.l.b16 %v1425
      %v1502 = vunpack.c.l.b16 %v1439
      %v1503 = vunpack.c.l.b16 %v1453
      %v1504 = vunpack.c.l.b16 %v1467
      %v1505 = vunpack.c.l.b16 %v1481
      %v1506 = vunpack.c.l.b16 %v1495
      %v1507 = vpack.c.b16 %v1500, %v1499
      %v1508 = vpack.c.b16 %v1502, %v1501
      %v1509 = vpack.c.b16 %v1504, %v1503
      %v1510 = vpack.c.b16 %v1506, %v1505
      %v1513 = vunpack.c.l.b16 %v1497
      %v1514 = vunpack.c.l.b16 %v1498
      %v1515 = vpack.c.b16 %v1514, %v1513
      %v1518 = vsel %vm380, %v1507, 0
      %v1521 = vsel %vm380, %v1508, 0
      %v1524 = vsel %vm380, %v1509, 0
      %v1527 = vsel %vm380, %v1510, 0
      %1529 = vmatprep.subr.bf16.mxu0 0
      %1530 = vmatpush1.bf16.msra.mxu0 %v1515
      %1531 = vmatprep.subr.bf16.mxu0 0
      %1532 = vmatpush1.bf16.msra.mxu0 0
      %1533 = vmatprep.subr.bf16.mxu0 0
      %1534 = vmatpush1.bf16.msra.mxu0 0
      %1535 = vmatprep.subr.bf16.mxu0 0
      %1536 = vmatpush1.bf16.msra.mxu0 0
      %1537 = vmatprep.subr.bf16.mxu0 0
      %1538 = vmatpush1.bf16.msra.mxu0 0
      %1539 = vmatprep.subr.bf16.mxu0 0
      %1540 = vmatpush1.bf16.msra.mxu0 0
      %1541 = vmatprep.subr.bf16.mxu0 0
      %1542 = vmatpush1.bf16.msra.mxu0 0
      %1543 = vmatprep.subr.bf16.mxu0 0
      %1544 = vmatpush1.bf16.msra.mxu0 0
      %1545 = vmatprep.subr.bf16.mxu0 0
      %1546 = vmatpush1.bf16.msra.mxu0 0
      %1547 = vmatprep.subr.bf16.mxu0 0
      %1548 = vmatpush1.bf16.msra.mxu0 0
      %1549 = vmatprep.subr.bf16.mxu0 0
      %1550 = vmatpush1.bf16.msra.mxu0 0
      %1551 = vmatprep.subr.bf16.mxu0 0
      %1552 = vmatpush1.bf16.msra.mxu0 0
      %1553 = vmatprep.subr.bf16.mxu0 0
      %1554 = vmatpush1.bf16.msra.mxu0 0
      %1555 = vmatprep.subr.bf16.mxu0 0
      %1556 = vmatpush1.bf16.msra.mxu0 0
      %1557 = vmatprep.subr.bf16.mxu0 0
      %1558 = vmatpush1.bf16.msra.mxu0 0
      %1559 = vmatprep.subr.bf16.mxu0 0
      %1560 = vmatpush1.bf16.msra.mxu0 0
      %1561 = vmatprep.mubr.bf16.mxu0 0
      %1562 = vmatmul.mubr.bf16.gmra.mrb[0].mxu0 %v1518
      %v1563 = vpop.f32.mrb[0].mxu0
      %v1564 = vadd.f32 0.0, %v1563
      %v1565 = vpop.f32.mrb[0].mxu0
      %v1566 = vpop.f32.mrb[0].mxu0
      %v1567 = vadd.f32 0.0, %v1566
      %v1568 = vpop.f32.mrb[0].mxu0
      %1569 = vmatprep.mubr.bf16.mxu0 0
      %1570 = vmatmul.mubr.bf16.gmra.mrb[0].mxu0 %v1521
      %v1571 = vpop.f32.mrb[0].mxu0
      %v1572 = vadd.f32 0.0, %v1571
      %v1573 = vpop.f32.mrb[0].mxu0
      %v1574 = vpop.f32.mrb[0].mxu0
      %v1575 = vadd.f32 0.0, %v1574
      %v1576 = vpop.f32.mrb[0].mxu0
      %1577 = vmatprep.mubr.bf16.mxu0 0
      %1578 = vmatmul.mubr.bf16.gmra.mrb[0].mxu0 %v1524
      %v1579 = vpop.f32.mrb[0].mxu0
      %v1580 = vadd.f32 0.0, %v1579
      %v1581 = vpop.f32.mrb[0].mxu0
      %v1582 = vpop.f32.mrb[0].mxu0
      %v1583 = vadd.f32 0.0, %v1582
      %v1584 = vpop.f32.mrb[0].mxu0
      %1585 = vmatprep.mubr.bf16.mxu0 0
      %1586 = vmatmul.mubr.bf16.gmra.mrb[0].mxu0 %v1527
      %v1587 = vpop.f32.mrb[0].mxu0
      %v1588 = vadd.f32 0.0, %v1587
      %v1589 = vpop.f32.mrb[0].mxu0
      %v1590 = vpop.f32.mrb[0].mxu0
      %v1591 = vadd.f32 0.0, %v1590
      %v1592 = vpop.f32.mrb[0].mxu0
      %1593 = vdwg.mxu0
      %v1594 = vadd.f32 %v1360, %v1564
      %v1595 = vadd.f32 %v1361, %v1567
      %v1596 = vadd.f32 %v1362, %v1572
      %v1597 = vadd.f32 %v1363, %v1575
      %v1598 = vadd.f32 %v1364, %v1580
      %v1599 = vadd.f32 %v1365, %v1583
      %v1600 = vadd.f32 %v1366, %v1588
      %v1601 = vadd.f32 %v1367, %v1591
      %v1602 = vld [vmem:[%s1245] sm:$0xe]
      %v1603 = vld [vmem:[%s1245 + $0x8] sm:$0xe]
      %v1604 = vld [vmem:[%s1245 + $0x10] sm:$0xe]
      %v1605 = vld [vmem:[%s1245 + $0x18] sm:$0xe]
      %v1606 = vld [vmem:[%s1245 + $0x20] sm:$0xe]
      %v1607 = vld [vmem:[%s1245 + $0x28] sm:$0xe]
      %v1608 = vld [vmem:[%s1245 + $0x30] sm:$0xe]
      %v1609 = vld [vmem:[%s1245 + $0x38] sm:$0xe]
      %v1626 = vrot.slane %v1602, 5
      %v1627 = vrot.slane %v1626, 4
      %v1628 = vrot.slane %v1369, 5
      %v1629 = vsel %vm587, %v1627, %v1628
      %v1630 = vrot.slane %v1603, 5
      %v1631 = vrot.slane %v1630, 4
      %v1632 = vrot.slane %v1371, 5
      %v1633 = vsel %vm587, %v1631, %v1632
      %v1634 = vrot.slane %v1604, 5
      %v1635 = vrot.slane %v1634, 4
      %v1636 = vrot.slane %v1373, 5
      %v1637 = vsel %vm587, %v1635, %v1636
      %v1638 = vrot.slane %v1605, 5
      %v1639 = vrot.slane %v1638, 4
      %v1640 = vrot.slane %v1375, 5
      %v1641 = vsel %vm587, %v1639, %v1640
      %v1642 = vrot.slane %v1606, 5
      %v1643 = vrot.slane %v1642, 4
      %v1644 = vrot.slane %v1377, 5
      %v1645 = vsel %vm587, %v1643, %v1644
      %v1646 = vrot.slane %v1607, 5
      %v1647 = vrot.slane %v1646, 4
      %v1648 = vrot.slane %v1379, 5
      %v1649 = vsel %vm587, %v1647, %v1648
      %v1650 = vrot.slane %v1608, 5
      %v1651 = vrot.slane %v1650, 4
      %v1652 = vrot.slane %v1381, 5
      %v1653 = vsel %vm587, %v1651, %v1652
      %v1654 = vrot.slane %v1609, 5
      %v1655 = vrot.slane %v1654, 4
      %v1656 = vrot.slane %v1383, 5
      %v1657 = vsel %vm587, %v1655, %v1656
      %s1658 = scalar_lea.vmem %s212, 64
      %v1659 = vld [vmem:[%s1658] sm:$0xf]
      %v1660 = vld [vmem:[%s1658 + $0x4] sm:$0xf]
      %v1661 = vunpack.c.l.b16 %v1629
      %v1662 = vunpack.c.l.b16 %v1633
      %v1663 = vunpack.c.l.b16 %v1637
      %v1664 = vunpack.c.l.b16 %v1641
      %v1665 = vunpack.c.l.b16 %v1645
      %v1666 = vunpack.c.l.b16 %v1649
      %v1667 = vunpack.c.l.b16 %v1653
      %v1668 = vunpack.c.l.b16 %v1657
      %v1669 = vpack.c.b16 %v1662, %v1661
      %v1670 = vpack.c.b16 %v1664, %v1663
      %v1671 = vpack.c.b16 %v1666, %v1665
      %v1672 = vpack.c.b16 %v1668, %v1667
      %v1675 = vunpack.c.l.b16 %v1659
      %v1676 = vunpack.c.l.b16 %v1660
      %v1677 = vpack.c.b16 %v1676, %v1675
      %v1680 = vsel %vm380, %v1669, 0
      %v1683 = vsel %vm380, %v1670, 0
      %v1686 = vsel %vm380, %v1671, 0
      %v1689 = vsel %vm380, %v1672, 0
      %1691 = vmatprep.subr.bf16.mxu0 0
      %1692 = vmatpush1.bf16.msra.mxu0 %v1677
      %1693 = vmatprep.subr.bf16.mxu0 0
      %1694 = vmatpush1.bf16.msra.mxu0 0
      %1695 = vmatprep.subr.bf16.mxu0 0
      %1696 = vmatpush1.bf16.msra.mxu0 0
      %1697 = vmatprep.subr.bf16.mxu0 0
      %1698 = vmatpush1.bf16.msra.mxu0 0
      %1699 = vmatprep.subr.bf16.mxu0 0
      %1700 = vmatpush1.bf16.msra.mxu0 0
      %1701 = vmatprep.subr.bf16.mxu0 0
      %1702 = vmatpush1.bf16.msra.mxu0 0
      %1703 = vmatprep.subr.bf16.mxu0 0
      %1704 = vmatpush1.bf16.msra.mxu0 0
      %1705 = vmatprep.subr.bf16.mxu0 0
      %1706 = vmatpush1.bf16.msra.mxu0 0
      %1707 = vmatprep.subr.bf16.mxu0 0
      %1708 = vmatpush1.bf16.msra.mxu0 0
      %1709 = vmatprep.subr.bf16.mxu0 0
      %1710 = vmatpush1.bf16.msra.mxu0 0
      %1711 = vmatprep.subr.bf16.mxu0 0
      %1712 = vmatpush1.bf16.msra.mxu0 0
      %1713 = vmatprep.subr.bf16.mxu0 0
      %1714 = vmatpush1.bf16.msra.mxu0 0
      %1715 = vmatprep.subr.bf16.mxu0 0
      %1716 = vmatpush1.bf16.msra.mxu0 0
      %1717 = vmatprep.subr.bf16.mxu0 0
      %1718 = vmatpush1.bf16.msra.mxu0 0
      %1719 = vmatprep.subr.bf16.mxu0 0
      %1720 = vmatpush1.bf16.msra.mxu0 0
      %1721 = vmatprep.subr.bf16.mxu0 0
      %1722 = vmatpush1.bf16.msra.mxu0 0
      %1723 = vmatprep.mubr.bf16.mxu0 0
      %1724 = vmatmul.mubr.bf16.gmra.mrb[0].mxu0 %v1680
      %v1725 = vpop.f32.mrb[0].mxu0
      %v1726 = vadd.f32 0.0, %v1725
      %v1727 = vpop.f32.mrb[0].mxu0
      %v1728 = vpop.f32.mrb[0].mxu0
      %v1729 = vadd.f32 0.0, %v1728
      %v1730 = vpop.f32.mrb[0].mxu0
      %1731 = vmatprep.mubr.bf16.mxu0 0
      %1732 = vmatmul.mubr.bf16.gmra.mrb[0].mxu0 %v1683
      %v1733 = vpop.f32.mrb[0].mxu0
      %v1734 = vadd.f32 0.0, %v1733
      %v1735 = vpop.f32.mrb[0].mxu0
      %v1736 = vpop.f32.mrb[0].mxu0
      %v1737 = vadd.f32 0.0, %v1736
      %v1738 = vpop.f32.mrb[0].mxu0
      %1739 = vmatprep.mubr.bf16.mxu0 0
      %1740 = vmatmul.mubr.bf16.gmra.mrb[0].mxu0 %v1686
      %v1741 = vpop.f32.mrb[0].mxu0
      %v1742 = vadd.f32 0.0, %v1741
      %v1743 = vpop.f32.mrb[0].mxu0
      %v1744 = vpop.f32.mrb[0].mxu0
      %v1745 = vadd.f32 0.0, %v1744
      %v1746 = vpop.f32.mrb[0].mxu0
      %1747 = vmatprep.mubr.bf16.mxu0 0
      %1748 = vmatmul.mubr.bf16.gmra.mrb[0].mxu0 %v1689
      %v1749 = vpop.f32.mrb[0].mxu0
      %v1750 = vadd.f32 0.0, %v1749
      %v1751 = vpop.f32.mrb[0].mxu0
      %v1752 = vpop.f32.mrb[0].mxu0
      %v1753 = vadd.f32 0.0, %v1752
      %v1754 = vpop.f32.mrb[0].mxu0
      %1755 = vdwg.mxu0
      %v1756 = vadd.f32 %v1594, %v1726
      %v1757 = vadd.f32 %v1595, %v1729
      %v1758 = vadd.f32 %v1596, %v1734
      %v1759 = vadd.f32 %v1597, %v1737
      %v1760 = vadd.f32 %v1598, %v1742
      %v1761 = vadd.f32 %v1599, %v1745
      %v1762 = vadd.f32 %v1600, %v1750
      %v1763 = vadd.f32 %v1601, %v1753
      %v1764 = vld [vmem:[%s216] sm:$0x1]
      %v1765 = vlaneseq
      %v1766 = vshrl.u32 %v1765, 7
      %v1767 = vsub.s32 0, %v1766
      %v1768 = vrot.slane %v1764, %v1767
      %v1769 = vmul.f32 %v1756, %v1768
      %v1770 = vmul.f32 %v1757, %v1768
      %v1771 = vmul.f32 %v1758, %v1768
      %v1772 = vmul.f32 %v1759, %v1768
      %v1773 = vmul.f32 %v1760, %v1768
      %v1774 = vmul.f32 %v1761, %v1768
      %v1775 = vmul.f32 %v1762, %v1768
      %v1776 = vmul.f32 %v1763, %v1768
      %v1777 = vld [vmem:[%s216 + $0x1] sm:$0x1]
      %v1778 = vlaneseq
      %v1779 = vshrl.u32 %v1778, 7
      %v1780 = vsub.s32 0, %v1779
      %v1781 = vrot.slane %v1777, %v1780
      %v1782 = vadd.f32 %v1769, %v1781
      %v1783 = vadd.f32 %v1770, %v1781
      %v1784 = vadd.f32 %v1771, %v1781
      %v1785 = vadd.f32 %v1772, %v1781
      %v1786 = vadd.f32 %v1773, %v1781
      %v1787 = vadd.f32 %v1774, %v1781
      %v1788 = vadd.f32 %v1775, %v1781
      %v1789 = vadd.f32 %v1776, %v1781
      %v1790 = vmax.f32 %v1782, 0.0
      %v1791 = vmax.f32 %v1783, 0.0
      %v1792 = vmax.f32 %v1784, 0.0
      %v1793 = vmax.f32 %v1785, 0.0
      %v1794 = vmax.f32 %v1786, 0.0
      %v1795 = vmax.f32 %v1787, 0.0
      %v1796 = vmax.f32 %v1788, 0.0
      %v1797 = vmax.f32 %v1789, 0.0
      %v1798 = vpack.c.bf16 %v1790, %v1790
      %v1799 = vpack.c.bf16 %v1791, %v1791
      %v1800 = vpack.c.bf16 %v1792, %v1792
      %v1801 = vpack.c.bf16 %v1793, %v1793
      %v1802 = vpack.c.bf16 %v1794, %v1794
      %v1803 = vpack.c.bf16 %v1795, %v1795
      %v1804 = vpack.c.bf16 %v1796, %v1796
      %v1805 = vpack.c.bf16 %v1797, %v1797
      %vm1806 = vcmask 125952
      %1807 = vst.msk [vmem:[%s224] sm:$0xf] %vm1806, %v1798
      %1808 = vst.msk [vmem:[%s224 + $0x4] sm:$0xf] %vm1806, %v1799
      %1809 = vst.msk [vmem:[%s224 + $0x8] sm:$0xf] %vm1806, %v1800
      %1810 = vst.msk [vmem:[%s224 + $0xc] sm:$0xf] %vm1806, %v1801
      %1811 = vst.msk [vmem:[%s224 + $0x10] sm:$0xf] %vm1806, %v1802
      %1812 = vst.msk [vmem:[%s224 + $0x14] sm:$0xf] %vm1806, %v1803
      %1813 = vst.msk [vmem:[%s224 + $0x18] sm:$0xf] %vm1806, %v1804
      %1814 = vst.msk [vmem:[%s224 + $0x1c] sm:$0xf] %vm1806, %v1805
      %p1815 = scmp.lt.s32.totalorder %s18, 1
      %s1816 = scalar_select %p1815, %s18, 1
      %p1817 = scmp.lt.s32.totalorder %s19, 0
      %s1818 = scalar_select %p1817, %s19, 0
      %s1819 = smul.addr %s1816, 8
      %s1820 = sadd.s32 %s1818, %s1819
      %s1821 = smul.addr %s1820, 4
      %s1822 = scalar_lea.vmem %s3, %s1821
      // Predicated region
      $region33: #{run_pallas.12} parent=31 // pred_check
        %p1823 = pneg %p124
      $region34: #{run_pallas.12} parent=31 // pred_check_branch
        %1825 = sbr.rel (%p1823) target = $region36
      $region35: #{run_pallas.12} parent=31 // pred_region
        _
      $region36: #{run_pallas.12} parent=31 // pred_fallthru
        _
    $region32: #{run_pallas.12} parent=5 // pred_fallthru
      _
    %p1826 = scmp.le.s32.totalorder 2, %s9
    // Predicated region
    $region37: #{run_pallas.12} parent=5 // pred_check
      %p1827 = pneg %p1826
    $region38: #{run_pallas.12} parent=5 // pred_check_branch
      %1829 = sbr.rel (%p1827) target = $region40
    $region39: #{run_pallas.12} parent=5 // pred_region
      %s1830 = ssub.s32 %s9, 2
      // Predicated region
      $region41: #{run_pallas.12} parent=39 // pred_check
        %p1831 = pneg %p130
      $region42: #{run_pallas.12} parent=39 // pred_check_branch
        %1833 = sbr.rel (%p1831) target = $region44
      $region43: #{run_pallas.12} parent=39 // pred_region
        %p1834 = scmp.lt.s32.totalorder %s20, 1
        %s1835 = scalar_select %p1834, %s20, 1
        %p1836 = scmp.lt.s32.totalorder %s21, 0
        %s1837 = scalar_select %p1836, %s21, 0
        %s1838 = smul.addr %s1835, 8
        %s1839 = sadd.s32 %s1837, %s1838
        %s1840 = smul.addr %s1839, 4
        %s1841 = scalar_lea.vmem %s3, %s1840
      $region44: #{run_pallas.12} parent=39 // pred_fallthru
        _
    $region40: #{run_pallas.12} parent=5 // pred_fallthru
      _
  $region6: #{run_pallas.12} parent=0 // loop_footer
    %s13 = sadd.s32 1, %s9
  $region7: #{run_pallas.12} parent=0 // loop_footer_branch
    %8 = sbr.rel target = $region3
  $region8: #{run_pallas.12} parent=0 // loop_exit
    _

</llo_original>
